<compile_context>
chip_gen: v7x
topology: tpu7x:2x2x1
jax: 0.10.0
libtpu: 0.0.40
codegen_flags: <defaults>
</compile_context>

<pallas_src>
import functools

import numpy as np
import jax
import jax.numpy as jnp
from jax import lax
from jax.experimental import pallas as pl
from jax.experimental.pallas import tpu as pltpu


# ----------------------------- Pallas kernel ------------------------------ #

def _bilstm_chunk_kernel(xf_ref, xb_ref, wih_ref, whh_ref, b_ref, len_ref,
                         outf_ref, outb_ref,
                         pgf_sc, pgb_sc, hf_sc, cf_sc, hb_sc, cb_sc,
                         *, Tc, T_pad, unroll):
    """One time-chunk of BOTH LSTM directions.

    xf_ref / xb_ref : (Tc, B, E_in) bf16  input chunk for fwd / bwd direction
    wih_ref         : (2, E_in, 4H) bf16  input weights (transposed, 0.5-folded)
    whh_ref         : (2, H, 4H)    bf16  recurrent weights (transposed)
    b_ref           : (2, 1, 4H)    f32   biases (0.5-folded for i/f/o)
    len_ref         : (B, 1)        i32   sequence lengths
    outf_ref/outb_ref: (Tc, B, H)   bf16  per-timestep hidden outputs
    pg*_sc          : (Tc, B, 4H)   f32   per-chunk pre-gate scratch
    h*/c*_sc        : (B, H)        f32   carried state
    """
    tc = pl.program_id(0)

    @pl.when(tc == 0)
    def _():
        hf_sc[...] = jnp.zeros_like(hf_sc)
        cf_sc[...] = jnp.zeros_like(cf_sc)
        hb_sc[...] = jnp.zeros_like(hb_sc)
        cb_sc[...] = jnp.zeros_like(cb_sc)

    B, Hp = hf_sc.shape
    G = 4 * Hp
    lens = len_ref[...]                                   # (B, 1) int32

    # Fused input projection for the whole chunk: one big MXU matmul per
    # direction (bf16 x bf16 -> f32), bias added here (once per chunk).
    xf = xf_ref[...].reshape(Tc * B, -1)
    xb = xb_ref[...].reshape(Tc * B, -1)
    pgf_sc[...] = (jnp.dot(xf, wih_ref[0], preferred_element_type=jnp.float32)
                   + b_ref[0]).reshape(Tc, B, G)
    pgb_sc[...] = (jnp.dot(xb, wih_ref[1], preferred_element_type=jnp.float32)
                   + b_ref[1]).reshape(Tc, B, G)

    whh_f = whh_ref[0]                                    # (Hp, 4Hp) bf16
    whh_b = whh_ref[1]

    def lstm_step(pg_row, h, c, whh):
        # Recurrent matmul: bf16 operands, f32 accumulation.
        gates = pg_row + jnp.dot(h.astype(jnp.bfloat16), whh,
                                 preferred_element_type=jnp.float32)
        # 0.5 pre-scale already folded into i/f/o weight rows:
        # sigmoid(x) = 0.5*tanh(0.5x) + 0.5  ->  one EUP tanh over (B, 4Hp).
        t = jnp.tanh(gates)
        i_g = 0.5 * t[:, 0:Hp] + 0.5
        f_g = 0.5 * t[:, Hp:2 * Hp] + 0.5
        g_g = t[:, 2 * Hp:3 * Hp]
        o_g = 0.5 * t[:, 3 * Hp:4 * Hp] + 0.5
        c_new = f_g * c + i_g * g_g
        h_new = o_g * jnp.tanh(c_new)
        return h_new, c_new

    def step(i, carry):
        t_f = tc * Tc + i                 # forward global time
        t_b = T_pad - 1 - t_f             # backward global time
        r_b = Tc - 1 - i                  # backward row inside the chunk

        # The two directions are independent -> same basic block, the LLO
        # scheduler interleaves their matmul / EUP chains (single-TC overlap).
        h_f, c_f = lstm_step(pgf_sc[i], hf_sc[...], cf_sc[...], whh_f)
        h_b, c_b = lstm_step(pgb_sc[r_b], hb_sc[...], cb_sc[...], whh_b)

        # Packed-sequence masking: freeze state, zero output at t >= length.
        m_f = jnp.broadcast_to(t_f < lens, (B, Hp))
        m_b = jnp.broadcast_to(t_b < lens, (B, Hp))
        hf_sc[...] = jnp.where(m_f, h_f, hf_sc[...])
        cf_sc[...] = jnp.where(m_f, c_f, cf_sc[...])
        hb_sc[...] = jnp.where(m_b, h_b, hb_sc[...])
        cb_sc[...] = jnp.where(m_b, c_b, cb_sc[...])
        outf_ref[i] = jnp.where(m_f, h_f, 0.0).astype(outf_ref.dtype)
        outb_ref[r_b] = jnp.where(m_b, h_b, 0.0).astype(outb_ref.dtype)
        return carry

    lax.fori_loop(0, Tc, step, 0, unroll=unroll)


def _bilstm_layer_pallas(x_tm, wih_t, whh_t, bias, len_col, Tc, unroll):
    """Run one fused bidirectional LSTM layer.

    x_tm:  (T_pad, B, E_in) bf16 time-major activations
    wih_t: (2, E_in, 4Hp) bf16;  whh_t: (2, Hp, 4Hp) bf16;  bias: (2, 1, 4Hp) f32
    returns (out_fwd, out_bwd), each (T_pad, B, Hp) bf16, zero beyond length.
    """
    T_pad, B, E_in = x_tm.shape
    G = wih_t.shape[-1]
    Hp = G // 4
    assert wih_t.shape == (2, E_in, G)
    assert T_pad % Tc == 0
    nc = T_pad // Tc

    kernel = functools.partial(_bilstm_chunk_kernel, Tc=Tc, T_pad=T_pad,
                               unroll=max(1, min(int(unroll), Tc)))

    # Explicit scoped-VMEM budget: pipelined blocks (x2 double buffering) plus
    # persistent scratch, with headroom; capped well under v7x's 64 MiB.
    blk = 2 * (2 * Tc * B * E_in          # two bf16 x views
               + 2 * Tc * B * Hp          # two bf16 output blocks
               + 2 * E_in * G             # bf16 W_ih^T (both directions)
               + 2 * Hp * G)              # bf16 W_hh^T (both directions)
    blk += 2 * (2 * G * 4 + B * 4)        # f32 bias, int32 lengths
    scr = 2 * Tc * B * G * 4 + 4 * B * Hp * 4
    vmem_limit = int(1.25 * (2 * blk + scr)) + (2 << 20)
    vmem_limit = min(max(vmem_limit, 16 << 20), 96 << 20)

    out_f, out_b = pl.pallas_call(
        kernel,
        out_shape=(jax.ShapeDtypeStruct((T_pad, B, Hp), jnp.bfloat16),
                   jax.ShapeDtypeStruct((T_pad, B, Hp), jnp.bfloat16)),
        grid_spec=pltpu.PrefetchScalarGridSpec(
            num_scalar_prefetch=0,
            grid=(nc,),
            in_specs=[
                # forward direction walks chunks 0..nc-1, backward nc-1..0
                pl.BlockSpec((Tc, B, E_in), lambda tc: (tc, 0, 0)),
                pl.BlockSpec((Tc, B, E_in), lambda tc: (nc - 1 - tc, 0, 0)),
                pl.BlockSpec((2, E_in, G), lambda tc: (0, 0, 0)),   # W_ih^T
                pl.BlockSpec((2, Hp, G), lambda tc: (0, 0, 0)),     # W_hh^T
                pl.BlockSpec((2, 1, G), lambda tc: (0, 0, 0)),      # bias
                pl.BlockSpec((B, 1), lambda tc: (0, 0)),            # lengths
            ],
            out_specs=[
                pl.BlockSpec((Tc, B, Hp), lambda tc: (tc, 0, 0)),
                pl.BlockSpec((Tc, B, Hp), lambda tc: (nc - 1 - tc, 0, 0)),
            ],
            scratch_shapes=[
                pltpu.VMEM((Tc, B, G), jnp.float32),    # fwd chunk pre-gates
                pltpu.VMEM((Tc, B, G), jnp.float32),    # bwd chunk pre-gates
                pltpu.VMEM((B, Hp), jnp.float32),       # h fwd
                pltpu.VMEM((B, Hp), jnp.float32),       # c fwd
                pltpu.VMEM((B, Hp), jnp.float32),       # h bwd
                pltpu.VMEM((B, Hp), jnp.float32),       # c bwd
            ],
        ),
        compiler_params=pltpu.CompilerParams(
            dimension_semantics=("arbitrary",),
            vmem_limit_bytes=vmem_limit),
    )(x_tm, x_tm, wih_t, whh_t, bias, len_col)
    return out_f, out_b


# ------------------------- weight preparation ------------------------------ #

def _prep_direction_weights(wih, whh, b, H, Hp, *, first_layer, prev_H, prev_Hp):
    """Pad gates H->Hp (per gate block), pad/replace input columns, fold the
    0.5 sigmoid pre-scale into the i/f/o rows, transpose, cast to bf16."""
    f32 = jnp.float32
    wih = wih.astype(f32)
    whh = whh.astype(f32)
    b = b.astype(f32)

    if not first_layer:
        # Previous layer output is [fwd(Hp_prev) ; bwd(Hp_prev)] with only the
        # first prev_H of each slab valid; re-place the weight columns.
        rows = wih.shape[0]
        w_new = jnp.zeros((rows, 2 * prev_Hp), f32)
        w_new = w_new.at[:, :prev_H].set(wih[:, :prev_H])
        w_new = w_new.at[:, prev_Hp:prev_Hp + prev_H].set(wih[:, prev_H:])
        wih = w_new

    whh = jnp.pad(whh, ((0, 0), (0, Hp - H)))            # pad the h-input dim

    gscale = jnp.array([0.5, 0.5, 1.0, 0.5], f32)[:, None, None]  # i, f, g, o

    def pad_gates_and_scale(w):
        w4 = w.reshape(4, H, -1)
        w4p = jnp.zeros((4, Hp, w4.shape[-1]), f32).at[:, :H, :].set(w4)
        return (w4p * gscale).reshape(4 * Hp, -1)

    wih_p = pad_gates_and_scale(wih)                     # (4Hp, E_in_pad)
    whh_p = pad_gates_and_scale(whh)                     # (4Hp, Hp)
    b_p = pad_gates_and_scale(b[:, None]).reshape(4 * Hp)

    return (wih_p.T.astype(jnp.bfloat16),
            whh_p.T.astype(jnp.bfloat16),
            b_p)


# ------------------------------ encoder (JAX glue) ------------------------- #

def bilstm_encoder_pallas(inputs, lengths, params, *, time_chunk=32, unroll=8,
                          max_len=None):
    """inputs: (B, T, E) batch-first; lengths: (B,) int.

    params: list per layer of (wih_f, whh_f, b_f, wih_b, whh_b, b_b) with
    b = b_ih + b_hh.  Returns (B, T_out, 2H) f32 with T_out = max_len (or T),
    matching pad_packed_sequence(batch_first=True) + unsort.  Dropout layers
    are identity (eval / inference)."""
    B, T, E = inputs.shape
    T_out = T if max_len is None else min(int(max_len), T)

    B_pad = int(np.ceil(B / 8) * 8)                      # sublane multiple
    Tc = max(1, min(int(time_chunk), T_out))
    T_pad = int(np.ceil(T_out / Tc) * Tc)

    x = inputs.astype(jnp.float32)[:, :T_out]
    x = jnp.pad(x, ((0, B_pad - B), (0, 0), (0, 0)))
    x_tm = jnp.transpose(x, (1, 0, 2))                   # time-major
    x_tm = jnp.pad(x_tm, ((0, T_pad - T_out), (0, 0), (0, 0)))
    act = x_tm.astype(jnp.bfloat16)                      # (T_pad, B_pad, E)

    # Padded batch rows get length 0 -> fully masked.
    len_col = jnp.pad(lengths.astype(jnp.int32),
                      (0, B_pad - B)).reshape(B_pad, 1)

    prev_H = prev_Hp = None
    out_f = out_b = None
    H = None
    for li, (wih_f, whh_f, b_f, wih_b, whh_b, b_b) in enumerate(params):
        H = whh_f.shape[1]
        Hp = int(np.ceil(H / 128) * 128)                 # lane-dense hidden dim

        wf_t, whf_t, bf_p = _prep_direction_weights(
            wih_f, whh_f, b_f, H, Hp, first_layer=(li == 0),
            prev_H=prev_H, prev_Hp=prev_Hp)
        wb_t, whb_t, bb_p = _prep_direction_weights(
            wih_b, whh_b, b_b, H, Hp, first_layer=(li == 0),
            prev_H=prev_H, prev_Hp=prev_Hp)

        wih_t = jnp.stack([wf_t, wb_t])                  # (2, E_in, 4Hp) bf16
        whh_t = jnp.stack([whf_t, whb_t])                # (2, Hp, 4Hp)  bf16
        bias = jnp.stack([bf_p, bb_p])[:, None, :]       # (2, 1, 4Hp)   f32

        out_f, out_b = _bilstm_layer_pallas(act, wih_t, whh_t, bias, len_col,
                                            Tc, unroll)
        # Next layer consumes the [fwd ; bwd] bf16 slabs directly.
        act = jnp.concatenate([out_f, out_b], axis=-1)   # (T_pad, B_pad, 2Hp)
        prev_H, prev_Hp = H, Hp

    # (T_pad, B_pad, Hp) x2 -> (B, T_out, 2H) f32, PyTorch [fwd ; bwd] order.
    emb = jnp.concatenate([out_f[..., :H], out_b[..., :H]], axis=-1)
    emb = jnp.transpose(emb, (1, 0, 2))[:B, :T_out].astype(jnp.float32)
    return emb


# ------------------------- pure-JAX reference path ------------------------- #

def _ref_lstm_direction(x_bte, wih, whh, bias, lengths):
    B, T, E = x_bte.shape
    H = whh.shape[1]
    x_tm = jnp.transpose(x_bte, (1, 0, 2)).astype(jnp.float32)
    wih_t = wih.T.astype(jnp.float32)
    whh_t = whh.T.astype(jnp.float32)
    len_col = lengths.astype(jnp.float32).reshape(B, 1)

    def step(carry, inp):
        h, c = carry
        x_t, t = inp
        gates = x_t @ wih_t + h @ whh_t + bias[None, :]
        i = jax.nn.sigmoid(gates[:, :H])
        f = jax.nn.sigmoid(gates[:, H:2 * H])
        g = jnp.tanh(gates[:, 2 * H:3 * H])
        o = jax.nn.sigmoid(gates[:, 3 * H:])
        c_new = f * c + i * g
        h_new = o * jnp.tanh(c_new)
        mask = t < len_col
        return ((jnp.where(mask, h_new, h), jnp.where(mask, c_new, c)),
                jnp.where(mask, h_new, 0.0))

    init = (jnp.zeros((B, H), jnp.float32), jnp.zeros((B, H), jnp.float32))
    _, outs = lax.scan(step, init, (x_tm, jnp.arange(T, dtype=jnp.float32)))
    return jnp.transpose(outs, (1, 0, 2))


def _reverse_within_length(x, lengths):
    B, T = x.shape[0], x.shape[1]
    t_idx = jnp.arange(T)[None, :]
    L = lengths[:, None]
    rev = jnp.where(t_idx < L, L - 1 - t_idx, t_idx)
    return x[jnp.arange(B)[:, None], rev]


def bilstm_encoder_ref(inputs, lengths, params):
    h = inputs.astype(jnp.float32)
    for (wih_f, whh_f, b_f, wih_b, whh_b, b_b) in params:
        out_f = _ref_lstm_direction(h, wih_f, whh_f, b_f, lengths)
        h_rev = _reverse_within_length(h, lengths)
        out_b_rev = _ref_lstm_direction(h_rev, wih_b, whh_b, b_b, lengths)
        out_b = _reverse_within_length(out_b_rev, lengths)
        h = jnp.concatenate([out_f, out_b], axis=-1)
    return h


# ------------------------------- params ------------------------------------ #

def init_params(key, embed_dim, hidden_dim, layers):
    params = []
    k = 1.0 / np.sqrt(hidden_dim)
    in_dim = embed_dim
    for _ in range(layers):
        layer = []
        for _direction in range(2):
            key, k1, k2, k3, k4 = jax.random.split(key, 5)
            wih = jax.random.uniform(k1, (4 * hidden_dim, in_dim),
                                     jnp.float32, -k, k)
            whh = jax.random.uniform(k2, (4 * hidden_dim, hidden_dim),
                                     jnp.float32, -k, k)
            b_ih = jax.random.uniform(k3, (4 * hidden_dim,), jnp.float32, -k, k)
            b_hh = jax.random.uniform(k4, (4 * hidden_dim,), jnp.float32, -k, k)
            layer += [wih, whh, b_ih + b_hh]
        params.append(tuple(layer))
        in_dim = 2 * hidden_dim
    return params


# --------------------------------- main ------------------------------------ #

if __name__ == "__main__":
    embed_dim, hidden_dim, layers = 32, 32, 2
    B, T = 4, 8

    key = jax.random.PRNGKey(0)
    kx, kp = jax.random.split(key)
    x = jax.random.normal(kx, (B, T, embed_dim), jnp.float32)
    lengths = jnp.array([8, 5, 3, 6], dtype=jnp.int32)
    params = init_params(kp, embed_dim, hidden_dim, layers)

    # pad_packed_sequence pads only up to max(lengths)
    T_out = int(np.max(np.asarray(lengths)))

    out = bilstm_encoder_pallas(x, lengths, params, time_chunk=32, unroll=8,
                                max_len=T_out)
    out = np.asarray(jax.block_until_ready(out))

    ref = bilstm_encoder_ref(x, lengths, params)
    ref = np.asarray(jax.block_until_ready(ref))[:, :T_out, :]

    assert out.shape == (B, T_out, 2 * hidden_dim), out.shape
    assert np.all(np.isfinite(out))
    # bf16 MXU operands / bf16 layer outputs -> slightly looser tolerance.
    np.testing.assert_allclose(out, ref, atol=3e-2, rtol=3e-2)

    print("KERNEL_OK")
</pallas_src>

<mosaic_0001>
module attributes {stable_mosaic.version = 11 : i64} {
  func.func @_bilstm_chunk_kernel(%arg0: i32, %arg1: memref<8x8x32xbf16, #tpu.memory_space<vmem>>, %arg2: memref<8x8x32xbf16, #tpu.memory_space<vmem>>, %arg3: memref<2x32x512xbf16, #tpu.memory_space<vmem>>, %arg4: memref<2x128x512xbf16, #tpu.memory_space<vmem>>, %arg5: memref<2x1x512xf32, #tpu.memory_space<vmem>>, %arg6: memref<8x1xi32, #tpu.memory_space<vmem>>, %arg7: memref<8x8x128xbf16, #tpu.memory_space<vmem>>, %arg8: memref<8x8x128xbf16, #tpu.memory_space<vmem>>, %arg9: memref<8x8x512xf32, #tpu.memory_space<vmem>>, %arg10: memref<8x8x512xf32, #tpu.memory_space<vmem>>, %arg11: memref<8x128xf32, #tpu.memory_space<vmem>>, %arg12: memref<8x128xf32, #tpu.memory_space<vmem>>, %arg13: memref<8x128xf32, #tpu.memory_space<vmem>>, %arg14: memref<8x128xf32, #tpu.memory_space<vmem>>) attributes {dimension_semantics = [#tpu.dimension_semantics<arbitrary>], iteration_bounds = array<i64: 1>, scalar_prefetch = 0 : i64, scratch_operands = 6 : i64, tpu.core_type = #tpu.core_type<tc>, window_params = [{transform_indices = @transform_0, window_bounds = array<i64: 8, 8, 32>}, {transform_indices = @transform_1, window_bounds = array<i64: 8, 8, 32>}, {pipeline_mode = #tpu.pipeline_mode<synchronous>, transform_indices = @transform_2, window_bounds = array<i64: 2, 32, 512>}, {pipeline_mode = #tpu.pipeline_mode<synchronous>, transform_indices = @transform_3, window_bounds = array<i64: 2, 128, 512>}, {pipeline_mode = #tpu.pipeline_mode<synchronous>, transform_indices = @transform_4, window_bounds = array<i64: 2, 1, 512>}, {pipeline_mode = #tpu.pipeline_mode<synchronous>, transform_indices = @transform_5, window_bounds = array<i64: 8, 1>}, {transform_indices = @transform_6, window_bounds = array<i64: 8, 8, 128>}, {transform_indices = @transform_7, window_bounds = array<i64: 8, 8, 128>}]} {
    %c0_i32 = arith.constant 0 : i32
    %0 = arith.cmpi eq, %arg0, %c0_i32 : i32
    %1 = arith.extui %0 : i1 to i32
    %c0_i32_0 = arith.constant 0 : i32
    %2 = arith.cmpi ne, %1, %c0_i32_0 : i32
    scf.if %2 {
      %cst_441 = arith.constant 0.000000e+00 : f32
      %814 = vector.broadcast %cst_441 : f32 to vector<8x128xf32>
      %c0_442 = arith.constant 0 : index
      %c0_443 = arith.constant 0 : index
      %815 = vector.load %arg11[%c0_442, %c0_443] : memref<8x128xf32, #tpu.memory_space<vmem>>, vector<8x128xf32>
      tpu.vector_store %arg11[%c0_442, %c0_443], %814 {strides = array<i32>} : memref<8x128xf32, #tpu.memory_space<vmem>>, vector<8x128xf32>,
      %cst_444 = arith.constant 0.000000e+00 : f32
      %816 = vector.broadcast %cst_444 : f32 to vector<8x128xf32>
      %c0_445 = arith.constant 0 : index
      %c0_446 = arith.constant 0 : index
      %817 = vector.load %arg12[%c0_445, %c0_446] : memref<8x128xf32, #tpu.memory_space<vmem>>, vector<8x128xf32>
      tpu.vector_store %arg12[%c0_445, %c0_446], %816 {strides = array<i32>} : memref<8x128xf32, #tpu.memory_space<vmem>>, vector<8x128xf32>,
      %cst_447 = arith.constant 0.000000e+00 : f32
      %818 = vector.broadcast %cst_447 : f32 to vector<8x128xf32>
      %c0_448 = arith.constant 0 : index
      %c0_449 = arith.constant 0 : index
      %819 = vector.load %arg13[%c0_448, %c0_449] : memref<8x128xf32, #tpu.memory_space<vmem>>, vector<8x128xf32>
      tpu.vector_store %arg13[%c0_448, %c0_449], %818 {strides = array<i32>} : memref<8x128xf32, #tpu.memory_space<vmem>>, vector<8x128xf32>,
      %cst_450 = arith.constant 0.000000e+00 : f32
      %820 = vector.broadcast %cst_450 : f32 to vector<8x128xf32>
      %c0_451 = arith.constant 0 : index
      %c0_452 = arith.constant 0 : index
      %821 = vector.load %arg14[%c0_451, %c0_452] : memref<8x128xf32, #tpu.memory_space<vmem>>, vector<8x128xf32>
      tpu.vector_store %arg14[%c0_451, %c0_452], %820 {strides = array<i32>} : memref<8x128xf32, #tpu.memory_space<vmem>>, vector<8x128xf32>,
    } else {
    }
    %c0 = arith.constant 0 : index
    %c0_1 = arith.constant 0 : index
    %3 = vector.load %arg6[%c0, %c0_1] : memref<8x1xi32, #tpu.memory_space<vmem>>, vector<8x1xi32>
    %c0_2 = arith.constant 0 : index
    %c0_3 = arith.constant 0 : index
    %c0_4 = arith.constant 0 : index
    %4 = vector.load %arg1[%c0_2, %c0_3, %c0_4] : memref<8x8x32xbf16, #tpu.memory_space<vmem>>, vector<8x8x32xbf16>
    %5 = vector.shape_cast %4 : vector<8x8x32xbf16> to vector<64x32xbf16>
    %c0_5 = arith.constant 0 : index
    %c0_6 = arith.constant 0 : index
    %c0_7 = arith.constant 0 : index
    %6 = vector.load %arg2[%c0_5, %c0_6, %c0_7] : memref<8x8x32xbf16, #tpu.memory_space<vmem>>, vector<8x8x32xbf16>
    %7 = vector.shape_cast %6 : vector<8x8x32xbf16> to vector<64x32xbf16>
    %c0_8 = arith.constant 0 : index
    %c0_9 = arith.constant 0 : index
    %c0_10 = arith.constant 0 : index
    %8 = vector.load %arg3[%c0_8, %c0_9, %c0_10] : memref<2x32x512xbf16, #tpu.memory_space<vmem>>, vector<1x32x512xbf16>
    %9 = vector.shape_cast %8 : vector<1x32x512xbf16> to vector<32x512xbf16>
    %cst = arith.constant dense<0.000000e+00> : vector<64x512xf32>
    %10 = tpu.matmul %5, %9, %cst {dimension_numbers = #tpu.dot_dimension_numbers<[1], [0], [0], [1], [0, 0, 1, 1], [], []>} : vector<64x32xbf16>, vector<32x512xbf16>, vector<64x512xf32> -> vector<64x512xf32>
    %c0_11 = arith.constant 0 : index
    %c0_12 = arith.constant 0 : index
    %c0_13 = arith.constant 0 : index
    %11 = vector.load %arg5[%c0_11, %c0_12, %c0_13] : memref<2x1x512xf32, #tpu.memory_space<vmem>>, vector<1x1x512xf32>
    %12 = vector.shape_cast %11 : vector<1x1x512xf32> to vector<1x512xf32>
    %13 = vector.broadcast %12 : vector<1x512xf32> to vector<64x512xf32>
    %14 = arith.addf %10, %13 : vector<64x512xf32>
    %15 = vector.shape_cast %14 : vector<64x512xf32> to vector<8x8x512xf32>
    %c0_14 = arith.constant 0 : index
    %c0_15 = arith.constant 0 : index
    %c0_16 = arith.constant 0 : index
    %16 = vector.load %arg9[%c0_14, %c0_15, %c0_16] : memref<8x8x512xf32, #tpu.memory_space<vmem>>, vector<8x8x512xf32>
    tpu.vector_store %arg9[%c0_14, %c0_15, %c0_16], %15 {strides = array<i32>} : memref<8x8x512xf32, #tpu.memory_space<vmem>>, vector<8x8x512xf32>,
    %c1 = arith.constant 1 : index
    %c0_17 = arith.constant 0 : index
    %c0_18 = arith.constant 0 : index
    %17 = vector.load %arg3[%c1, %c0_17, %c0_18] : memref<2x32x512xbf16, #tpu.memory_space<vmem>>, vector<1x32x512xbf16>
    %18 = vector.shape_cast %17 : vector<1x32x512xbf16> to vector<32x512xbf16>
    %cst_19 = arith.constant dense<0.000000e+00> : vector<64x512xf32>
    %19 = tpu.matmul %7, %18, %cst_19 {dimension_numbers = #tpu.dot_dimension_numbers<[1], [0], [0], [1], [0, 0, 1, 1], [], []>} : vector<64x32xbf16>, vector<32x512xbf16>, vector<64x512xf32> -> vector<64x512xf32>
    %c1_20 = arith.constant 1 : index
    %c0_21 = arith.constant 0 : index
    %c0_22 = arith.constant 0 : index
    %20 = vector.load %arg5[%c1_20, %c0_21, %c0_22] : memref<2x1x512xf32, #tpu.memory_space<vmem>>, vector<1x1x512xf32>
    %21 = vector.shape_cast %20 : vector<1x1x512xf32> to vector<1x512xf32>
    %22 = vector.broadcast %21 : vector<1x512xf32> to vector<64x512xf32>
    %23 = arith.addf %19, %22 : vector<64x512xf32>
    %24 = vector.shape_cast %23 : vector<64x512xf32> to vector<8x8x512xf32>
    %c0_23 = arith.constant 0 : index
    %c0_24 = arith.constant 0 : index
    %c0_25 = arith.constant 0 : index
    %25 = vector.load %arg10[%c0_23, %c0_24, %c0_25] : memref<8x8x512xf32, #tpu.memory_space<vmem>>, vector<8x8x512xf32>
    tpu.vector_store %arg10[%c0_23, %c0_24, %c0_25], %24 {strides = array<i32>} : memref<8x8x512xf32, #tpu.memory_space<vmem>>, vector<8x8x512xf32>,
    %c0_26 = arith.constant 0 : index
    %c0_27 = arith.constant 0 : index
    %c0_28 = arith.constant 0 : index
    %26 = vector.load %arg4[%c0_26, %c0_27, %c0_28] : memref<2x128x512xbf16, #tpu.memory_space<vmem>>, vector<1x128x512xbf16>
    %27 = vector.shape_cast %26 : vector<1x128x512xbf16> to vector<128x512xbf16>
    %c1_29 = arith.constant 1 : index
    %c0_30 = arith.constant 0 : index
    %c0_31 = arith.constant 0 : index
    %28 = vector.load %arg4[%c1_29, %c0_30, %c0_31] : memref<2x128x512xbf16, #tpu.memory_space<vmem>>, vector<1x128x512xbf16>
    %29 = vector.shape_cast %28 : vector<1x128x512xbf16> to vector<128x512xbf16>
    %c0_i32_32 = arith.constant 0 : i32
    %c8_i32 = arith.constant 8 : i32
    %30 = arith.muli %arg0, %c8_i32 : i32
    %31 = arith.addi %30, %c0_i32_32 : i32
    %c7_i32 = arith.constant 7 : i32
    %32 = arith.subi %c7_i32, %31 : i32
    %c7_i32_33 = arith.constant 7 : i32
    %33 = arith.subi %c7_i32_33, %c0_i32_32 : i32
    %34 = arith.index_cast %c0_i32_32 : i32 to index
    %c0_34 = arith.constant 0 : index
    %c0_35 = arith.constant 0 : index
    %35 = vector.load %arg9[%34, %c0_34, %c0_35] : memref<8x8x512xf32, #tpu.memory_space<vmem>>, vector<1x8x512xf32>
    %36 = vector.shape_cast %35 : vector<1x8x512xf32> to vector<8x512xf32>
    %c0_36 = arith.constant 0 : index
    %c0_37 = arith.constant 0 : index
    %37 = vector.load %arg11[%c0_36, %c0_37] : memref<8x128xf32, #tpu.memory_space<vmem>>, vector<8x128xf32>
    %c0_38 = arith.constant 0 : index
    %c0_39 = arith.constant 0 : index
    %38 = vector.load %arg12[%c0_38, %c0_39] : memref<8x128xf32, #tpu.memory_space<vmem>>, vector<8x128xf32>
    %39 = arith.truncf %37 : vector<8x128xf32> to vector<8x128xbf16>
    %cst_40 = arith.constant dense<0.000000e+00> : vector<8x512xf32>
    %40 = tpu.matmul %39, %27, %cst_40 {dimension_numbers = #tpu.dot_dimension_numbers<[1], [0], [0], [1], [0, 0, 1, 1], [], []>} : vector<8x128xbf16>, vector<128x512xbf16>, vector<8x512xf32> -> vector<8x512xf32>
    %41 = arith.addf %36, %40 : vector<8x512xf32>
    %42 = math.tanh %41 : vector<8x512xf32>
    %43 = vector.extract_strided_slice %42 {offsets = [0, 0], sizes = [8, 128], strides = [1, 1]} : vector<8x512xf32> to vector<8x128xf32>
    %cst_41 = arith.constant 5.000000e-01 : f32
    %44 = vector.broadcast %cst_41 : f32 to vector<8x128xf32>
    %45 = arith.mulf %44, %43 : vector<8x128xf32>
    %cst_42 = arith.constant 5.000000e-01 : f32
    %46 = vector.broadcast %cst_42 : f32 to vector<8x128xf32>
    %47 = arith.addf %45, %46 : vector<8x128xf32>
    %48 = vector.extract_strided_slice %42 {offsets = [0, 128], sizes = [8, 128], strides = [1, 1]} : vector<8x512xf32> to vector<8x128xf32>
    %cst_43 = arith.constant 5.000000e-01 : f32
    %49 = vector.broadcast %cst_43 : f32 to vector<8x128xf32>
    %50 = arith.mulf %49, %48 : vector<8x128xf32>
    %cst_44 = arith.constant 5.000000e-01 : f32
    %51 = vector.broadcast %cst_44 : f32 to vector<8x128xf32>
    %52 = arith.addf %50, %51 : vector<8x128xf32>
    %53 = vector.extract_strided_slice %42 {offsets = [0, 256], sizes = [8, 128], strides = [1, 1]} : vector<8x512xf32> to vector<8x128xf32>
    %54 = vector.extract_strided_slice %42 {offsets = [0, 384], sizes = [8, 128], strides = [1, 1]} : vector<8x512xf32> to vector<8x128xf32>
    %cst_45 = arith.constant 5.000000e-01 : f32
    %55 = vector.broadcast %cst_45 : f32 to vector<8x128xf32>
    %56 = arith.mulf %55, %54 : vector<8x128xf32>
    %cst_46 = arith.constant 5.000000e-01 : f32
    %57 = vector.broadcast %cst_46 : f32 to vector<8x128xf32>
    %58 = arith.addf %56, %57 : vector<8x128xf32>
    %59 = arith.mulf %52, %38 : vector<8x128xf32>
    %60 = arith.mulf %47, %53 : vector<8x128xf32>
    %61 = arith.addf %59, %60 : vector<8x128xf32>
    %62 = math.tanh %61 : vector<8x128xf32>
    %63 = arith.mulf %58, %62 : vector<8x128xf32>
    %64 = arith.index_cast %33 : i32 to index
    %c0_47 = arith.constant 0 : index
    %c0_48 = arith.constant 0 : index
    %65 = vector.load %arg10[%64, %c0_47, %c0_48] : memref<8x8x512xf32, #tpu.memory_space<vmem>>, vector<1x8x512xf32>
    %66 = vector.shape_cast %65 : vector<1x8x512xf32> to vector<8x512xf32>
    %c0_49 = arith.constant 0 : index
    %c0_50 = arith.constant 0 : index
    %67 = vector.load %arg13[%c0_49, %c0_50] : memref<8x128xf32, #tpu.memory_space<vmem>>, vector<8x128xf32>
    %c0_51 = arith.constant 0 : index
    %c0_52 = arith.constant 0 : index
    %68 = vector.load %arg14[%c0_51, %c0_52] : memref<8x128xf32, #tpu.memory_space<vmem>>, vector<8x128xf32>
    %69 = arith.truncf %67 : vector<8x128xf32> to vector<8x128xbf16>
    %cst_53 = arith.constant dense<0.000000e+00> : vector<8x512xf32>
    %70 = tpu.matmul %69, %29, %cst_53 {dimension_numbers = #tpu.dot_dimension_numbers<[1], [0], [0], [1], [0, 0, 1, 1], [], []>} : vector<8x128xbf16>, vector<128x512xbf16>, vector<8x512xf32> -> vector<8x512xf32>
    %71 = arith.addf %66, %70 : vector<8x512xf32>
    %72 = math.tanh %71 : vector<8x512xf32>
    %73 = vector.extract_strided_slice %72 {offsets = [0, 0], sizes = [8, 128], strides = [1, 1]} : vector<8x512xf32> to vector<8x128xf32>
    %cst_54 = arith.constant 5.000000e-01 : f32
    %74 = vector.broadcast %cst_54 : f32 to vector<8x128xf32>
    %75 = arith.mulf %74, %73 : vector<8x128xf32>
    %cst_55 = arith.constant 5.000000e-01 : f32
    %76 = vector.broadcast %cst_55 : f32 to vector<8x128xf32>
    %77 = arith.addf %75, %76 : vector<8x128xf32>
    %78 = vector.extract_strided_slice %72 {offsets = [0, 128], sizes = [8, 128], strides = [1, 1]} : vector<8x512xf32> to vector<8x128xf32>
    %cst_56 = arith.constant 5.000000e-01 : f32
    %79 = vector.broadcast %cst_56 : f32 to vector<8x128xf32>
    %80 = arith.mulf %79, %78 : vector<8x128xf32>
    %cst_57 = arith.constant 5.000000e-01 : f32
    %81 = vector.broadcast %cst_57 : f32 to vector<8x128xf32>
    %82 = arith.addf %80, %81 : vector<8x128xf32>
    %83 = vector.extract_strided_slice %72 {offsets = [0, 256], sizes = [8, 128], strides = [1, 1]} : vector<8x512xf32> to vector<8x128xf32>
    %84 = vector.extract_strided_slice %72 {offsets = [0, 384], sizes = [8, 128], strides = [1, 1]} : vector<8x512xf32> to vector<8x128xf32>
    %cst_58 = arith.constant 5.000000e-01 : f32
    %85 = vector.broadcast %cst_58 : f32 to vector<8x128xf32>
    %86 = arith.mulf %85, %84 : vector<8x128xf32>
    %cst_59 = arith.constant 5.000000e-01 : f32
    %87 = vector.broadcast %cst_59 : f32 to vector<8x128xf32>
    %88 = arith.addf %86, %87 : vector<8x128xf32>
    %89 = arith.mulf %82, %68 : vector<8x128xf32>
    %90 = arith.mulf %77, %83 : vector<8x128xf32>
    %91 = arith.addf %89, %90 : vector<8x128xf32>
    %92 = math.tanh %91 : vector<8x128xf32>
    %93 = arith.mulf %88, %92 : vector<8x128xf32>
    %94 = vector.broadcast %31 : i32 to vector<8x1xi32>
    %95 = arith.cmpi slt, %94, %3 : vector<8x1xi32>
    %96 = vector.shape_cast %95 : vector<8x1xi1> to vector<8x1xi1>
    %97 = vector.broadcast %96 : vector<8x1xi1> to vector<8x128xi1>
    %98 = vector.broadcast %32 : i32 to vector<8x1xi32>
    %99 = arith.cmpi slt, %98, %3 : vector<8x1xi32>
    %100 = vector.shape_cast %99 : vector<8x1xi1> to vector<8x1xi1>
    %101 = vector.broadcast %100 : vector<8x1xi1> to vector<8x128xi1>
    %c0_60 = arith.constant 0 : index
    %c0_61 = arith.constant 0 : index
    %102 = vector.load %arg11[%c0_60, %c0_61] : memref<8x128xf32, #tpu.memory_space<vmem>>, vector<8x128xf32>
    %103 = arith.select %97, %63, %102 : vector<8x128xi1>, vector<8x128xf32>
    %c0_62 = arith.constant 0 : index
    %c0_63 = arith.constant 0 : index
    %104 = vector.load %arg11[%c0_62, %c0_63] : memref<8x128xf32, #tpu.memory_space<vmem>>, vector<8x128xf32>
    tpu.vector_store %arg11[%c0_62, %c0_63], %103 {strides = array<i32>} : memref<8x128xf32, #tpu.memory_space<vmem>>, vector<8x128xf32>,
    %c0_64 = arith.constant 0 : index
    %c0_65 = arith.constant 0 : index
    %105 = vector.load %arg12[%c0_64, %c0_65] : memref<8x128xf32, #tpu.memory_space<vmem>>, vector<8x128xf32>
    %106 = arith.select %97, %61, %105 : vector<8x128xi1>, vector<8x128xf32>
    %c0_66 = arith.constant 0 : index
    %c0_67 = arith.constant 0 : index
    %107 = vector.load %arg12[%c0_66, %c0_67] : memref<8x128xf32, #tpu.memory_space<vmem>>, vector<8x128xf32>
    tpu.vector_store %arg12[%c0_66, %c0_67], %106 {strides = array<i32>} : memref<8x128xf32, #tpu.memory_space<vmem>>, vector<8x128xf32>,
    %c0_68 = arith.constant 0 : index
    %c0_69 = arith.constant 0 : index
    %108 = vector.load %arg13[%c0_68, %c0_69] : memref<8x128xf32, #tpu.memory_space<vmem>>, vector<8x128xf32>
    %109 = arith.select %101, %93, %108 : vector<8x128xi1>, vector<8x128xf32>
    %c0_70 = arith.constant 0 : index
    %c0_71 = arith.constant 0 : index
    %110 = vector.load %arg13[%c0_70, %c0_71] : memref<8x128xf32, #tpu.memory_space<vmem>>, vector<8x128xf32>
    tpu.vector_store %arg13[%c0_70, %c0_71], %109 {strides = array<i32>} : memref<8x128xf32, #tpu.memory_space<vmem>>, vector<8x128xf32>,
    %c0_72 = arith.constant 0 : index
    %c0_73 = arith.constant 0 : index
    %111 = vector.load %arg14[%c0_72, %c0_73] : memref<8x128xf32, #tpu.memory_space<vmem>>, vector<8x128xf32>
    %112 = arith.select %101, %91, %111 : vector<8x128xi1>, vector<8x128xf32>
    %c0_74 = arith.constant 0 : index
    %c0_75 = arith.constant 0 : index
    %113 = vector.load %arg14[%c0_74, %c0_75] : memref<8x128xf32, #tpu.memory_space<vmem>>, vector<8x128xf32>
    tpu.vector_store %arg14[%c0_74, %c0_75], %112 {strides = array<i32>} : memref<8x128xf32, #tpu.memory_space<vmem>>, vector<8x128xf32>,
    %cst_76 = arith.constant 0.000000e+00 : f32
    %114 = vector.broadcast %cst_76 : f32 to vector<8x128xf32>
    %115 = arith.select %97, %63, %114 : vector<8x128xi1>, vector<8x128xf32>
    %116 = arith.truncf %115 : vector<8x128xf32> to vector<8x128xbf16>
    %117 = arith.index_cast %c0_i32_32 : i32 to index
    %c0_77 = arith.constant 0 : index
    %c0_78 = arith.constant 0 : index
    %118 = vector.load %arg7[%117, %c0_77, %c0_78] : memref<8x8x128xbf16, #tpu.memory_space<vmem>>, vector<1x8x128xbf16>
    %119 = vector.shape_cast %118 : vector<1x8x128xbf16> to vector<8x128xbf16>
    %120 = vector.shape_cast %116 : vector<8x128xbf16> to vector<1x8x128xbf16>
    tpu.vector_store %arg7[%117, %c0_77, %c0_78], %120 {strides = array<i32>} : memref<8x8x128xbf16, #tpu.memory_space<vmem>>, vector<1x8x128xbf16>,
    %cst_79 = arith.constant 0.000000e+00 : f32
    %121 = vector.broadcast %cst_79 : f32 to vector<8x128xf32>
    %122 = arith.select %101, %93, %121 : vector<8x128xi1>, vector<8x128xf32>
    %123 = arith.truncf %122 : vector<8x128xf32> to vector<8x128xbf16>
    %124 = arith.index_cast %33 : i32 to index
    %c0_80 = arith.constant 0 : index
    %c0_81 = arith.constant 0 : index
    %125 = vector.load %arg8[%124, %c0_80, %c0_81] : memref<8x8x128xbf16, #tpu.memory_space<vmem>>, vector<1x8x128xbf16>
    %126 = vector.shape_cast %125 : vector<1x8x128xbf16> to vector<8x128xbf16>
    %127 = vector.shape_cast %123 : vector<8x128xbf16> to vector<1x8x128xbf16>
    tpu.vector_store %arg8[%124, %c0_80, %c0_81], %127 {strides = array<i32>} : memref<8x8x128xbf16, #tpu.memory_space<vmem>>, vector<1x8x128xbf16>,
    %c1_i32 = arith.constant 1 : i32
    %c8_i32_82 = arith.constant 8 : i32
    %128 = arith.muli %arg0, %c8_i32_82 : i32
    %129 = arith.addi %128, %c1_i32 : i32
    %c7_i32_83 = arith.constant 7 : i32
    %130 = arith.subi %c7_i32_83, %129 : i32
    %c7_i32_84 = arith.constant 7 : i32
    %131 = arith.subi %c7_i32_84, %c1_i32 : i32
    %132 = arith.index_cast %c1_i32 : i32 to index
    %c0_85 = arith.constant 0 : index
    %c0_86 = arith.constant 0 : index
    %133 = vector.load %arg9[%132, %c0_85, %c0_86] : memref<8x8x512xf32, #tpu.memory_space<vmem>>, vector<1x8x512xf32>
    %134 = vector.shape_cast %133 : vector<1x8x512xf32> to vector<8x512xf32>
    %c0_87 = arith.constant 0 : index
    %c0_88 = arith.constant 0 : index
    %135 = vector.load %arg11[%c0_87, %c0_88] : memref<8x128xf32, #tpu.memory_space<vmem>>, vector<8x128xf32>
    %c0_89 = arith.constant 0 : index
    %c0_90 = arith.constant 0 : index
    %136 = vector.load %arg12[%c0_89, %c0_90] : memref<8x128xf32, #tpu.memory_space<vmem>>, vector<8x128xf32>
    %137 = arith.truncf %135 : vector<8x128xf32> to vector<8x128xbf16>
    %cst_91 = arith.constant dense<0.000000e+00> : vector<8x512xf32>
    %138 = tpu.matmul %137, %27, %cst_91 {dimension_numbers = #tpu.dot_dimension_numbers<[1], [0], [0], [1], [0, 0, 1, 1], [], []>} : vector<8x128xbf16>, vector<128x512xbf16>, vector<8x512xf32> -> vector<8x512xf32>
    %139 = arith.addf %134, %138 : vector<8x512xf32>
    %140 = math.tanh %139 : vector<8x512xf32>
    %141 = vector.extract_strided_slice %140 {offsets = [0, 0], sizes = [8, 128], strides = [1, 1]} : vector<8x512xf32> to vector<8x128xf32>
    %cst_92 = arith.constant 5.000000e-01 : f32
    %142 = vector.broadcast %cst_92 : f32 to vector<8x128xf32>
    %143 = arith.mulf %142, %141 : vector<8x128xf32>
    %cst_93 = arith.constant 5.000000e-01 : f32
    %144 = vector.broadcast %cst_93 : f32 to vector<8x128xf32>
    %145 = arith.addf %143, %144 : vector<8x128xf32>
    %146 = vector.extract_strided_slice %140 {offsets = [0, 128], sizes = [8, 128], strides = [1, 1]} : vector<8x512xf32> to vector<8x128xf32>
    %cst_94 = arith.constant 5.000000e-01 : f32
    %147 = vector.broadcast %cst_94 : f32 to vector<8x128xf32>
    %148 = arith.mulf %147, %146 : vector<8x128xf32>
    %cst_95 = arith.constant 5.000000e-01 : f32
    %149 = vector.broadcast %cst_95 : f32 to vector<8x128xf32>
    %150 = arith.addf %148, %149 : vector<8x128xf32>
    %151 = vector.extract_strided_slice %140 {offsets = [0, 256], sizes = [8, 128], strides = [1, 1]} : vector<8x512xf32> to vector<8x128xf32>
    %152 = vector.extract_strided_slice %140 {offsets = [0, 384], sizes = [8, 128], strides = [1, 1]} : vector<8x512xf32> to vector<8x128xf32>
    %cst_96 = arith.constant 5.000000e-01 : f32
    %153 = vector.broadcast %cst_96 : f32 to vector<8x128xf32>
    %154 = arith.mulf %153, %152 : vector<8x128xf32>
    %cst_97 = arith.constant 5.000000e-01 : f32
    %155 = vector.broadcast %cst_97 : f32 to vector<8x128xf32>
    %156 = arith.addf %154, %155 : vector<8x128xf32>
    %157 = arith.mulf %150, %136 : vector<8x128xf32>
    %158 = arith.mulf %145, %151 : vector<8x128xf32>
    %159 = arith.addf %157, %158 : vector<8x128xf32>
    %160 = math.tanh %159 : vector<8x128xf32>
    %161 = arith.mulf %156, %160 : vector<8x128xf32>
    %162 = arith.index_cast %131 : i32 to index
    %c0_98 = arith.constant 0 : index
    %c0_99 = arith.constant 0 : index
    %163 = vector.load %arg10[%162, %c0_98, %c0_99] : memref<8x8x512xf32, #tpu.memory_space<vmem>>, vector<1x8x512xf32>
    %164 = vector.shape_cast %163 : vector<1x8x512xf32> to vector<8x512xf32>
    %c0_100 = arith.constant 0 : index
    %c0_101 = arith.constant 0 : index
    %165 = vector.load %arg13[%c0_100, %c0_101] : memref<8x128xf32, #tpu.memory_space<vmem>>, vector<8x128xf32>
    %c0_102 = arith.constant 0 : index
    %c0_103 = arith.constant 0 : index
    %166 = vector.load %arg14[%c0_102, %c0_103] : memref<8x128xf32, #tpu.memory_space<vmem>>, vector<8x128xf32>
    %167 = arith.truncf %165 : vector<8x128xf32> to vector<8x128xbf16>
    %cst_104 = arith.constant dense<0.000000e+00> : vector<8x512xf32>
    %168 = tpu.matmul %167, %29, %cst_104 {dimension_numbers = #tpu.dot_dimension_numbers<[1], [0], [0], [1], [0, 0, 1, 1], [], []>} : vector<8x128xbf16>, vector<128x512xbf16>, vector<8x512xf32> -> vector<8x512xf32>
    %169 = arith.addf %164, %168 : vector<8x512xf32>
    %170 = math.tanh %169 : vector<8x512xf32>
    %171 = vector.extract_strided_slice %170 {offsets = [0, 0], sizes = [8, 128], strides = [1, 1]} : vector<8x512xf32> to vector<8x128xf32>
    %cst_105 = arith.constant 5.000000e-01 : f32
    %172 = vector.broadcast %cst_105 : f32 to vector<8x128xf32>
    %173 = arith.mulf %172, %171 : vector<8x128xf32>
    %cst_106 = arith.constant 5.000000e-01 : f32
    %174 = vector.broadcast %cst_106 : f32 to vector<8x128xf32>
    %175 = arith.addf %173, %174 : vector<8x128xf32>
    %176 = vector.extract_strided_slice %170 {offsets = [0, 128], sizes = [8, 128], strides = [1, 1]} : vector<8x512xf32> to vector<8x128xf32>
    %cst_107 = arith.constant 5.000000e-01 : f32
    %177 = vector.broadcast %cst_107 : f32 to vector<8x128xf32>
    %178 = arith.mulf %177, %176 : vector<8x128xf32>
    %cst_108 = arith.constant 5.000000e-01 : f32
    %179 = vector.broadcast %cst_108 : f32 to vector<8x128xf32>
    %180 = arith.addf %178, %179 : vector<8x128xf32>
    %181 = vector.extract_strided_slice %170 {offsets = [0, 256], sizes = [8, 128], strides = [1, 1]} : vector<8x512xf32> to vector<8x128xf32>
    %182 = vector.extract_strided_slice %170 {offsets = [0, 384], sizes = [8, 128], strides = [1, 1]} : vector<8x512xf32> to vector<8x128xf32>
    %cst_109 = arith.constant 5.000000e-01 : f32
    %183 = vector.broadcast %cst_109 : f32 to vector<8x128xf32>
    %184 = arith.mulf %183, %182 : vector<8x128xf32>
    %cst_110 = arith.constant 5.000000e-01 : f32
    %185 = vector.broadcast %cst_110 : f32 to vector<8x128xf32>
    %186 = arith.addf %184, %185 : vector<8x128xf32>
    %187 = arith.mulf %180, %166 : vector<8x128xf32>
    %188 = arith.mulf %175, %181 : vector<8x128xf32>
    %189 = arith.addf %187, %188 : vector<8x128xf32>
    %190 = math.tanh %189 : vector<8x128xf32>
    %191 = arith.mulf %186, %190 : vector<8x128xf32>
    %192 = vector.broadcast %129 : i32 to vector<8x1xi32>
    %193 = arith.cmpi slt, %192, %3 : vector<8x1xi32>
    %194 = vector.shape_cast %193 : vector<8x1xi1> to vector<8x1xi1>
    %195 = vector.broadcast %194 : vector<8x1xi1> to vector<8x128xi1>
    %196 = vector.broadcast %130 : i32 to vector<8x1xi32>
    %197 = arith.cmpi slt, %196, %3 : vector<8x1xi32>
    %198 = vector.shape_cast %197 : vector<8x1xi1> to vector<8x1xi1>
    %199 = vector.broadcast %198 : vector<8x1xi1> to vector<8x128xi1>
    %c0_111 = arith.constant 0 : index
    %c0_112 = arith.constant 0 : index
    %200 = vector.load %arg11[%c0_111, %c0_112] : memref<8x128xf32, #tpu.memory_space<vmem>>, vector<8x128xf32>
    %201 = arith.select %195, %161, %200 : vector<8x128xi1>, vector<8x128xf32>
    %c0_113 = arith.constant 0 : index
    %c0_114 = arith.constant 0 : index
    %202 = vector.load %arg11[%c0_113, %c0_114] : memref<8x128xf32, #tpu.memory_space<vmem>>, vector<8x128xf32>
    tpu.vector_store %arg11[%c0_113, %c0_114], %201 {strides = array<i32>} : memref<8x128xf32, #tpu.memory_space<vmem>>, vector<8x128xf32>,
    %c0_115 = arith.constant 0 : index
    %c0_116 = arith.constant 0 : index
    %203 = vector.load %arg12[%c0_115, %c0_116] : memref<8x128xf32, #tpu.memory_space<vmem>>, vector<8x128xf32>
    %204 = arith.select %195, %159, %203 : vector<8x128xi1>, vector<8x128xf32>
    %c0_117 = arith.constant 0 : index
    %c0_118 = arith.constant 0 : index
    %205 = vector.load %arg12[%c0_117, %c0_118] : memref<8x128xf32, #tpu.memory_space<vmem>>, vector<8x128xf32>
    tpu.vector_store %arg12[%c0_117, %c0_118], %204 {strides = array<i32>} : memref<8x128xf32, #tpu.memory_space<vmem>>, vector<8x128xf32>,
    %c0_119 = arith.constant 0 : index
    %c0_120 = arith.constant 0 : index
    %206 = vector.load %arg13[%c0_119, %c0_120] : memref<8x128xf32, #tpu.memory_space<vmem>>, vector<8x128xf32>
    %207 = arith.select %199, %191, %206 : vector<8x128xi1>, vector<8x128xf32>
    %c0_121 = arith.constant 0 : index
    %c0_122 = arith.constant 0 : index
    %208 = vector.load %arg13[%c0_121, %c0_122] : memref<8x128xf32, #tpu.memory_space<vmem>>, vector<8x128xf32>
    tpu.vector_store %arg13[%c0_121, %c0_122], %207 {strides = array<i32>} : memref<8x128xf32, #tpu.memory_space<vmem>>, vector<8x128xf32>,
    %c0_123 = arith.constant 0 : index
    %c0_124 = arith.constant 0 : index
    %209 = vector.load %arg14[%c0_123, %c0_124] : memref<8x128xf32, #tpu.memory_space<vmem>>, vector<8x128xf32>
    %210 = arith.select %199, %189, %209 : vector<8x128xi1>, vector<8x128xf32>
    %c0_125 = arith.constant 0 : index
    %c0_126 = arith.constant 0 : index
    %211 = vector.load %arg14[%c0_125, %c0_126] : memref<8x128xf32, #tpu.memory_space<vmem>>, vector<8x128xf32>
    tpu.vector_store %arg14[%c0_125, %c0_126], %210 {strides = array<i32>} : memref<8x128xf32, #tpu.memory_space<vmem>>, vector<8x128xf32>,
    %cst_127 = arith.constant 0.000000e+00 : f32
    %212 = vector.broadcast %cst_127 : f32 to vector<8x128xf32>
    %213 = arith.select %195, %161, %212 : vector<8x128xi1>, vector<8x128xf32>
    %214 = arith.truncf %213 : vector<8x128xf32> to vector<8x128xbf16>
    %215 = arith.index_cast %c1_i32 : i32 to index
    %c0_128 = arith.constant 0 : index
    %c0_129 = arith.constant 0 : index
    %216 = vector.load %arg7[%215, %c0_128, %c0_129] : memref<8x8x128xbf16, #tpu.memory_space<vmem>>, vector<1x8x128xbf16>
    %217 = vector.shape_cast %216 : vector<1x8x128xbf16> to vector<8x128xbf16>
    %218 = vector.shape_cast %214 : vector<8x128xbf16> to vector<1x8x128xbf16>
    tpu.vector_store %arg7[%215, %c0_128, %c0_129], %218 {strides = array<i32>} : memref<8x8x128xbf16, #tpu.memory_space<vmem>>, vector<1x8x128xbf16>,
    %cst_130 = arith.constant 0.000000e+00 : f32
    %219 = vector.broadcast %cst_130 : f32 to vector<8x128xf32>
    %220 = arith.select %199, %191, %219 : vector<8x128xi1>, vector<8x128xf32>
    %221 = arith.truncf %220 : vector<8x128xf32> to vector<8x128xbf16>
    %222 = arith.index_cast %131 : i32 to index
    %c0_131 = arith.constant 0 : index
    %c0_132 = arith.constant 0 : index
    %223 = vector.load %arg8[%222, %c0_131, %c0_132] : memref<8x8x128xbf16, #tpu.memory_space<vmem>>, vector<1x8x128xbf16>
    %224 = vector.shape_cast %223 : vector<1x8x128xbf16> to vector<8x128xbf16>
    %225 = vector.shape_cast %221 : vector<8x128xbf16> to vector<1x8x128xbf16>
    tpu.vector_store %arg8[%222, %c0_131, %c0_132], %225 {strides = array<i32>} : memref<8x8x128xbf16, #tpu.memory_space<vmem>>, vector<1x8x128xbf16>,
    %c2_i32 = arith.constant 2 : i32
    %c8_i32_133 = arith.constant 8 : i32
    %226 = arith.muli %arg0, %c8_i32_133 : i32
    %227 = arith.addi %226, %c2_i32 : i32
    %c7_i32_134 = arith.constant 7 : i32
    %228 = arith.subi %c7_i32_134, %227 : i32
    %c7_i32_135 = arith.constant 7 : i32
    %229 = arith.subi %c7_i32_135, %c2_i32 : i32
    %230 = arith.index_cast %c2_i32 : i32 to index
    %c0_136 = arith.constant 0 : index
    %c0_137 = arith.constant 0 : index
    %231 = vector.load %arg9[%230, %c0_136, %c0_137] : memref<8x8x512xf32, #tpu.memory_space<vmem>>, vector<1x8x512xf32>
    %232 = vector.shape_cast %231 : vector<1x8x512xf32> to vector<8x512xf32>
    %c0_138 = arith.constant 0 : index
    %c0_139 = arith.constant 0 : index
    %233 = vector.load %arg11[%c0_138, %c0_139] : memref<8x128xf32, #tpu.memory_space<vmem>>, vector<8x128xf32>
    %c0_140 = arith.constant 0 : index
    %c0_141 = arith.constant 0 : index
    %234 = vector.load %arg12[%c0_140, %c0_141] : memref<8x128xf32, #tpu.memory_space<vmem>>, vector<8x128xf32>
    %235 = arith.truncf %233 : vector<8x128xf32> to vector<8x128xbf16>
    %cst_142 = arith.constant dense<0.000000e+00> : vector<8x512xf32>
    %236 = tpu.matmul %235, %27, %cst_142 {dimension_numbers = #tpu.dot_dimension_numbers<[1], [0], [0], [1], [0, 0, 1, 1], [], []>} : vector<8x128xbf16>, vector<128x512xbf16>, vector<8x512xf32> -> vector<8x512xf32>
    %237 = arith.addf %232, %236 : vector<8x512xf32>
    %238 = math.tanh %237 : vector<8x512xf32>
    %239 = vector.extract_strided_slice %238 {offsets = [0, 0], sizes = [8, 128], strides = [1, 1]} : vector<8x512xf32> to vector<8x128xf32>
    %cst_143 = arith.constant 5.000000e-01 : f32
    %240 = vector.broadcast %cst_143 : f32 to vector<8x128xf32>
    %241 = arith.mulf %240, %239 : vector<8x128xf32>
    %cst_144 = arith.constant 5.000000e-01 : f32
    %242 = vector.broadcast %cst_144 : f32 to vector<8x128xf32>
    %243 = arith.addf %241, %242 : vector<8x128xf32>
    %244 = vector.extract_strided_slice %238 {offsets = [0, 128], sizes = [8, 128], strides = [1, 1]} : vector<8x512xf32> to vector<8x128xf32>
    %cst_145 = arith.constant 5.000000e-01 : f32
    %245 = vector.broadcast %cst_145 : f32 to vector<8x128xf32>
    %246 = arith.mulf %245, %244 : vector<8x128xf32>
    %cst_146 = arith.constant 5.000000e-01 : f32
    %247 = vector.broadcast %cst_146 : f32 to vector<8x128xf32>
    %248 = arith.addf %246, %247 : vector<8x128xf32>
    %249 = vector.extract_strided_slice %238 {offsets = [0, 256], sizes = [8, 128], strides = [1, 1]} : vector<8x512xf32> to vector<8x128xf32>
    %250 = vector.extract_strided_slice %238 {offsets = [0, 384], sizes = [8, 128], strides = [1, 1]} : vector<8x512xf32> to vector<8x128xf32>
    %cst_147 = arith.constant 5.000000e-01 : f32
    %251 = vector.broadcast %cst_147 : f32 to vector<8x128xf32>
    %252 = arith.mulf %251, %250 : vector<8x128xf32>
    %cst_148 = arith.constant 5.000000e-01 : f32
    %253 = vector.broadcast %cst_148 : f32 to vector<8x128xf32>
    %254 = arith.addf %252, %253 : vector<8x128xf32>
    %255 = arith.mulf %248, %234 : vector<8x128xf32>
    %256 = arith.mulf %243, %249 : vector<8x128xf32>
    %257 = arith.addf %255, %256 : vector<8x128xf32>
    %258 = math.tanh %257 : vector<8x128xf32>
    %259 = arith.mulf %254, %258 : vector<8x128xf32>
    %260 = arith.index_cast %229 : i32 to index
    %c0_149 = arith.constant 0 : index
    %c0_150 = arith.constant 0 : index
    %261 = vector.load %arg10[%260, %c0_149, %c0_150] : memref<8x8x512xf32, #tpu.memory_space<vmem>>, vector<1x8x512xf32>
    %262 = vector.shape_cast %261 : vector<1x8x512xf32> to vector<8x512xf32>
    %c0_151 = arith.constant 0 : index
    %c0_152 = arith.constant 0 : index
    %263 = vector.load %arg13[%c0_151, %c0_152] : memref<8x128xf32, #tpu.memory_space<vmem>>, vector<8x128xf32>
    %c0_153 = arith.constant 0 : index
    %c0_154 = arith.constant 0 : index
    %264 = vector.load %arg14[%c0_153, %c0_154] : memref<8x128xf32, #tpu.memory_space<vmem>>, vector<8x128xf32>
    %265 = arith.truncf %263 : vector<8x128xf32> to vector<8x128xbf16>
    %cst_155 = arith.constant dense<0.000000e+00> : vector<8x512xf32>
    %266 = tpu.matmul %265, %29, %cst_155 {dimension_numbers = #tpu.dot_dimension_numbers<[1], [0], [0], [1], [0, 0, 1, 1], [], []>} : vector<8x128xbf16>, vector<128x512xbf16>, vector<8x512xf32> -> vector<8x512xf32>
    %267 = arith.addf %262, %266 : vector<8x512xf32>
    %268 = math.tanh %267 : vector<8x512xf32>
    %269 = vector.extract_strided_slice %268 {offsets = [0, 0], sizes = [8, 128], strides = [1, 1]} : vector<8x512xf32> to vector<8x128xf32>
    %cst_156 = arith.constant 5.000000e-01 : f32
    %270 = vector.broadcast %cst_156 : f32 to vector<8x128xf32>
    %271 = arith.mulf %270, %269 : vector<8x128xf32>
    %cst_157 = arith.constant 5.000000e-01 : f32
    %272 = vector.broadcast %cst_157 : f32 to vector<8x128xf32>
    %273 = arith.addf %271, %272 : vector<8x128xf32>
    %274 = vector.extract_strided_slice %268 {offsets = [0, 128], sizes = [8, 128], strides = [1, 1]} : vector<8x512xf32> to vector<8x128xf32>
    %cst_158 = arith.constant 5.000000e-01 : f32
    %275 = vector.broadcast %cst_158 : f32 to vector<8x128xf32>
    %276 = arith.mulf %275, %274 : vector<8x128xf32>
    %cst_159 = arith.constant 5.000000e-01 : f32
    %277 = vector.broadcast %cst_159 : f32 to vector<8x128xf32>
    %278 = arith.addf %276, %277 : vector<8x128xf32>
    %279 = vector.extract_strided_slice %268 {offsets = [0, 256], sizes = [8, 128], strides = [1, 1]} : vector<8x512xf32> to vector<8x128xf32>
    %280 = vector.extract_strided_slice %268 {offsets = [0, 384], sizes = [8, 128], strides = [1, 1]} : vector<8x512xf32> to vector<8x128xf32>
    %cst_160 = arith.constant 5.000000e-01 : f32
    %281 = vector.broadcast %cst_160 : f32 to vector<8x128xf32>
    %282 = arith.mulf %281, %280 : vector<8x128xf32>
    %cst_161 = arith.constant 5.000000e-01 : f32
    %283 = vector.broadcast %cst_161 : f32 to vector<8x128xf32>
    %284 = arith.addf %282, %283 : vector<8x128xf32>
    %285 = arith.mulf %278, %264 : vector<8x128xf32>
    %286 = arith.mulf %273, %279 : vector<8x128xf32>
    %287 = arith.addf %285, %286 : vector<8x128xf32>
    %288 = math.tanh %287 : vector<8x128xf32>
    %289 = arith.mulf %284, %288 : vector<8x128xf32>
    %290 = vector.broadcast %227 : i32 to vector<8x1xi32>
    %291 = arith.cmpi slt, %290, %3 : vector<8x1xi32>
    %292 = vector.shape_cast %291 : vector<8x1xi1> to vector<8x1xi1>
    %293 = vector.broadcast %292 : vector<8x1xi1> to vector<8x128xi1>
    %294 = vector.broadcast %228 : i32 to vector<8x1xi32>
    %295 = arith.cmpi slt, %294, %3 : vector<8x1xi32>
    %296 = vector.shape_cast %295 : vector<8x1xi1> to vector<8x1xi1>
    %297 = vector.broadcast %296 : vector<8x1xi1> to vector<8x128xi1>
    %c0_162 = arith.constant 0 : index
    %c0_163 = arith.constant 0 : index
    %298 = vector.load %arg11[%c0_162, %c0_163] : memref<8x128xf32, #tpu.memory_space<vmem>>, vector<8x128xf32>
    %299 = arith.select %293, %259, %298 : vector<8x128xi1>, vector<8x128xf32>
    %c0_164 = arith.constant 0 : index
    %c0_165 = arith.constant 0 : index
    %300 = vector.load %arg11[%c0_164, %c0_165] : memref<8x128xf32, #tpu.memory_space<vmem>>, vector<8x128xf32>
    tpu.vector_store %arg11[%c0_164, %c0_165], %299 {strides = array<i32>} : memref<8x128xf32, #tpu.memory_space<vmem>>, vector<8x128xf32>,
    %c0_166 = arith.constant 0 : index
    %c0_167 = arith.constant 0 : index
    %301 = vector.load %arg12[%c0_166, %c0_167] : memref<8x128xf32, #tpu.memory_space<vmem>>, vector<8x128xf32>
    %302 = arith.select %293, %257, %301 : vector<8x128xi1>, vector<8x128xf32>
    %c0_168 = arith.constant 0 : index
    %c0_169 = arith.constant 0 : index
    %303 = vector.load %arg12[%c0_168, %c0_169] : memref<8x128xf32, #tpu.memory_space<vmem>>, vector<8x128xf32>
    tpu.vector_store %arg12[%c0_168, %c0_169], %302 {strides = array<i32>} : memref<8x128xf32, #tpu.memory_space<vmem>>, vector<8x128xf32>,
    %c0_170 = arith.constant 0 : index
    %c0_171 = arith.constant 0 : index
    %304 = vector.load %arg13[%c0_170, %c0_171] : memref<8x128xf32, #tpu.memory_space<vmem>>, vector<8x128xf32>
    %305 = arith.select %297, %289, %304 : vector<8x128xi1>, vector<8x128xf32>
    %c0_172 = arith.constant 0 : index
    %c0_173 = arith.constant 0 : index
    %306 = vector.load %arg13[%c0_172, %c0_173] : memref<8x128xf32, #tpu.memory_space<vmem>>, vector<8x128xf32>
    tpu.vector_store %arg13[%c0_172, %c0_173], %305 {strides = array<i32>} : memref<8x128xf32, #tpu.memory_space<vmem>>, vector<8x128xf32>,
    %c0_174 = arith.constant 0 : index
    %c0_175 = arith.constant 0 : index
    %307 = vector.load %arg14[%c0_174, %c0_175] : memref<8x128xf32, #tpu.memory_space<vmem>>, vector<8x128xf32>
    %308 = arith.select %297, %287, %307 : vector<8x128xi1>, vector<8x128xf32>
    %c0_176 = arith.constant 0 : index
    %c0_177 = arith.constant 0 : index
    %309 = vector.load %arg14[%c0_176, %c0_177] : memref<8x128xf32, #tpu.memory_space<vmem>>, vector<8x128xf32>
    tpu.vector_store %arg14[%c0_176, %c0_177], %308 {strides = array<i32>} : memref<8x128xf32, #tpu.memory_space<vmem>>, vector<8x128xf32>,
    %cst_178 = arith.constant 0.000000e+00 : f32
    %310 = vector.broadcast %cst_178 : f32 to vector<8x128xf32>
    %311 = arith.select %293, %259, %310 : vector<8x128xi1>, vector<8x128xf32>
    %312 = arith.truncf %311 : vector<8x128xf32> to vector<8x128xbf16>
    %313 = arith.index_cast %c2_i32 : i32 to index
    %c0_179 = arith.constant 0 : index
    %c0_180 = arith.constant 0 : index
    %314 = vector.load %arg7[%313, %c0_179, %c0_180] : memref<8x8x128xbf16, #tpu.memory_space<vmem>>, vector<1x8x128xbf16>
    %315 = vector.shape_cast %314 : vector<1x8x128xbf16> to vector<8x128xbf16>
    %316 = vector.shape_cast %312 : vector<8x128xbf16> to vector<1x8x128xbf16>
    tpu.vector_store %arg7[%313, %c0_179, %c0_180], %316 {strides = array<i32>} : memref<8x8x128xbf16, #tpu.memory_space<vmem>>, vector<1x8x128xbf16>,
    %cst_181 = arith.constant 0.000000e+00 : f32
    %317 = vector.broadcast %cst_181 : f32 to vector<8x128xf32>
    %318 = arith.select %297, %289, %317 : vector<8x128xi1>, vector<8x128xf32>
    %319 = arith.truncf %318 : vector<8x128xf32> to vector<8x128xbf16>
    %320 = arith.index_cast %229 : i32 to index
    %c0_182 = arith.constant 0 : index
    %c0_183 = arith.constant 0 : index
    %321 = vector.load %arg8[%320, %c0_182, %c0_183] : memref<8x8x128xbf16, #tpu.memory_space<vmem>>, vector<1x8x128xbf16>
    %322 = vector.shape_cast %321 : vector<1x8x128xbf16> to vector<8x128xbf16>
    %323 = vector.shape_cast %319 : vector<8x128xbf16> to vector<1x8x128xbf16>
    tpu.vector_store %arg8[%320, %c0_182, %c0_183], %323 {strides = array<i32>} : memref<8x8x128xbf16, #tpu.memory_space<vmem>>, vector<1x8x128xbf16>,
    %c3_i32 = arith.constant 3 : i32
    %c8_i32_184 = arith.constant 8 : i32
    %324 = arith.muli %arg0, %c8_i32_184 : i32
    %325 = arith.addi %324, %c3_i32 : i32
    %c7_i32_185 = arith.constant 7 : i32
    %326 = arith.subi %c7_i32_185, %325 : i32
    %c7_i32_186 = arith.constant 7 : i32
    %327 = arith.subi %c7_i32_186, %c3_i32 : i32
    %328 = arith.index_cast %c3_i32 : i32 to index
    %c0_187 = arith.constant 0 : index
    %c0_188 = arith.constant 0 : index
    %329 = vector.load %arg9[%328, %c0_187, %c0_188] : memref<8x8x512xf32, #tpu.memory_space<vmem>>, vector<1x8x512xf32>
    %330 = vector.shape_cast %329 : vector<1x8x512xf32> to vector<8x512xf32>
    %c0_189 = arith.constant 0 : index
    %c0_190 = arith.constant 0 : index
    %331 = vector.load %arg11[%c0_189, %c0_190] : memref<8x128xf32, #tpu.memory_space<vmem>>, vector<8x128xf32>
    %c0_191 = arith.constant 0 : index
    %c0_192 = arith.constant 0 : index
    %332 = vector.load %arg12[%c0_191, %c0_192] : memref<8x128xf32, #tpu.memory_space<vmem>>, vector<8x128xf32>
    %333 = arith.truncf %331 : vector<8x128xf32> to vector<8x128xbf16>
    %cst_193 = arith.constant dense<0.000000e+00> : vector<8x512xf32>
    %334 = tpu.matmul %333, %27, %cst_193 {dimension_numbers = #tpu.dot_dimension_numbers<[1], [0], [0], [1], [0, 0, 1, 1], [], []>} : vector<8x128xbf16>, vector<128x512xbf16>, vector<8x512xf32> -> vector<8x512xf32>
    %335 = arith.addf %330, %334 : vector<8x512xf32>
    %336 = math.tanh %335 : vector<8x512xf32>
    %337 = vector.extract_strided_slice %336 {offsets = [0, 0], sizes = [8, 128], strides = [1, 1]} : vector<8x512xf32> to vector<8x128xf32>
    %cst_194 = arith.constant 5.000000e-01 : f32
    %338 = vector.broadcast %cst_194 : f32 to vector<8x128xf32>
    %339 = arith.mulf %338, %337 : vector<8x128xf32>
    %cst_195 = arith.constant 5.000000e-01 : f32
    %340 = vector.broadcast %cst_195 : f32 to vector<8x128xf32>
    %341 = arith.addf %339, %340 : vector<8x128xf32>
    %342 = vector.extract_strided_slice %336 {offsets = [0, 128], sizes = [8, 128], strides = [1, 1]} : vector<8x512xf32> to vector<8x128xf32>
    %cst_196 = arith.constant 5.000000e-01 : f32
    %343 = vector.broadcast %cst_196 : f32 to vector<8x128xf32>
    %344 = arith.mulf %343, %342 : vector<8x128xf32>
    %cst_197 = arith.constant 5.000000e-01 : f32
    %345 = vector.broadcast %cst_197 : f32 to vector<8x128xf32>
    %346 = arith.addf %344, %345 : vector<8x128xf32>
    %347 = vector.extract_strided_slice %336 {offsets = [0, 256], sizes = [8, 128], strides = [1, 1]} : vector<8x512xf32> to vector<8x128xf32>
    %348 = vector.extract_strided_slice %336 {offsets = [0, 384], sizes = [8, 128], strides = [1, 1]} : vector<8x512xf32> to vector<8x128xf32>
    %cst_198 = arith.constant 5.000000e-01 : f32
    %349 = vector.broadcast %cst_198 : f32 to vector<8x128xf32>
    %350 = arith.mulf %349, %348 : vector<8x128xf32>
    %cst_199 = arith.constant 5.000000e-01 : f32
    %351 = vector.broadcast %cst_199 : f32 to vector<8x128xf32>
    %352 = arith.addf %350, %351 : vector<8x128xf32>
    %353 = arith.mulf %346, %332 : vector<8x128xf32>
    %354 = arith.mulf %341, %347 : vector<8x128xf32>
    %355 = arith.addf %353, %354 : vector<8x128xf32>
    %356 = math.tanh %355 : vector<8x128xf32>
    %357 = arith.mulf %352, %356 : vector<8x128xf32>
    %358 = arith.index_cast %327 : i32 to index
    %c0_200 = arith.constant 0 : index
    %c0_201 = arith.constant 0 : index
    %359 = vector.load %arg10[%358, %c0_200, %c0_201] : memref<8x8x512xf32, #tpu.memory_space<vmem>>, vector<1x8x512xf32>
    %360 = vector.shape_cast %359 : vector<1x8x512xf32> to vector<8x512xf32>
    %c0_202 = arith.constant 0 : index
    %c0_203 = arith.constant 0 : index
    %361 = vector.load %arg13[%c0_202, %c0_203] : memref<8x128xf32, #tpu.memory_space<vmem>>, vector<8x128xf32>
    %c0_204 = arith.constant 0 : index
    %c0_205 = arith.constant 0 : index
    %362 = vector.load %arg14[%c0_204, %c0_205] : memref<8x128xf32, #tpu.memory_space<vmem>>, vector<8x128xf32>
    %363 = arith.truncf %361 : vector<8x128xf32> to vector<8x128xbf16>
    %cst_206 = arith.constant dense<0.000000e+00> : vector<8x512xf32>
    %364 = tpu.matmul %363, %29, %cst_206 {dimension_numbers = #tpu.dot_dimension_numbers<[1], [0], [0], [1], [0, 0, 1, 1], [], []>} : vector<8x128xbf16>, vector<128x512xbf16>, vector<8x512xf32> -> vector<8x512xf32>
    %365 = arith.addf %360, %364 : vector<8x512xf32>
    %366 = math.tanh %365 : vector<8x512xf32>
    %367 = vector.extract_strided_slice %366 {offsets = [0, 0], sizes = [8, 128], strides = [1, 1]} : vector<8x512xf32> to vector<8x128xf32>
    %cst_207 = arith.constant 5.000000e-01 : f32
    %368 = vector.broadcast %cst_207 : f32 to vector<8x128xf32>
    %369 = arith.mulf %368, %367 : vector<8x128xf32>
    %cst_208 = arith.constant 5.000000e-01 : f32
    %370 = vector.broadcast %cst_208 : f32 to vector<8x128xf32>
    %371 = arith.addf %369, %370 : vector<8x128xf32>
    %372 = vector.extract_strided_slice %366 {offsets = [0, 128], sizes = [8, 128], strides = [1, 1]} : vector<8x512xf32> to vector<8x128xf32>
    %cst_209 = arith.constant 5.000000e-01 : f32
    %373 = vector.broadcast %cst_209 : f32 to vector<8x128xf32>
    %374 = arith.mulf %373, %372 : vector<8x128xf32>
    %cst_210 = arith.constant 5.000000e-01 : f32
    %375 = vector.broadcast %cst_210 : f32 to vector<8x128xf32>
    %376 = arith.addf %374, %375 : vector<8x128xf32>
    %377 = vector.extract_strided_slice %366 {offsets = [0, 256], sizes = [8, 128], strides = [1, 1]} : vector<8x512xf32> to vector<8x128xf32>
    %378 = vector.extract_strided_slice %366 {offsets = [0, 384], sizes = [8, 128], strides = [1, 1]} : vector<8x512xf32> to vector<8x128xf32>
    %cst_211 = arith.constant 5.000000e-01 : f32
    %379 = vector.broadcast %cst_211 : f32 to vector<8x128xf32>
    %380 = arith.mulf %379, %378 : vector<8x128xf32>
    %cst_212 = arith.constant 5.000000e-01 : f32
    %381 = vector.broadcast %cst_212 : f32 to vector<8x128xf32>
    %382 = arith.addf %380, %381 : vector<8x128xf32>
    %383 = arith.mulf %376, %362 : vector<8x128xf32>
    %384 = arith.mulf %371, %377 : vector<8x128xf32>
    %385 = arith.addf %383, %384 : vector<8x128xf32>
    %386 = math.tanh %385 : vector<8x128xf32>
    %387 = arith.mulf %382, %386 : vector<8x128xf32>
    %388 = vector.broadcast %325 : i32 to vector<8x1xi32>
    %389 = arith.cmpi slt, %388, %3 : vector<8x1xi32>
    %390 = vector.shape_cast %389 : vector<8x1xi1> to vector<8x1xi1>
    %391 = vector.broadcast %390 : vector<8x1xi1> to vector<8x128xi1>
    %392 = vector.broadcast %326 : i32 to vector<8x1xi32>
    %393 = arith.cmpi slt, %392, %3 : vector<8x1xi32>
    %394 = vector.shape_cast %393 : vector<8x1xi1> to vector<8x1xi1>
    %395 = vector.broadcast %394 : vector<8x1xi1> to vector<8x128xi1>
    %c0_213 = arith.constant 0 : index
    %c0_214 = arith.constant 0 : index
    %396 = vector.load %arg11[%c0_213, %c0_214] : memref<8x128xf32, #tpu.memory_space<vmem>>, vector<8x128xf32>
    %397 = arith.select %391, %357, %396 : vector<8x128xi1>, vector<8x128xf32>
    %c0_215 = arith.constant 0 : index
    %c0_216 = arith.constant 0 : index
    %398 = vector.load %arg11[%c0_215, %c0_216] : memref<8x128xf32, #tpu.memory_space<vmem>>, vector<8x128xf32>
    tpu.vector_store %arg11[%c0_215, %c0_216], %397 {strides = array<i32>} : memref<8x128xf32, #tpu.memory_space<vmem>>, vector<8x128xf32>,
    %c0_217 = arith.constant 0 : index
    %c0_218 = arith.constant 0 : index
    %399 = vector.load %arg12[%c0_217, %c0_218] : memref<8x128xf32, #tpu.memory_space<vmem>>, vector<8x128xf32>
    %400 = arith.select %391, %355, %399 : vector<8x128xi1>, vector<8x128xf32>
    %c0_219 = arith.constant 0 : index
    %c0_220 = arith.constant 0 : index
    %401 = vector.load %arg12[%c0_219, %c0_220] : memref<8x128xf32, #tpu.memory_space<vmem>>, vector<8x128xf32>
    tpu.vector_store %arg12[%c0_219, %c0_220], %400 {strides = array<i32>} : memref<8x128xf32, #tpu.memory_space<vmem>>, vector<8x128xf32>,
    %c0_221 = arith.constant 0 : index
    %c0_222 = arith.constant 0 : index
    %402 = vector.load %arg13[%c0_221, %c0_222] : memref<8x128xf32, #tpu.memory_space<vmem>>, vector<8x128xf32>
    %403 = arith.select %395, %387, %402 : vector<8x128xi1>, vector<8x128xf32>
    %c0_223 = arith.constant 0 : index
    %c0_224 = arith.constant 0 : index
    %404 = vector.load %arg13[%c0_223, %c0_224] : memref<8x128xf32, #tpu.memory_space<vmem>>, vector<8x128xf32>
    tpu.vector_store %arg13[%c0_223, %c0_224], %403 {strides = array<i32>} : memref<8x128xf32, #tpu.memory_space<vmem>>, vector<8x128xf32>,
    %c0_225 = arith.constant 0 : index
    %c0_226 = arith.constant 0 : index
    %405 = vector.load %arg14[%c0_225, %c0_226] : memref<8x128xf32, #tpu.memory_space<vmem>>, vector<8x128xf32>
    %406 = arith.select %395, %385, %405 : vector<8x128xi1>, vector<8x128xf32>
    %c0_227 = arith.constant 0 : index
    %c0_228 = arith.constant 0 : index
    %407 = vector.load %arg14[%c0_227, %c0_228] : memref<8x128xf32, #tpu.memory_space<vmem>>, vector<8x128xf32>
    tpu.vector_store %arg14[%c0_227, %c0_228], %406 {strides = array<i32>} : memref<8x128xf32, #tpu.memory_space<vmem>>, vector<8x128xf32>,
    %cst_229 = arith.constant 0.000000e+00 : f32
    %408 = vector.broadcast %cst_229 : f32 to vector<8x128xf32>
    %409 = arith.select %391, %357, %408 : vector<8x128xi1>, vector<8x128xf32>
    %410 = arith.truncf %409 : vector<8x128xf32> to vector<8x128xbf16>
    %411 = arith.index_cast %c3_i32 : i32 to index
    %c0_230 = arith.constant 0 : index
    %c0_231 = arith.constant 0 : index
    %412 = vector.load %arg7[%411, %c0_230, %c0_231] : memref<8x8x128xbf16, #tpu.memory_space<vmem>>, vector<1x8x128xbf16>
    %413 = vector.shape_cast %412 : vector<1x8x128xbf16> to vector<8x128xbf16>
    %414 = vector.shape_cast %410 : vector<8x128xbf16> to vector<1x8x128xbf16>
    tpu.vector_store %arg7[%411, %c0_230, %c0_231], %414 {strides = array<i32>} : memref<8x8x128xbf16, #tpu.memory_space<vmem>>, vector<1x8x128xbf16>,
    %cst_232 = arith.constant 0.000000e+00 : f32
    %415 = vector.broadcast %cst_232 : f32 to vector<8x128xf32>
    %416 = arith.select %395, %387, %415 : vector<8x128xi1>, vector<8x128xf32>
    %417 = arith.truncf %416 : vector<8x128xf32> to vector<8x128xbf16>
    %418 = arith.index_cast %327 : i32 to index
    %c0_233 = arith.constant 0 : index
    %c0_234 = arith.constant 0 : index
    %419 = vector.load %arg8[%418, %c0_233, %c0_234] : memref<8x8x128xbf16, #tpu.memory_space<vmem>>, vector<1x8x128xbf16>
    %420 = vector.shape_cast %419 : vector<1x8x128xbf16> to vector<8x128xbf16>
    %421 = vector.shape_cast %417 : vector<8x128xbf16> to vector<1x8x128xbf16>
    tpu.vector_store %arg8[%418, %c0_233, %c0_234], %421 {strides = array<i32>} : memref<8x8x128xbf16, #tpu.memory_space<vmem>>, vector<1x8x128xbf16>,
    %c4_i32 = arith.constant 4 : i32
    %c8_i32_235 = arith.constant 8 : i32
    %422 = arith.muli %arg0, %c8_i32_235 : i32
    %423 = arith.addi %422, %c4_i32 : i32
    %c7_i32_236 = arith.constant 7 : i32
    %424 = arith.subi %c7_i32_236, %423 : i32
    %c7_i32_237 = arith.constant 7 : i32
    %425 = arith.subi %c7_i32_237, %c4_i32 : i32
    %426 = arith.index_cast %c4_i32 : i32 to index
    %c0_238 = arith.constant 0 : index
    %c0_239 = arith.constant 0 : index
    %427 = vector.load %arg9[%426, %c0_238, %c0_239] : memref<8x8x512xf32, #tpu.memory_space<vmem>>, vector<1x8x512xf32>
    %428 = vector.shape_cast %427 : vector<1x8x512xf32> to vector<8x512xf32>
    %c0_240 = arith.constant 0 : index
    %c0_241 = arith.constant 0 : index
    %429 = vector.load %arg11[%c0_240, %c0_241] : memref<8x128xf32, #tpu.memory_space<vmem>>, vector<8x128xf32>
    %c0_242 = arith.constant 0 : index
    %c0_243 = arith.constant 0 : index
    %430 = vector.load %arg12[%c0_242, %c0_243] : memref<8x128xf32, #tpu.memory_space<vmem>>, vector<8x128xf32>
    %431 = arith.truncf %429 : vector<8x128xf32> to vector<8x128xbf16>
    %cst_244 = arith.constant dense<0.000000e+00> : vector<8x512xf32>
    %432 = tpu.matmul %431, %27, %cst_244 {dimension_numbers = #tpu.dot_dimension_numbers<[1], [0], [0], [1], [0, 0, 1, 1], [], []>} : vector<8x128xbf16>, vector<128x512xbf16>, vector<8x512xf32> -> vector<8x512xf32>
    %433 = arith.addf %428, %432 : vector<8x512xf32>
    %434 = math.tanh %433 : vector<8x512xf32>
    %435 = vector.extract_strided_slice %434 {offsets = [0, 0], sizes = [8, 128], strides = [1, 1]} : vector<8x512xf32> to vector<8x128xf32>
    %cst_245 = arith.constant 5.000000e-01 : f32
    %436 = vector.broadcast %cst_245 : f32 to vector<8x128xf32>
    %437 = arith.mulf %436, %435 : vector<8x128xf32>
    %cst_246 = arith.constant 5.000000e-01 : f32
    %438 = vector.broadcast %cst_246 : f32 to vector<8x128xf32>
    %439 = arith.addf %437, %438 : vector<8x128xf32>
    %440 = vector.extract_strided_slice %434 {offsets = [0, 128], sizes = [8, 128], strides = [1, 1]} : vector<8x512xf32> to vector<8x128xf32>
    %cst_247 = arith.constant 5.000000e-01 : f32
    %441 = vector.broadcast %cst_247 : f32 to vector<8x128xf32>
    %442 = arith.mulf %441, %440 : vector<8x128xf32>
    %cst_248 = arith.constant 5.000000e-01 : f32
    %443 = vector.broadcast %cst_248 : f32 to vector<8x128xf32>
    %444 = arith.addf %442, %443 : vector<8x128xf32>
    %445 = vector.extract_strided_slice %434 {offsets = [0, 256], sizes = [8, 128], strides = [1, 1]} : vector<8x512xf32> to vector<8x128xf32>
    %446 = vector.extract_strided_slice %434 {offsets = [0, 384], sizes = [8, 128], strides = [1, 1]} : vector<8x512xf32> to vector<8x128xf32>
    %cst_249 = arith.constant 5.000000e-01 : f32
    %447 = vector.broadcast %cst_249 : f32 to vector<8x128xf32>
    %448 = arith.mulf %447, %446 : vector<8x128xf32>
    %cst_250 = arith.constant 5.000000e-01 : f32
    %449 = vector.broadcast %cst_250 : f32 to vector<8x128xf32>
    %450 = arith.addf %448, %449 : vector<8x128xf32>
    %451 = arith.mulf %444, %430 : vector<8x128xf32>
    %452 = arith.mulf %439, %445 : vector<8x128xf32>
    %453 = arith.addf %451, %452 : vector<8x128xf32>
    %454 = math.tanh %453 : vector<8x128xf32>
    %455 = arith.mulf %450, %454 : vector<8x128xf32>
    %456 = arith.index_cast %425 : i32 to index
    %c0_251 = arith.constant 0 : index
    %c0_252 = arith.constant 0 : index
    %457 = vector.load %arg10[%456, %c0_251, %c0_252] : memref<8x8x512xf32, #tpu.memory_space<vmem>>, vector<1x8x512xf32>
    %458 = vector.shape_cast %457 : vector<1x8x512xf32> to vector<8x512xf32>
    %c0_253 = arith.constant 0 : index
    %c0_254 = arith.constant 0 : index
    %459 = vector.load %arg13[%c0_253, %c0_254] : memref<8x128xf32, #tpu.memory_space<vmem>>, vector<8x128xf32>
    %c0_255 = arith.constant 0 : index
    %c0_256 = arith.constant 0 : index
    %460 = vector.load %arg14[%c0_255, %c0_256] : memref<8x128xf32, #tpu.memory_space<vmem>>, vector<8x128xf32>
    %461 = arith.truncf %459 : vector<8x128xf32> to vector<8x128xbf16>
    %cst_257 = arith.constant dense<0.000000e+00> : vector<8x512xf32>
    %462 = tpu.matmul %461, %29, %cst_257 {dimension_numbers = #tpu.dot_dimension_numbers<[1], [0], [0], [1], [0, 0, 1, 1], [], []>} : vector<8x128xbf16>, vector<128x512xbf16>, vector<8x512xf32> -> vector<8x512xf32>
    %463 = arith.addf %458, %462 : vector<8x512xf32>
    %464 = math.tanh %463 : vector<8x512xf32>
    %465 = vector.extract_strided_slice %464 {offsets = [0, 0], sizes = [8, 128], strides = [1, 1]} : vector<8x512xf32> to vector<8x128xf32>
    %cst_258 = arith.constant 5.000000e-01 : f32
    %466 = vector.broadcast %cst_258 : f32 to vector<8x128xf32>
    %467 = arith.mulf %466, %465 : vector<8x128xf32>
    %cst_259 = arith.constant 5.000000e-01 : f32
    %468 = vector.broadcast %cst_259 : f32 to vector<8x128xf32>
    %469 = arith.addf %467, %468 : vector<8x128xf32>
    %470 = vector.extract_strided_slice %464 {offsets = [0, 128], sizes = [8, 128], strides = [1, 1]} : vector<8x512xf32> to vector<8x128xf32>
    %cst_260 = arith.constant 5.000000e-01 : f32
    %471 = vector.broadcast %cst_260 : f32 to vector<8x128xf32>
    %472 = arith.mulf %471, %470 : vector<8x128xf32>
    %cst_261 = arith.constant 5.000000e-01 : f32
    %473 = vector.broadcast %cst_261 : f32 to vector<8x128xf32>
    %474 = arith.addf %472, %473 : vector<8x128xf32>
    %475 = vector.extract_strided_slice %464 {offsets = [0, 256], sizes = [8, 128], strides = [1, 1]} : vector<8x512xf32> to vector<8x128xf32>
    %476 = vector.extract_strided_slice %464 {offsets = [0, 384], sizes = [8, 128], strides = [1, 1]} : vector<8x512xf32> to vector<8x128xf32>
    %cst_262 = arith.constant 5.000000e-01 : f32
    %477 = vector.broadcast %cst_262 : f32 to vector<8x128xf32>
    %478 = arith.mulf %477, %476 : vector<8x128xf32>
    %cst_263 = arith.constant 5.000000e-01 : f32
    %479 = vector.broadcast %cst_263 : f32 to vector<8x128xf32>
    %480 = arith.addf %478, %479 : vector<8x128xf32>
    %481 = arith.mulf %474, %460 : vector<8x128xf32>
    %482 = arith.mulf %469, %475 : vector<8x128xf32>
    %483 = arith.addf %481, %482 : vector<8x128xf32>
    %484 = math.tanh %483 : vector<8x128xf32>
    %485 = arith.mulf %480, %484 : vector<8x128xf32>
    %486 = vector.broadcast %423 : i32 to vector<8x1xi32>
    %487 = arith.cmpi slt, %486, %3 : vector<8x1xi32>
    %488 = vector.shape_cast %487 : vector<8x1xi1> to vector<8x1xi1>
    %489 = vector.broadcast %488 : vector<8x1xi1> to vector<8x128xi1>
    %490 = vector.broadcast %424 : i32 to vector<8x1xi32>
    %491 = arith.cmpi slt, %490, %3 : vector<8x1xi32>
    %492 = vector.shape_cast %491 : vector<8x1xi1> to vector<8x1xi1>
    %493 = vector.broadcast %492 : vector<8x1xi1> to vector<8x128xi1>
    %c0_264 = arith.constant 0 : index
    %c0_265 = arith.constant 0 : index
    %494 = vector.load %arg11[%c0_264, %c0_265] : memref<8x128xf32, #tpu.memory_space<vmem>>, vector<8x128xf32>
    %495 = arith.select %489, %455, %494 : vector<8x128xi1>, vector<8x128xf32>
    %c0_266 = arith.constant 0 : index
    %c0_267 = arith.constant 0 : index
    %496 = vector.load %arg11[%c0_266, %c0_267] : memref<8x128xf32, #tpu.memory_space<vmem>>, vector<8x128xf32>
    tpu.vector_store %arg11[%c0_266, %c0_267], %495 {strides = array<i32>} : memref<8x128xf32, #tpu.memory_space<vmem>>, vector<8x128xf32>,
    %c0_268 = arith.constant 0 : index
    %c0_269 = arith.constant 0 : index
    %497 = vector.load %arg12[%c0_268, %c0_269] : memref<8x128xf32, #tpu.memory_space<vmem>>, vector<8x128xf32>
    %498 = arith.select %489, %453, %497 : vector<8x128xi1>, vector<8x128xf32>
    %c0_270 = arith.constant 0 : index
    %c0_271 = arith.constant 0 : index
    %499 = vector.load %arg12[%c0_270, %c0_271] : memref<8x128xf32, #tpu.memory_space<vmem>>, vector<8x128xf32>
    tpu.vector_store %arg12[%c0_270, %c0_271], %498 {strides = array<i32>} : memref<8x128xf32, #tpu.memory_space<vmem>>, vector<8x128xf32>,
    %c0_272 = arith.constant 0 : index
    %c0_273 = arith.constant 0 : index
    %500 = vector.load %arg13[%c0_272, %c0_273] : memref<8x128xf32, #tpu.memory_space<vmem>>, vector<8x128xf32>
    %501 = arith.select %493, %485, %500 : vector<8x128xi1>, vector<8x128xf32>
    %c0_274 = arith.constant 0 : index
    %c0_275 = arith.constant 0 : index
    %502 = vector.load %arg13[%c0_274, %c0_275] : memref<8x128xf32, #tpu.memory_space<vmem>>, vector<8x128xf32>
    tpu.vector_store %arg13[%c0_274, %c0_275], %501 {strides = array<i32>} : memref<8x128xf32, #tpu.memory_space<vmem>>, vector<8x128xf32>,
    %c0_276 = arith.constant 0 : index
    %c0_277 = arith.constant 0 : index
    %503 = vector.load %arg14[%c0_276, %c0_277] : memref<8x128xf32, #tpu.memory_space<vmem>>, vector<8x128xf32>
    %504 = arith.select %493, %483, %503 : vector<8x128xi1>, vector<8x128xf32>
    %c0_278 = arith.constant 0 : index
    %c0_279 = arith.constant 0 : index
    %505 = vector.load %arg14[%c0_278, %c0_279] : memref<8x128xf32, #tpu.memory_space<vmem>>, vector<8x128xf32>
    tpu.vector_store %arg14[%c0_278, %c0_279], %504 {strides = array<i32>} : memref<8x128xf32, #tpu.memory_space<vmem>>, vector<8x128xf32>,
    %cst_280 = arith.constant 0.000000e+00 : f32
    %506 = vector.broadcast %cst_280 : f32 to vector<8x128xf32>
    %507 = arith.select %489, %455, %506 : vector<8x128xi1>, vector<8x128xf32>
    %508 = arith.truncf %507 : vector<8x128xf32> to vector<8x128xbf16>
    %509 = arith.index_cast %c4_i32 : i32 to index
    %c0_281 = arith.constant 0 : index
    %c0_282 = arith.constant 0 : index
    %510 = vector.load %arg7[%509, %c0_281, %c0_282] : memref<8x8x128xbf16, #tpu.memory_space<vmem>>, vector<1x8x128xbf16>
    %511 = vector.shape_cast %510 : vector<1x8x128xbf16> to vector<8x128xbf16>
    %512 = vector.shape_cast %508 : vector<8x128xbf16> to vector<1x8x128xbf16>
    tpu.vector_store %arg7[%509, %c0_281, %c0_282], %512 {strides = array<i32>} : memref<8x8x128xbf16, #tpu.memory_space<vmem>>, vector<1x8x128xbf16>,
    %cst_283 = arith.constant 0.000000e+00 : f32
    %513 = vector.broadcast %cst_283 : f32 to vector<8x128xf32>
    %514 = arith.select %493, %485, %513 : vector<8x128xi1>, vector<8x128xf32>
    %515 = arith.truncf %514 : vector<8x128xf32> to vector<8x128xbf16>
    %516 = arith.index_cast %425 : i32 to index
    %c0_284 = arith.constant 0 : index
    %c0_285 = arith.constant 0 : index
    %517 = vector.load %arg8[%516, %c0_284, %c0_285] : memref<8x8x128xbf16, #tpu.memory_space<vmem>>, vector<1x8x128xbf16>
    %518 = vector.shape_cast %517 : vector<1x8x128xbf16> to vector<8x128xbf16>
    %519 = vector.shape_cast %515 : vector<8x128xbf16> to vector<1x8x128xbf16>
    tpu.vector_store %arg8[%516, %c0_284, %c0_285], %519 {strides = array<i32>} : memref<8x8x128xbf16, #tpu.memory_space<vmem>>, vector<1x8x128xbf16>,
    %c5_i32 = arith.constant 5 : i32
    %c8_i32_286 = arith.constant 8 : i32
    %520 = arith.muli %arg0, %c8_i32_286 : i32
    %521 = arith.addi %520, %c5_i32 : i32
    %c7_i32_287 = arith.constant 7 : i32
    %522 = arith.subi %c7_i32_287, %521 : i32
    %c7_i32_288 = arith.constant 7 : i32
    %523 = arith.subi %c7_i32_288, %c5_i32 : i32
    %524 = arith.index_cast %c5_i32 : i32 to index
    %c0_289 = arith.constant 0 : index
    %c0_290 = arith.constant 0 : index
    %525 = vector.load %arg9[%524, %c0_289, %c0_290] : memref<8x8x512xf32, #tpu.memory_space<vmem>>, vector<1x8x512xf32>
    %526 = vector.shape_cast %525 : vector<1x8x512xf32> to vector<8x512xf32>
    %c0_291 = arith.constant 0 : index
    %c0_292 = arith.constant 0 : index
    %527 = vector.load %arg11[%c0_291, %c0_292] : memref<8x128xf32, #tpu.memory_space<vmem>>, vector<8x128xf32>
    %c0_293 = arith.constant 0 : index
    %c0_294 = arith.constant 0 : index
    %528 = vector.load %arg12[%c0_293, %c0_294] : memref<8x128xf32, #tpu.memory_space<vmem>>, vector<8x128xf32>
    %529 = arith.truncf %527 : vector<8x128xf32> to vector<8x128xbf16>
    %cst_295 = arith.constant dense<0.000000e+00> : vector<8x512xf32>
    %530 = tpu.matmul %529, %27, %cst_295 {dimension_numbers = #tpu.dot_dimension_numbers<[1], [0], [0], [1], [0, 0, 1, 1], [], []>} : vector<8x128xbf16>, vector<128x512xbf16>, vector<8x512xf32> -> vector<8x512xf32>
    %531 = arith.addf %526, %530 : vector<8x512xf32>
    %532 = math.tanh %531 : vector<8x512xf32>
    %533 = vector.extract_strided_slice %532 {offsets = [0, 0], sizes = [8, 128], strides = [1, 1]} : vector<8x512xf32> to vector<8x128xf32>
    %cst_296 = arith.constant 5.000000e-01 : f32
    %534 = vector.broadcast %cst_296 : f32 to vector<8x128xf32>
    %535 = arith.mulf %534, %533 : vector<8x128xf32>
    %cst_297 = arith.constant 5.000000e-01 : f32
    %536 = vector.broadcast %cst_297 : f32 to vector<8x128xf32>
    %537 = arith.addf %535, %536 : vector<8x128xf32>
    %538 = vector.extract_strided_slice %532 {offsets = [0, 128], sizes = [8, 128], strides = [1, 1]} : vector<8x512xf32> to vector<8x128xf32>
    %cst_298 = arith.constant 5.000000e-01 : f32
    %539 = vector.broadcast %cst_298 : f32 to vector<8x128xf32>
    %540 = arith.mulf %539, %538 : vector<8x128xf32>
    %cst_299 = arith.constant 5.000000e-01 : f32
    %541 = vector.broadcast %cst_299 : f32 to vector<8x128xf32>
    %542 = arith.addf %540, %541 : vector<8x128xf32>
    %543 = vector.extract_strided_slice %532 {offsets = [0, 256], sizes = [8, 128], strides = [1, 1]} : vector<8x512xf32> to vector<8x128xf32>
    %544 = vector.extract_strided_slice %532 {offsets = [0, 384], sizes = [8, 128], strides = [1, 1]} : vector<8x512xf32> to vector<8x128xf32>
    %cst_300 = arith.constant 5.000000e-01 : f32
    %545 = vector.broadcast %cst_300 : f32 to vector<8x128xf32>
    %546 = arith.mulf %545, %544 : vector<8x128xf32>
    %cst_301 = arith.constant 5.000000e-01 : f32
    %547 = vector.broadcast %cst_301 : f32 to vector<8x128xf32>
    %548 = arith.addf %546, %547 : vector<8x128xf32>
    %549 = arith.mulf %542, %528 : vector<8x128xf32>
    %550 = arith.mulf %537, %543 : vector<8x128xf32>
    %551 = arith.addf %549, %550 : vector<8x128xf32>
    %552 = math.tanh %551 : vector<8x128xf32>
    %553 = arith.mulf %548, %552 : vector<8x128xf32>
    %554 = arith.index_cast %523 : i32 to index
    %c0_302 = arith.constant 0 : index
    %c0_303 = arith.constant 0 : index
    %555 = vector.load %arg10[%554, %c0_302, %c0_303] : memref<8x8x512xf32, #tpu.memory_space<vmem>>, vector<1x8x512xf32>
    %556 = vector.shape_cast %555 : vector<1x8x512xf32> to vector<8x512xf32>
    %c0_304 = arith.constant 0 : index
    %c0_305 = arith.constant 0 : index
    %557 = vector.load %arg13[%c0_304, %c0_305] : memref<8x128xf32, #tpu.memory_space<vmem>>, vector<8x128xf32>
    %c0_306 = arith.constant 0 : index
    %c0_307 = arith.constant 0 : index
    %558 = vector.load %arg14[%c0_306, %c0_307] : memref<8x128xf32, #tpu.memory_space<vmem>>, vector<8x128xf32>
    %559 = arith.truncf %557 : vector<8x128xf32> to vector<8x128xbf16>
    %cst_308 = arith.constant dense<0.000000e+00> : vector<8x512xf32>
    %560 = tpu.matmul %559, %29, %cst_308 {dimension_numbers = #tpu.dot_dimension_numbers<[1], [0], [0], [1], [0, 0, 1, 1], [], []>} : vector<8x128xbf16>, vector<128x512xbf16>, vector<8x512xf32> -> vector<8x512xf32>
    %561 = arith.addf %556, %560 : vector<8x512xf32>
    %562 = math.tanh %561 : vector<8x512xf32>
    %563 = vector.extract_strided_slice %562 {offsets = [0, 0], sizes = [8, 128], strides = [1, 1]} : vector<8x512xf32> to vector<8x128xf32>
    %cst_309 = arith.constant 5.000000e-01 : f32
    %564 = vector.broadcast %cst_309 : f32 to vector<8x128xf32>
    %565 = arith.mulf %564, %563 : vector<8x128xf32>
    %cst_310 = arith.constant 5.000000e-01 : f32
    %566 = vector.broadcast %cst_310 : f32 to vector<8x128xf32>
    %567 = arith.addf %565, %566 : vector<8x128xf32>
    %568 = vector.extract_strided_slice %562 {offsets = [0, 128], sizes = [8, 128], strides = [1, 1]} : vector<8x512xf32> to vector<8x128xf32>
    %cst_311 = arith.constant 5.000000e-01 : f32
    %569 = vector.broadcast %cst_311 : f32 to vector<8x128xf32>
    %570 = arith.mulf %569, %568 : vector<8x128xf32>
    %cst_312 = arith.constant 5.000000e-01 : f32
    %571 = vector.broadcast %cst_312 : f32 to vector<8x128xf32>
    %572 = arith.addf %570, %571 : vector<8x128xf32>
    %573 = vector.extract_strided_slice %562 {offsets = [0, 256], sizes = [8, 128], strides = [1, 1]} : vector<8x512xf32> to vector<8x128xf32>
    %574 = vector.extract_strided_slice %562 {offsets = [0, 384], sizes = [8, 128], strides = [1, 1]} : vector<8x512xf32> to vector<8x128xf32>
    %cst_313 = arith.constant 5.000000e-01 : f32
    %575 = vector.broadcast %cst_313 : f32 to vector<8x128xf32>
    %576 = arith.mulf %575, %574 : vector<8x128xf32>
    %cst_314 = arith.constant 5.000000e-01 : f32
    %577 = vector.broadcast %cst_314 : f32 to vector<8x128xf32>
    %578 = arith.addf %576, %577 : vector<8x128xf32>
    %579 = arith.mulf %572, %558 : vector<8x128xf32>
    %580 = arith.mulf %567, %573 : vector<8x128xf32>
    %581 = arith.addf %579, %580 : vector<8x128xf32>
    %582 = math.tanh %581 : vector<8x128xf32>
    %583 = arith.mulf %578, %582 : vector<8x128xf32>
    %584 = vector.broadcast %521 : i32 to vector<8x1xi32>
    %585 = arith.cmpi slt, %584, %3 : vector<8x1xi32>
    %586 = vector.shape_cast %585 : vector<8x1xi1> to vector<8x1xi1>
    %587 = vector.broadcast %586 : vector<8x1xi1> to vector<8x128xi1>
    %588 = vector.broadcast %522 : i32 to vector<8x1xi32>
    %589 = arith.cmpi slt, %588, %3 : vector<8x1xi32>
    %590 = vector.shape_cast %589 : vector<8x1xi1> to vector<8x1xi1>
    %591 = vector.broadcast %590 : vector<8x1xi1> to vector<8x128xi1>
    %c0_315 = arith.constant 0 : index
    %c0_316 = arith.constant 0 : index
    %592 = vector.load %arg11[%c0_315, %c0_316] : memref<8x128xf32, #tpu.memory_space<vmem>>, vector<8x128xf32>
    %593 = arith.select %587, %553, %592 : vector<8x128xi1>, vector<8x128xf32>
    %c0_317 = arith.constant 0 : index
    %c0_318 = arith.constant 0 : index
    %594 = vector.load %arg11[%c0_317, %c0_318] : memref<8x128xf32, #tpu.memory_space<vmem>>, vector<8x128xf32>
    tpu.vector_store %arg11[%c0_317, %c0_318], %593 {strides = array<i32>} : memref<8x128xf32, #tpu.memory_space<vmem>>, vector<8x128xf32>,
    %c0_319 = arith.constant 0 : index
    %c0_320 = arith.constant 0 : index
    %595 = vector.load %arg12[%c0_319, %c0_320] : memref<8x128xf32, #tpu.memory_space<vmem>>, vector<8x128xf32>
    %596 = arith.select %587, %551, %595 : vector<8x128xi1>, vector<8x128xf32>
    %c0_321 = arith.constant 0 : index
    %c0_322 = arith.constant 0 : index
    %597 = vector.load %arg12[%c0_321, %c0_322] : memref<8x128xf32, #tpu.memory_space<vmem>>, vector<8x128xf32>
    tpu.vector_store %arg12[%c0_321, %c0_322], %596 {strides = array<i32>} : memref<8x128xf32, #tpu.memory_space<vmem>>, vector<8x128xf32>,
    %c0_323 = arith.constant 0 : index
    %c0_324 = arith.constant 0 : index
    %598 = vector.load %arg13[%c0_323, %c0_324] : memref<8x128xf32, #tpu.memory_space<vmem>>, vector<8x128xf32>
    %599 = arith.select %591, %583, %598 : vector<8x128xi1>, vector<8x128xf32>
    %c0_325 = arith.constant 0 : index
    %c0_326 = arith.constant 0 : index
    %600 = vector.load %arg13[%c0_325, %c0_326] : memref<8x128xf32, #tpu.memory_space<vmem>>, vector<8x128xf32>
    tpu.vector_store %arg13[%c0_325, %c0_326], %599 {strides = array<i32>} : memref<8x128xf32, #tpu.memory_space<vmem>>, vector<8x128xf32>,
    %c0_327 = arith.constant 0 : index
    %c0_328 = arith.constant 0 : index
    %601 = vector.load %arg14[%c0_327, %c0_328] : memref<8x128xf32, #tpu.memory_space<vmem>>, vector<8x128xf32>
    %602 = arith.select %591, %581, %601 : vector<8x128xi1>, vector<8x128xf32>
    %c0_329 = arith.constant 0 : index
    %c0_330 = arith.constant 0 : index
    %603 = vector.load %arg14[%c0_329, %c0_330] : memref<8x128xf32, #tpu.memory_space<vmem>>, vector<8x128xf32>
    tpu.vector_store %arg14[%c0_329, %c0_330], %602 {strides = array<i32>} : memref<8x128xf32, #tpu.memory_space<vmem>>, vector<8x128xf32>,
    %cst_331 = arith.constant 0.000000e+00 : f32
    %604 = vector.broadcast %cst_331 : f32 to vector<8x128xf32>
    %605 = arith.select %587, %553, %604 : vector<8x128xi1>, vector<8x128xf32>
    %606 = arith.truncf %605 : vector<8x128xf32> to vector<8x128xbf16>
    %607 = arith.index_cast %c5_i32 : i32 to index
    %c0_332 = arith.constant 0 : index
    %c0_333 = arith.constant 0 : index
    %608 = vector.load %arg7[%607, %c0_332, %c0_333] : memref<8x8x128xbf16, #tpu.memory_space<vmem>>, vector<1x8x128xbf16>
    %609 = vector.shape_cast %608 : vector<1x8x128xbf16> to vector<8x128xbf16>
    %610 = vector.shape_cast %606 : vector<8x128xbf16> to vector<1x8x128xbf16>
    tpu.vector_store %arg7[%607, %c0_332, %c0_333], %610 {strides = array<i32>} : memref<8x8x128xbf16, #tpu.memory_space<vmem>>, vector<1x8x128xbf16>,
    %cst_334 = arith.constant 0.000000e+00 : f32
    %611 = vector.broadcast %cst_334 : f32 to vector<8x128xf32>
    %612 = arith.select %591, %583, %611 : vector<8x128xi1>, vector<8x128xf32>
    %613 = arith.truncf %612 : vector<8x128xf32> to vector<8x128xbf16>
    %614 = arith.index_cast %523 : i32 to index
    %c0_335 = arith.constant 0 : index
    %c0_336 = arith.constant 0 : index
    %615 = vector.load %arg8[%614, %c0_335, %c0_336] : memref<8x8x128xbf16, #tpu.memory_space<vmem>>, vector<1x8x128xbf16>
    %616 = vector.shape_cast %615 : vector<1x8x128xbf16> to vector<8x128xbf16>
    %617 = vector.shape_cast %613 : vector<8x128xbf16> to vector<1x8x128xbf16>
    tpu.vector_store %arg8[%614, %c0_335, %c0_336], %617 {strides = array<i32>} : memref<8x8x128xbf16, #tpu.memory_space<vmem>>, vector<1x8x128xbf16>,
    %c6_i32 = arith.constant 6 : i32
    %c8_i32_337 = arith.constant 8 : i32
    %618 = arith.muli %arg0, %c8_i32_337 : i32
    %619 = arith.addi %618, %c6_i32 : i32
    %c7_i32_338 = arith.constant 7 : i32
    %620 = arith.subi %c7_i32_338, %619 : i32
    %c7_i32_339 = arith.constant 7 : i32
    %621 = arith.subi %c7_i32_339, %c6_i32 : i32
    %622 = arith.index_cast %c6_i32 : i32 to index
    %c0_340 = arith.constant 0 : index
    %c0_341 = arith.constant 0 : index
    %623 = vector.load %arg9[%622, %c0_340, %c0_341] : memref<8x8x512xf32, #tpu.memory_space<vmem>>, vector<1x8x512xf32>
    %624 = vector.shape_cast %623 : vector<1x8x512xf32> to vector<8x512xf32>
    %c0_342 = arith.constant 0 : index
    %c0_343 = arith.constant 0 : index
    %625 = vector.load %arg11[%c0_342, %c0_343] : memref<8x128xf32, #tpu.memory_space<vmem>>, vector<8x128xf32>
    %c0_344 = arith.constant 0 : index
    %c0_345 = arith.constant 0 : index
    %626 = vector.load %arg12[%c0_344, %c0_345] : memref<8x128xf32, #tpu.memory_space<vmem>>, vector<8x128xf32>
    %627 = arith.truncf %625 : vector<8x128xf32> to vector<8x128xbf16>
    %cst_346 = arith.constant dense<0.000000e+00> : vector<8x512xf32>
    %628 = tpu.matmul %627, %27, %cst_346 {dimension_numbers = #tpu.dot_dimension_numbers<[1], [0], [0], [1], [0, 0, 1, 1], [], []>} : vector<8x128xbf16>, vector<128x512xbf16>, vector<8x512xf32> -> vector<8x512xf32>
    %629 = arith.addf %624, %628 : vector<8x512xf32>
    %630 = math.tanh %629 : vector<8x512xf32>
    %631 = vector.extract_strided_slice %630 {offsets = [0, 0], sizes = [8, 128], strides = [1, 1]} : vector<8x512xf32> to vector<8x128xf32>
    %cst_347 = arith.constant 5.000000e-01 : f32
    %632 = vector.broadcast %cst_347 : f32 to vector<8x128xf32>
    %633 = arith.mulf %632, %631 : vector<8x128xf32>
    %cst_348 = arith.constant 5.000000e-01 : f32
    %634 = vector.broadcast %cst_348 : f32 to vector<8x128xf32>
    %635 = arith.addf %633, %634 : vector<8x128xf32>
    %636 = vector.extract_strided_slice %630 {offsets = [0, 128], sizes = [8, 128], strides = [1, 1]} : vector<8x512xf32> to vector<8x128xf32>
    %cst_349 = arith.constant 5.000000e-01 : f32
    %637 = vector.broadcast %cst_349 : f32 to vector<8x128xf32>
    %638 = arith.mulf %637, %636 : vector<8x128xf32>
    %cst_350 = arith.constant 5.000000e-01 : f32
    %639 = vector.broadcast %cst_350 : f32 to vector<8x128xf32>
    %640 = arith.addf %638, %639 : vector<8x128xf32>
    %641 = vector.extract_strided_slice %630 {offsets = [0, 256], sizes = [8, 128], strides = [1, 1]} : vector<8x512xf32> to vector<8x128xf32>
    %642 = vector.extract_strided_slice %630 {offsets = [0, 384], sizes = [8, 128], strides = [1, 1]} : vector<8x512xf32> to vector<8x128xf32>
    %cst_351 = arith.constant 5.000000e-01 : f32
    %643 = vector.broadcast %cst_351 : f32 to vector<8x128xf32>
    %644 = arith.mulf %643, %642 : vector<8x128xf32>
    %cst_352 = arith.constant 5.000000e-01 : f32
    %645 = vector.broadcast %cst_352 : f32 to vector<8x128xf32>
    %646 = arith.addf %644, %645 : vector<8x128xf32>
    %647 = arith.mulf %640, %626 : vector<8x128xf32>
    %648 = arith.mulf %635, %641 : vector<8x128xf32>
    %649 = arith.addf %647, %648 : vector<8x128xf32>
    %650 = math.tanh %649 : vector<8x128xf32>
    %651 = arith.mulf %646, %650 : vector<8x128xf32>
    %652 = arith.index_cast %621 : i32 to index
    %c0_353 = arith.constant 0 : index
    %c0_354 = arith.constant 0 : index
    %653 = vector.load %arg10[%652, %c0_353, %c0_354] : memref<8x8x512xf32, #tpu.memory_space<vmem>>, vector<1x8x512xf32>
    %654 = vector.shape_cast %653 : vector<1x8x512xf32> to vector<8x512xf32>
    %c0_355 = arith.constant 0 : index
    %c0_356 = arith.constant 0 : index
    %655 = vector.load %arg13[%c0_355, %c0_356] : memref<8x128xf32, #tpu.memory_space<vmem>>, vector<8x128xf32>
    %c0_357 = arith.constant 0 : index
    %c0_358 = arith.constant 0 : index
    %656 = vector.load %arg14[%c0_357, %c0_358] : memref<8x128xf32, #tpu.memory_space<vmem>>, vector<8x128xf32>
    %657 = arith.truncf %655 : vector<8x128xf32> to vector<8x128xbf16>
    %cst_359 = arith.constant dense<0.000000e+00> : vector<8x512xf32>
    %658 = tpu.matmul %657, %29, %cst_359 {dimension_numbers = #tpu.dot_dimension_numbers<[1], [0], [0], [1], [0, 0, 1, 1], [], []>} : vector<8x128xbf16>, vector<128x512xbf16>, vector<8x512xf32> -> vector<8x512xf32>
    %659 = arith.addf %654, %658 : vector<8x512xf32>
    %660 = math.tanh %659 : vector<8x512xf32>
    %661 = vector.extract_strided_slice %660 {offsets = [0, 0], sizes = [8, 128], strides = [1, 1]} : vector<8x512xf32> to vector<8x128xf32>
    %cst_360 = arith.constant 5.000000e-01 : f32
    %662 = vector.broadcast %cst_360 : f32 to vector<8x128xf32>
    %663 = arith.mulf %662, %661 : vector<8x128xf32>
    %cst_361 = arith.constant 5.000000e-01 : f32
    %664 = vector.broadcast %cst_361 : f32 to vector<8x128xf32>
    %665 = arith.addf %663, %664 : vector<8x128xf32>
    %666 = vector.extract_strided_slice %660 {offsets = [0, 128], sizes = [8, 128], strides = [1, 1]} : vector<8x512xf32> to vector<8x128xf32>
    %cst_362 = arith.constant 5.000000e-01 : f32
    %667 = vector.broadcast %cst_362 : f32 to vector<8x128xf32>
    %668 = arith.mulf %667, %666 : vector<8x128xf32>
    %cst_363 = arith.constant 5.000000e-01 : f32
    %669 = vector.broadcast %cst_363 : f32 to vector<8x128xf32>
    %670 = arith.addf %668, %669 : vector<8x128xf32>
    %671 = vector.extract_strided_slice %660 {offsets = [0, 256], sizes = [8, 128], strides = [1, 1]} : vector<8x512xf32> to vector<8x128xf32>
    %672 = vector.extract_strided_slice %660 {offsets = [0, 384], sizes = [8, 128], strides = [1, 1]} : vector<8x512xf32> to vector<8x128xf32>
    %cst_364 = arith.constant 5.000000e-01 : f32
    %673 = vector.broadcast %cst_364 : f32 to vector<8x128xf32>
    %674 = arith.mulf %673, %672 : vector<8x128xf32>
    %cst_365 = arith.constant 5.000000e-01 : f32
    %675 = vector.broadcast %cst_365 : f32 to vector<8x128xf32>
    %676 = arith.addf %674, %675 : vector<8x128xf32>
    %677 = arith.mulf %670, %656 : vector<8x128xf32>
    %678 = arith.mulf %665, %671 : vector<8x128xf32>
    %679 = arith.addf %677, %678 : vector<8x128xf32>
    %680 = math.tanh %679 : vector<8x128xf32>
    %681 = arith.mulf %676, %680 : vector<8x128xf32>
    %682 = vector.broadcast %619 : i32 to vector<8x1xi32>
    %683 = arith.cmpi slt, %682, %3 : vector<8x1xi32>
    %684 = vector.shape_cast %683 : vector<8x1xi1> to vector<8x1xi1>
    %685 = vector.broadcast %684 : vector<8x1xi1> to vector<8x128xi1>
    %686 = vector.broadcast %620 : i32 to vector<8x1xi32>
    %687 = arith.cmpi slt, %686, %3 : vector<8x1xi32>
    %688 = vector.shape_cast %687 : vector<8x1xi1> to vector<8x1xi1>
    %689 = vector.broadcast %688 : vector<8x1xi1> to vector<8x128xi1>
    %c0_366 = arith.constant 0 : index
    %c0_367 = arith.constant 0 : index
    %690 = vector.load %arg11[%c0_366, %c0_367] : memref<8x128xf32, #tpu.memory_space<vmem>>, vector<8x128xf32>
    %691 = arith.select %685, %651, %690 : vector<8x128xi1>, vector<8x128xf32>
    %c0_368 = arith.constant 0 : index
    %c0_369 = arith.constant 0 : index
    %692 = vector.load %arg11[%c0_368, %c0_369] : memref<8x128xf32, #tpu.memory_space<vmem>>, vector<8x128xf32>
    tpu.vector_store %arg11[%c0_368, %c0_369], %691 {strides = array<i32>} : memref<8x128xf32, #tpu.memory_space<vmem>>, vector<8x128xf32>,
    %c0_370 = arith.constant 0 : index
    %c0_371 = arith.constant 0 : index
    %693 = vector.load %arg12[%c0_370, %c0_371] : memref<8x128xf32, #tpu.memory_space<vmem>>, vector<8x128xf32>
    %694 = arith.select %685, %649, %693 : vector<8x128xi1>, vector<8x128xf32>
    %c0_372 = arith.constant 0 : index
    %c0_373 = arith.constant 0 : index
    %695 = vector.load %arg12[%c0_372, %c0_373] : memref<8x128xf32, #tpu.memory_space<vmem>>, vector<8x128xf32>
    tpu.vector_store %arg12[%c0_372, %c0_373], %694 {strides = array<i32>} : memref<8x128xf32, #tpu.memory_space<vmem>>, vector<8x128xf32>,
    %c0_374 = arith.constant 0 : index
    %c0_375 = arith.constant 0 : index
    %696 = vector.load %arg13[%c0_374, %c0_375] : memref<8x128xf32, #tpu.memory_space<vmem>>, vector<8x128xf32>
    %697 = arith.select %689, %681, %696 : vector<8x128xi1>, vector<8x128xf32>
    %c0_376 = arith.constant 0 : index
    %c0_377 = arith.constant 0 : index
    %698 = vector.load %arg13[%c0_376, %c0_377] : memref<8x128xf32, #tpu.memory_space<vmem>>, vector<8x128xf32>
    tpu.vector_store %arg13[%c0_376, %c0_377], %697 {strides = array<i32>} : memref<8x128xf32, #tpu.memory_space<vmem>>, vector<8x128xf32>,
    %c0_378 = arith.constant 0 : index
    %c0_379 = arith.constant 0 : index
    %699 = vector.load %arg14[%c0_378, %c0_379] : memref<8x128xf32, #tpu.memory_space<vmem>>, vector<8x128xf32>
    %700 = arith.select %689, %679, %699 : vector<8x128xi1>, vector<8x128xf32>
    %c0_380 = arith.constant 0 : index
    %c0_381 = arith.constant 0 : index
    %701 = vector.load %arg14[%c0_380, %c0_381] : memref<8x128xf32, #tpu.memory_space<vmem>>, vector<8x128xf32>
    tpu.vector_store %arg14[%c0_380, %c0_381], %700 {strides = array<i32>} : memref<8x128xf32, #tpu.memory_space<vmem>>, vector<8x128xf32>,
    %cst_382 = arith.constant 0.000000e+00 : f32
    %702 = vector.broadcast %cst_382 : f32 to vector<8x128xf32>
    %703 = arith.select %685, %651, %702 : vector<8x128xi1>, vector<8x128xf32>
    %704 = arith.truncf %703 : vector<8x128xf32> to vector<8x128xbf16>
    %705 = arith.index_cast %c6_i32 : i32 to index
    %c0_383 = arith.constant 0 : index
    %c0_384 = arith.constant 0 : index
    %706 = vector.load %arg7[%705, %c0_383, %c0_384] : memref<8x8x128xbf16, #tpu.memory_space<vmem>>, vector<1x8x128xbf16>
    %707 = vector.shape_cast %706 : vector<1x8x128xbf16> to vector<8x128xbf16>
    %708 = vector.shape_cast %704 : vector<8x128xbf16> to vector<1x8x128xbf16>
    tpu.vector_store %arg7[%705, %c0_383, %c0_384], %708 {strides = array<i32>} : memref<8x8x128xbf16, #tpu.memory_space<vmem>>, vector<1x8x128xbf16>,
    %cst_385 = arith.constant 0.000000e+00 : f32
    %709 = vector.broadcast %cst_385 : f32 to vector<8x128xf32>
    %710 = arith.select %689, %681, %709 : vector<8x128xi1>, vector<8x128xf32>
    %711 = arith.truncf %710 : vector<8x128xf32> to vector<8x128xbf16>
    %712 = arith.index_cast %621 : i32 to index
    %c0_386 = arith.constant 0 : index
    %c0_387 = arith.constant 0 : index
    %713 = vector.load %arg8[%712, %c0_386, %c0_387] : memref<8x8x128xbf16, #tpu.memory_space<vmem>>, vector<1x8x128xbf16>
    %714 = vector.shape_cast %713 : vector<1x8x128xbf16> to vector<8x128xbf16>
    %715 = vector.shape_cast %711 : vector<8x128xbf16> to vector<1x8x128xbf16>
    tpu.vector_store %arg8[%712, %c0_386, %c0_387], %715 {strides = array<i32>} : memref<8x8x128xbf16, #tpu.memory_space<vmem>>, vector<1x8x128xbf16>,
    %c7_i32_388 = arith.constant 7 : i32
    %c8_i32_389 = arith.constant 8 : i32
    %716 = arith.muli %arg0, %c8_i32_389 : i32
    %717 = arith.addi %716, %c7_i32_388 : i32
    %c7_i32_390 = arith.constant 7 : i32
    %718 = arith.subi %c7_i32_390, %717 : i32
    %c7_i32_391 = arith.constant 7 : i32
    %719 = arith.subi %c7_i32_391, %c7_i32_388 : i32
    %720 = arith.index_cast %c7_i32_388 : i32 to index
    %c0_392 = arith.constant 0 : index
    %c0_393 = arith.constant 0 : index
    %721 = vector.load %arg9[%720, %c0_392, %c0_393] : memref<8x8x512xf32, #tpu.memory_space<vmem>>, vector<1x8x512xf32>
    %722 = vector.shape_cast %721 : vector<1x8x512xf32> to vector<8x512xf32>
    %c0_394 = arith.constant 0 : index
    %c0_395 = arith.constant 0 : index
    %723 = vector.load %arg11[%c0_394, %c0_395] : memref<8x128xf32, #tpu.memory_space<vmem>>, vector<8x128xf32>
    %c0_396 = arith.constant 0 : index
    %c0_397 = arith.constant 0 : index
    %724 = vector.load %arg12[%c0_396, %c0_397] : memref<8x128xf32, #tpu.memory_space<vmem>>, vector<8x128xf32>
    %725 = arith.truncf %723 : vector<8x128xf32> to vector<8x128xbf16>
    %cst_398 = arith.constant dense<0.000000e+00> : vector<8x512xf32>
    %726 = tpu.matmul %725, %27, %cst_398 {dimension_numbers = #tpu.dot_dimension_numbers<[1], [0], [0], [1], [0, 0, 1, 1], [], []>} : vector<8x128xbf16>, vector<128x512xbf16>, vector<8x512xf32> -> vector<8x512xf32>
    %727 = arith.addf %722, %726 : vector<8x512xf32>
    %728 = math.tanh %727 : vector<8x512xf32>
    %729 = vector.extract_strided_slice %728 {offsets = [0, 0], sizes = [8, 128], strides = [1, 1]} : vector<8x512xf32> to vector<8x128xf32>
    %cst_399 = arith.constant 5.000000e-01 : f32
    %730 = vector.broadcast %cst_399 : f32 to vector<8x128xf32>
    %731 = arith.mulf %730, %729 : vector<8x128xf32>
    %cst_400 = arith.constant 5.000000e-01 : f32
    %732 = vector.broadcast %cst_400 : f32 to vector<8x128xf32>
    %733 = arith.addf %731, %732 : vector<8x128xf32>
    %734 = vector.extract_strided_slice %728 {offsets = [0, 128], sizes = [8, 128], strides = [1, 1]} : vector<8x512xf32> to vector<8x128xf32>
    %cst_401 = arith.constant 5.000000e-01 : f32
    %735 = vector.broadcast %cst_401 : f32 to vector<8x128xf32>
    %736 = arith.mulf %735, %734 : vector<8x128xf32>
    %cst_402 = arith.constant 5.000000e-01 : f32
    %737 = vector.broadcast %cst_402 : f32 to vector<8x128xf32>
    %738 = arith.addf %736, %737 : vector<8x128xf32>
    %739 = vector.extract_strided_slice %728 {offsets = [0, 256], sizes = [8, 128], strides = [1, 1]} : vector<8x512xf32> to vector<8x128xf32>
    %740 = vector.extract_strided_slice %728 {offsets = [0, 384], sizes = [8, 128], strides = [1, 1]} : vector<8x512xf32> to vector<8x128xf32>
    %cst_403 = arith.constant 5.000000e-01 : f32
    %741 = vector.broadcast %cst_403 : f32 to vector<8x128xf32>
    %742 = arith.mulf %741, %740 : vector<8x128xf32>
    %cst_404 = arith.constant 5.000000e-01 : f32
    %743 = vector.broadcast %cst_404 : f32 to vector<8x128xf32>
    %744 = arith.addf %742, %743 : vector<8x128xf32>
    %745 = arith.mulf %738, %724 : vector<8x128xf32>
    %746 = arith.mulf %733, %739 : vector<8x128xf32>
    %747 = arith.addf %745, %746 : vector<8x128xf32>
    %748 = math.tanh %747 : vector<8x128xf32>
    %749 = arith.mulf %744, %748 : vector<8x128xf32>
    %750 = arith.index_cast %719 : i32 to index
    %c0_405 = arith.constant 0 : index
    %c0_406 = arith.constant 0 : index
    %751 = vector.load %arg10[%750, %c0_405, %c0_406] : memref<8x8x512xf32, #tpu.memory_space<vmem>>, vector<1x8x512xf32>
    %752 = vector.shape_cast %751 : vector<1x8x512xf32> to vector<8x512xf32>
    %c0_407 = arith.constant 0 : index
    %c0_408 = arith.constant 0 : index
    %753 = vector.load %arg13[%c0_407, %c0_408] : memref<8x128xf32, #tpu.memory_space<vmem>>, vector<8x128xf32>
    %c0_409 = arith.constant 0 : index
    %c0_410 = arith.constant 0 : index
    %754 = vector.load %arg14[%c0_409, %c0_410] : memref<8x128xf32, #tpu.memory_space<vmem>>, vector<8x128xf32>
    %755 = arith.truncf %753 : vector<8x128xf32> to vector<8x128xbf16>
    %cst_411 = arith.constant dense<0.000000e+00> : vector<8x512xf32>
    %756 = tpu.matmul %755, %29, %cst_411 {dimension_numbers = #tpu.dot_dimension_numbers<[1], [0], [0], [1], [0, 0, 1, 1], [], []>} : vector<8x128xbf16>, vector<128x512xbf16>, vector<8x512xf32> -> vector<8x512xf32>
    %757 = arith.addf %752, %756 : vector<8x512xf32>
    %758 = math.tanh %757 : vector<8x512xf32>
    %759 = vector.extract_strided_slice %758 {offsets = [0, 0], sizes = [8, 128], strides = [1, 1]} : vector<8x512xf32> to vector<8x128xf32>
    %cst_412 = arith.constant 5.000000e-01 : f32
    %760 = vector.broadcast %cst_412 : f32 to vector<8x128xf32>
    %761 = arith.mulf %760, %759 : vector<8x128xf32>
    %cst_413 = arith.constant 5.000000e-01 : f32
    %762 = vector.broadcast %cst_413 : f32 to vector<8x128xf32>
    %763 = arith.addf %761, %762 : vector<8x128xf32>
    %764 = vector.extract_strided_slice %758 {offsets = [0, 128], sizes = [8, 128], strides = [1, 1]} : vector<8x512xf32> to vector<8x128xf32>
    %cst_414 = arith.constant 5.000000e-01 : f32
    %765 = vector.broadcast %cst_414 : f32 to vector<8x128xf32>
    %766 = arith.mulf %765, %764 : vector<8x128xf32>
    %cst_415 = arith.constant 5.000000e-01 : f32
    %767 = vector.broadcast %cst_415 : f32 to vector<8x128xf32>
    %768 = arith.addf %766, %767 : vector<8x128xf32>
    %769 = vector.extract_strided_slice %758 {offsets = [0, 256], sizes = [8, 128], strides = [1, 1]} : vector<8x512xf32> to vector<8x128xf32>
    %770 = vector.extract_strided_slice %758 {offsets = [0, 384], sizes = [8, 128], strides = [1, 1]} : vector<8x512xf32> to vector<8x128xf32>
    %cst_416 = arith.constant 5.000000e-01 : f32
    %771 = vector.broadcast %cst_416 : f32 to vector<8x128xf32>
    %772 = arith.mulf %771, %770 : vector<8x128xf32>
    %cst_417 = arith.constant 5.000000e-01 : f32
    %773 = vector.broadcast %cst_417 : f32 to vector<8x128xf32>
    %774 = arith.addf %772, %773 : vector<8x128xf32>
    %775 = arith.mulf %768, %754 : vector<8x128xf32>
    %776 = arith.mulf %763, %769 : vector<8x128xf32>
    %777 = arith.addf %775, %776 : vector<8x128xf32>
    %778 = math.tanh %777 : vector<8x128xf32>
    %779 = arith.mulf %774, %778 : vector<8x128xf32>
    %780 = vector.broadcast %717 : i32 to vector<8x1xi32>
    %781 = arith.cmpi slt, %780, %3 : vector<8x1xi32>
    %782 = vector.shape_cast %781 : vector<8x1xi1> to vector<8x1xi1>
    %783 = vector.broadcast %782 : vector<8x1xi1> to vector<8x128xi1>
    %784 = vector.broadcast %718 : i32 to vector<8x1xi32>
    %785 = arith.cmpi slt, %784, %3 : vector<8x1xi32>
    %786 = vector.shape_cast %785 : vector<8x1xi1> to vector<8x1xi1>
    %787 = vector.broadcast %786 : vector<8x1xi1> to vector<8x128xi1>
    %c0_418 = arith.constant 0 : index
    %c0_419 = arith.constant 0 : index
    %788 = vector.load %arg11[%c0_418, %c0_419] : memref<8x128xf32, #tpu.memory_space<vmem>>, vector<8x128xf32>
    %789 = arith.select %783, %749, %788 : vector<8x128xi1>, vector<8x128xf32>
    %c0_420 = arith.constant 0 : index
    %c0_421 = arith.constant 0 : index
    %790 = vector.load %arg11[%c0_420, %c0_421] : memref<8x128xf32, #tpu.memory_space<vmem>>, vector<8x128xf32>
    tpu.vector_store %arg11[%c0_420, %c0_421], %789 {strides = array<i32>} : memref<8x128xf32, #tpu.memory_space<vmem>>, vector<8x128xf32>,
    %c0_422 = arith.constant 0 : index
    %c0_423 = arith.constant 0 : index
    %791 = vector.load %arg12[%c0_422, %c0_423] : memref<8x128xf32, #tpu.memory_space<vmem>>, vector<8x128xf32>
    %792 = arith.select %783, %747, %791 : vector<8x128xi1>, vector<8x128xf32>
    %c0_424 = arith.constant 0 : index
    %c0_425 = arith.constant 0 : index
    %793 = vector.load %arg12[%c0_424, %c0_425] : memref<8x128xf32, #tpu.memory_space<vmem>>, vector<8x128xf32>
    tpu.vector_store %arg12[%c0_424, %c0_425], %792 {strides = array<i32>} : memref<8x128xf32, #tpu.memory_space<vmem>>, vector<8x128xf32>,
    %c0_426 = arith.constant 0 : index
    %c0_427 = arith.constant 0 : index
    %794 = vector.load %arg13[%c0_426, %c0_427] : memref<8x128xf32, #tpu.memory_space<vmem>>, vector<8x128xf32>
    %795 = arith.select %787, %779, %794 : vector<8x128xi1>, vector<8x128xf32>
    %c0_428 = arith.constant 0 : index
    %c0_429 = arith.constant 0 : index
    %796 = vector.load %arg13[%c0_428, %c0_429] : memref<8x128xf32, #tpu.memory_space<vmem>>, vector<8x128xf32>
    tpu.vector_store %arg13[%c0_428, %c0_429], %795 {strides = array<i32>} : memref<8x128xf32, #tpu.memory_space<vmem>>, vector<8x128xf32>,
    %c0_430 = arith.constant 0 : index
    %c0_431 = arith.constant 0 : index
    %797 = vector.load %arg14[%c0_430, %c0_431] : memref<8x128xf32, #tpu.memory_space<vmem>>, vector<8x128xf32>
    %798 = arith.select %787, %777, %797 : vector<8x128xi1>, vector<8x128xf32>
    %c0_432 = arith.constant 0 : index
    %c0_433 = arith.constant 0 : index
    %799 = vector.load %arg14[%c0_432, %c0_433] : memref<8x128xf32, #tpu.memory_space<vmem>>, vector<8x128xf32>
    tpu.vector_store %arg14[%c0_432, %c0_433], %798 {strides = array<i32>} : memref<8x128xf32, #tpu.memory_space<vmem>>, vector<8x128xf32>,
    %cst_434 = arith.constant 0.000000e+00 : f32
    %800 = vector.broadcast %cst_434 : f32 to vector<8x128xf32>
    %801 = arith.select %783, %749, %800 : vector<8x128xi1>, vector<8x128xf32>
    %802 = arith.truncf %801 : vector<8x128xf32> to vector<8x128xbf16>
    %803 = arith.index_cast %c7_i32_388 : i32 to index
    %c0_435 = arith.constant 0 : index
    %c0_436 = arith.constant 0 : index
    %804 = vector.load %arg7[%803, %c0_435, %c0_436] : memref<8x8x128xbf16, #tpu.memory_space<vmem>>, vector<1x8x128xbf16>
    %805 = vector.shape_cast %804 : vector<1x8x128xbf16> to vector<8x128xbf16>
    %806 = vector.shape_cast %802 : vector<8x128xbf16> to vector<1x8x128xbf16>
    tpu.vector_store %arg7[%803, %c0_435, %c0_436], %806 {strides = array<i32>} : memref<8x8x128xbf16, #tpu.memory_space<vmem>>, vector<1x8x128xbf16>,
    %cst_437 = arith.constant 0.000000e+00 : f32
    %807 = vector.broadcast %cst_437 : f32 to vector<8x128xf32>
    %808 = arith.select %787, %779, %807 : vector<8x128xi1>, vector<8x128xf32>
    %809 = arith.truncf %808 : vector<8x128xf32> to vector<8x128xbf16>
    %810 = arith.index_cast %719 : i32 to index
    %c0_438 = arith.constant 0 : index
    %c0_439 = arith.constant 0 : index
    %811 = vector.load %arg8[%810, %c0_438, %c0_439] : memref<8x8x128xbf16, #tpu.memory_space<vmem>>, vector<1x8x128xbf16>
    %812 = vector.shape_cast %811 : vector<1x8x128xbf16> to vector<8x128xbf16>
    %813 = vector.shape_cast %809 : vector<8x128xbf16> to vector<1x8x128xbf16>
    tpu.vector_store %arg8[%810, %c0_438, %c0_439], %813 {strides = array<i32>} : memref<8x8x128xbf16, #tpu.memory_space<vmem>>, vector<1x8x128xbf16>,
    %c8_i32_440 = arith.constant 8 : i32
    return
  }
  func.func @transform_0(%arg0: i32) -> (i32, i32, i32) {
    %c0_i32 = arith.constant 0 : i32
    %c0_i32_0 = arith.constant 0 : i32
    %c0_i32_1 = arith.constant 0 : i32
    return %arg0, %c0_i32, %c0_i32_0 : i32, i32, i32
  }
  func.func @transform_1(%arg0: i32) -> (i32, i32, i32) {
    %c0_i32 = arith.constant 0 : i32
    %0 = arith.subi %c0_i32, %arg0 : i32
    %c0_i32_0 = arith.constant 0 : i32
    %c0_i32_1 = arith.constant 0 : i32
    %c0_i32_2 = arith.constant 0 : i32
    return %0, %c0_i32_0, %c0_i32_1 : i32, i32, i32
  }
  func.func @transform_2(%arg0: i32) -> (i32, i32, i32) {
    %c0_i32 = arith.constant 0 : i32
    %c0_i32_0 = arith.constant 0 : i32
    %c0_i32_1 = arith.constant 0 : i32
    %c0_i32_2 = arith.constant 0 : i32
    return %c0_i32, %c0_i32_0, %c0_i32_1 : i32, i32, i32
  }
  func.func @transform_3(%arg0: i32) -> (i32, i32, i32) {
    %c0_i32 = arith.constant 0 : i32
    %c0_i32_0 = arith.constant 0 : i32
    %c0_i32_1 = arith.constant 0 : i32
    %c0_i32_2 = arith.constant 0 : i32
    return %c0_i32, %c0_i32_0, %c0_i32_1 : i32, i32, i32
  }
  func.func @transform_4(%arg0: i32) -> (i32, i32, i32) {
    %c0_i32 = arith.constant 0 : i32
    %c0_i32_0 = arith.constant 0 : i32
    %c0_i32_1 = arith.constant 0 : i32
    %c0_i32_2 = arith.constant 0 : i32
    return %c0_i32, %c0_i32_0, %c0_i32_1 : i32, i32, i32
  }
  func.func @transform_5(%arg0: i32) -> (i32, i32) {
    %c0_i32 = arith.constant 0 : i32
    %c0_i32_0 = arith.constant 0 : i32
    %c0_i32_1 = arith.constant 0 : i32
    return %c0_i32, %c0_i32_0 : i32, i32
  }
  func.func @transform_6(%arg0: i32) -> (i32, i32, i32) {
    %c0_i32 = arith.constant 0 : i32
    %c0_i32_0 = arith.constant 0 : i32
    %c0_i32_1 = arith.constant 0 : i32
    return %arg0, %c0_i32, %c0_i32_0 : i32, i32, i32
  }
  func.func @transform_7(%arg0: i32) -> (i32, i32, i32) {
    %c0_i32 = arith.constant 0 : i32
    %0 = arith.subi %c0_i32, %arg0 : i32
    %c0_i32_0 = arith.constant 0 : i32
    %c0_i32_1 = arith.constant 0 : i32
    %c0_i32_2 = arith.constant 0 : i32
    return %0, %c0_i32_0, %c0_i32_1 : i32, i32, i32
  }
}

</mosaic_0001>

<llo_original>
// kernel: tpu_custom_call.1
$region0: #{tpu_custom_call.1}
  #allocation0 [shape = 'u32[]', space=smem, size = 0x4, offset = 0x4, fixed_abs, tag = 'smem constant byte address 0x4 - core index']
  #allocation1 [shape = 'u32[144,128]{1,0:T(1,128)}', space=vmem, size = 0x12000, scoped, tag = 'internal scratch']
  #allocation2 [shape = 'f32[8,8,512]{2,1,0:T(8,128)}', space=vmem, size = 0x20000, scoped, tag = 'scratch operand']
  #allocation3 [shape = 'f32[8,8,512]{2,1,0:T(8,128)}', space=vmem, size = 0x20000, scoped, tag = 'scratch operand']
  #allocation4 [shape = 'f32[8,128]{1,0:T(8,128)}', space=vmem, size = 0x1000, scoped, tag = 'scratch operand']
  #allocation5 [shape = 'f32[8,128]{1,0:T(8,128)}', space=vmem, size = 0x1000, scoped, tag = 'scratch operand']
  #allocation6 [shape = 'f32[8,128]{1,0:T(8,128)}', space=vmem, size = 0x1000, scoped, tag = 'scratch operand']
  #allocation7 [shape = 'f32[8,128]{1,0:T(8,128)}', space=vmem, size = 0x1000, scoped, tag = 'scratch operand']
  %s0 = inlined_call_operand.hbm [shape: bf16[8,8,32], index: 0, kind: input, shape index: {}]
  %s1 = inlined_call_operand.hbm [shape: bf16[8,8,32], index: 1, kind: input, shape index: {}]
  %s2 = inlined_call_operand.hbm [shape: bf16[2,32,512], index: 2, kind: input, shape index: {}]
  %s3 = inlined_call_operand.hbm [shape: bf16[2,128,512], index: 3, kind: input, shape index: {}]
  %s4 = inlined_call_operand.vmem [shape: f32[2,1,512], index: 4, kind: input, shape index: {}]
  %s5 = inlined_call_operand.vmem [shape: s32[8,1], index: 5, kind: input, shape index: {}]
  %s6 = inlined_call_operand.hbm [shape: bf16[8,8,128], index: 6, kind: output, shape index: {0}]
  %s7 = inlined_call_operand.hbm [shape: bf16[8,8,128], index: 7, kind: output, shape index: {1}]
  %8 = xla_tuple %s6, %s7
  %s9 = sld [smem:[#allocation0]]
  $region62: #{tpu_custom_call.1} parent=0
    _
  %s11 = ssub.s32 1, %s9
  %s12 = scalar_select 0, %s11, %s9
  $region1: #{tpu_custom_call.1} parent=0
    #allocation8 [shape = 'u8[16384]{0}', space=vmem, size = 0x4000, scoped, tag = 'input window, operand 0, single buffered']
    #allocation9 [shape = 's32[1]{0}', space=sflag, size = 0x4, scoped, tag = 'scoped memory for tpu_custom_call.1']
    #allocation10 [shape = 's32[1]{0}', space=sflag, size = 0x4, scoped, tag = 'scoped memory for tpu_custom_call.1']
    #allocation11 [shape = 'u8[16384]{0}', space=vmem, size = 0x4000, scoped, tag = 'input window, operand 1, single buffered']
    #allocation12 [shape = 's32[1]{0}', space=sflag, size = 0x4, scoped, tag = 'scoped memory for tpu_custom_call.1']
    #allocation13 [shape = 'u8[65536]{0}', space=vmem, size = 0x10000, scoped, tag = 'input window, operand 2, single buffered']
    #allocation14 [shape = 'u8[262144]{0}', space=vmem, size = 0x40000, scoped, tag = 'input window, operand 3, single buffered']
    #allocation15 [shape = 's32[1]{0}', space=sflag, size = 0x4, scoped, tag = 'scoped memory for tpu_custom_call.1']
    #allocation16 [shape = 'u8[16384]{0}', space=vmem, size = 0x4000, scoped, tag = 'output window, operand 0, single buffered']
    #allocation17 [shape = 'u8[16384]{0}', space=vmem, size = 0x4000, scoped, tag = 'output window, operand 1, single buffered']
    #allocation18 [shape = 's32[1]{0}', space=sflag, size = 0x4, scoped, tag = 'scoped memory for tpu_custom_call.1']
    %13 = vsyncpa [#allocation9], 0
    %14 = vsyncpa [#allocation12], 0
    %15 = vsyncpa [#allocation15], 0
    %16 = vsyncpa [#allocation10], 0
    %17 = vsyncpa [#allocation18], 0
    // Predicated region
    $region2: #{tpu_custom_call.1} parent=1 // pred_check
      _
    $region3: #{tpu_custom_call.1} parent=1 // pred_check_branch
      %19 = sbr.rel (0) target = $region5
    $region4: #{tpu_custom_call.1} parent=1 // pred_region
      %s21 = ssub.s32 512, 512
      %22 = vsyncadd [#allocation9], %s21
      %s23 = sshll.u32 [#allocation8], 4
      %s24 = int_to_ptr.vmem [resolvable:$true] %s23
      %29 = dma.hbm_to_vmem [thread:$0]  %s0, 512, %s24, [#allocation9], 64, 64, 4
    $region5: #{tpu_custom_call.1} parent=1 // pred_fallthru
      _
    // Predicated region
    $region6: #{tpu_custom_call.1} parent=1 // pred_check
      _
    $region7: #{tpu_custom_call.1} parent=1 // pred_check_branch
      %31 = sbr.rel (0) target = $region9
    $region8: #{tpu_custom_call.1} parent=1 // pred_region
      %s32 = ssub.s32 0, 0
      %s33 = smul.u32 8, %s32
      %s35 = ssub.s32 512, 512
      %36 = vsyncadd [#allocation12], %s35
      %s37 = smul.addr %s33, 64
      %s38 = scalar_lea.hbm %s1, %s37
      %s39 = sshll.u32 [#allocation11], 4
      %s40 = int_to_ptr.vmem [resolvable:$true] %s39
      %45 = dma.hbm_to_vmem [thread:$0]  %s38, 512, %s40, [#allocation12], 64, 64, 4
    $region9: #{tpu_custom_call.1} parent=1 // pred_fallthru
      _
    // Predicated region
    $region10: #{tpu_custom_call.1} parent=1 // pred_check
      _
    $region11: #{tpu_custom_call.1} parent=1 // pred_check_branch
      %47 = sbr.rel (0) target = $region13
    $region12: #{tpu_custom_call.1} parent=1 // pred_region
      %s49 = ssub.s32 2048, 2048
      %50 = vsyncadd [#allocation12], %s49
      %s51 = sshll.u32 [#allocation13], 4
      %s52 = int_to_ptr.vmem [resolvable:$true] %s51
      %57 = dma.hbm_to_vmem [thread:$0]  %s2, 2048, %s52, [#allocation12], 256, 256, 16
    $region13: #{tpu_custom_call.1} parent=1 // pred_fallthru
      _
    // Predicated region
    $region14: #{tpu_custom_call.1} parent=1 // pred_check
      _
    $region15: #{tpu_custom_call.1} parent=1 // pred_check_branch
      %59 = sbr.rel (0) target = $region17
    $region16: #{tpu_custom_call.1} parent=1 // pred_region
      %s61 = ssub.s32 8192, 8192
      %62 = vsyncadd [#allocation15], %s61
      %s63 = sshll.u32 [#allocation14], 4
      %s64 = int_to_ptr.vmem [resolvable:$true] %s63
      %69 = dma.hbm_to_vmem [thread:$0]  %s3, 8192, %s64, [#allocation15], 256, 256, 16
    $region17: #{tpu_custom_call.1} parent=1 // pred_fallthru
      _
    // Predicated region
    $region18: #{tpu_custom_call.1} parent=1 // pred_check
      _
    $region19: #{tpu_custom_call.1} parent=1 // pred_check_branch
      %71 = sbr.rel (0) target = $region21
    $region20: #{tpu_custom_call.1} parent=1 // pred_region
      _
    $region21: #{tpu_custom_call.1} parent=1 // pred_fallthru
      _
    // Predicated region
    $region22: #{tpu_custom_call.1} parent=1 // pred_check
      _
    $region23: #{tpu_custom_call.1} parent=1 // pred_check_branch
      %73 = sbr.rel (0) target = $region25
    $region24: #{tpu_custom_call.1} parent=1 // pred_region
      _
    $region25: #{tpu_custom_call.1} parent=1 // pred_fallthru
      _
    // Predicated region
    $region26: #{tpu_custom_call.1} parent=1 // pred_check
      _
    $region27: #{tpu_custom_call.1} parent=1 // pred_check_branch
      %75 = sbr.rel (0) target = $region29
    $region28: #{tpu_custom_call.1} parent=1 // pred_region
      %76 = dma.done [#allocation9], 512
    $region29: #{tpu_custom_call.1} parent=1 // pred_fallthru
      _
    // Predicated region
    $region30: #{tpu_custom_call.1} parent=1 // pred_check
      _
    $region31: #{tpu_custom_call.1} parent=1 // pred_check_branch
      %78 = sbr.rel (0) target = $region33
    $region32: #{tpu_custom_call.1} parent=1 // pred_region
      %79 = dma.done [#allocation12], 512
    $region33: #{tpu_custom_call.1} parent=1 // pred_fallthru
      _
    // Predicated region
    $region34: #{tpu_custom_call.1} parent=1 // pred_check
      _
    $region35: #{tpu_custom_call.1} parent=1 // pred_check_branch
      %81 = sbr.rel (0) target = $region37
    $region36: #{tpu_custom_call.1} parent=1 // pred_region
      %82 = dma.done [#allocation12], 2048
    $region37: #{tpu_custom_call.1} parent=1 // pred_fallthru
      _
    // Predicated region
    $region38: #{tpu_custom_call.1} parent=1 // pred_check
      _
    $region39: #{tpu_custom_call.1} parent=1 // pred_check_branch
      %84 = sbr.rel (0) target = $region41
    $region40: #{tpu_custom_call.1} parent=1 // pred_region
      %85 = dma.done [#allocation15], 8192
    $region41: #{tpu_custom_call.1} parent=1 // pred_fallthru
      _
    %s86 = ssub.s32 0, 0
    %s87 = smul.u32 8, %s86
    %s88 = ssub.s32 0, 0
    %s89 = smul.u32 8, %s88
    %p91 = scmp.eq.s32.totalorder 0, 0
    // Predicated region
    $region42: #{tpu_custom_call.1} parent=1 // pred_check
      %p92 = pneg %p91
    $region43: #{tpu_custom_call.1} parent=1 // pred_check_branch
      %94 = sbr.rel (%p92) target = $region45
    $region44: #{tpu_custom_call.1} parent=1 // pred_region
      %95 = vst [vmem:[#allocation4] sm:$0xff] 0.0
      %96 = vst [vmem:[#allocation5] sm:$0xff] 0.0
      %97 = vst [vmem:[#allocation6] sm:$0xff] 0.0
      %98 = vst [vmem:[#allocation7] sm:$0xff] 0.0
    $region45: #{tpu_custom_call.1} parent=1 // pred_fallthru
      _
    %v99 = vld [vmem:[%s5] sm:$0xff]
    %v100 = vld [vmem:[#allocation8] sm:$0xf]
    %v101 = vld [vmem:[#allocation8 + $0x4] sm:$0xf]
    %v102 = vld [vmem:[#allocation8 + $0x8] sm:$0xf]
    %v103 = vld [vmem:[#allocation8 + $0xc] sm:$0xf]
    %v104 = vld [vmem:[#allocation8 + $0x10] sm:$0xf]
    %v105 = vld [vmem:[#allocation8 + $0x14] sm:$0xf]
    %v106 = vld [vmem:[#allocation8 + $0x18] sm:$0xf]
    %v107 = vld [vmem:[#allocation8 + $0x1c] sm:$0xf]
    %v108 = vld [vmem:[#allocation11] sm:$0xf]
    %v109 = vld [vmem:[#allocation11 + $0x4] sm:$0xf]
    %v110 = vld [vmem:[#allocation11 + $0x8] sm:$0xf]
    %v111 = vld [vmem:[#allocation11 + $0xc] sm:$0xf]
    %v112 = vld [vmem:[#allocation11 + $0x10] sm:$0xf]
    %v113 = vld [vmem:[#allocation11 + $0x14] sm:$0xf]
    %v114 = vld [vmem:[#allocation11 + $0x18] sm:$0xf]
    %v115 = vld [vmem:[#allocation11 + $0x1c] sm:$0xf]
    %v116 = vld [vmem:[#allocation13] sm:$0xff]
    %v117 = vld [vmem:[#allocation13 + $0x8] sm:$0xff]
    %v118 = vld [vmem:[#allocation13 + $0x10] sm:$0xff]
    %v119 = vld [vmem:[#allocation13 + $0x18] sm:$0xff]
    %v120 = vld [vmem:[#allocation13 + $0x20] sm:$0xff]
    %v121 = vld [vmem:[#allocation13 + $0x28] sm:$0xff]
    %v122 = vld [vmem:[#allocation13 + $0x30] sm:$0xff]
    %v123 = vld [vmem:[#allocation13 + $0x38] sm:$0xff]
    %v124 = vld [vmem:[%s4] sm:$0xf]
    %v126 = vlaneseq
    %v127 = vshrl.u32 %v126, 7
    %v128 = vsub.s32 0, %v127
    %v129 = vrot.slane %v124, %v128
    %v130 = vlaneseq
    %v131 = vshrl.u32 %v130, 7
    %v132 = vsub.s32 1, %v131
    %v133 = vrot.slane %v124, %v132
    %v134 = vlaneseq
    %v135 = vshrl.u32 %v134, 7
    %v136 = vsub.s32 2, %v135
    %v137 = vrot.slane %v124, %v136
    %v138 = vlaneseq
    %v139 = vshrl.u32 %v138, 7
    %v140 = vsub.s32 3, %v139
    %v141 = vrot.slane %v124, %v140
    %v154 = vunpack.c.l.b16 %v100
    %v155 = vunpack.c.l.b16 %v101
    %v156 = vunpack.c.l.b16 %v102
    %v157 = vunpack.c.l.b16 %v103
    %v158 = vunpack.c.l.b16 %v104
    %v159 = vunpack.c.l.b16 %v105
    %v160 = vunpack.c.l.b16 %v106
    %v161 = vunpack.c.l.b16 %v107
    %v162 = vpack.c.b16 %v155, %v154
    %v163 = vpack.c.b16 %v157, %v156
    %v164 = vpack.c.b16 %v159, %v158
    %v165 = vpack.c.b16 %v161, %v160
    %v174 = vunpack.c.l.b16 %v116
    %v175 = vunpack.c.h.b16 %v116
    %v176 = vunpack.c.l.b16 %v117
    %v177 = vunpack.c.h.b16 %v117
    %v178 = vunpack.c.l.b16 %v118
    %v179 = vunpack.c.h.b16 %v118
    %v180 = vunpack.c.l.b16 %v119
    %v181 = vunpack.c.h.b16 %v119
    %v182 = vunpack.c.l.b16 %v120
    %v183 = vunpack.c.h.b16 %v120
    %v184 = vunpack.c.l.b16 %v121
    %v185 = vunpack.c.h.b16 %v121
    %v186 = vunpack.c.l.b16 %v122
    %v187 = vunpack.c.h.b16 %v122
    %v188 = vunpack.c.l.b16 %v123
    %v189 = vunpack.c.h.b16 %v123
    %v190 = vpack.c.b16 %v178, %v174
    %v191 = vpack.c.b16 %v179, %v175
    %v192 = vpack.c.b16 %v180, %v176
    %v193 = vpack.c.b16 %v181, %v177
    %v194 = vpack.c.b16 %v186, %v182
    %v195 = vpack.c.b16 %v187, %v183
    %v196 = vpack.c.b16 %v188, %v184
    %v197 = vpack.c.b16 %v189, %v185
    %vm206 = vcmask 261120
    %v208 = vsel %vm206, %v162, 0
    %v211 = vsel %vm206, %v163, 0
    %v214 = vsel %vm206, %v164, 0
    %v217 = vsel %vm206, %v165, 0
    %219 = vmatprep.subr.bf16.mxu0 %v191
    %220 = vmatpush1.bf16.msra.mxu0 %v190
    %221 = vmatprep.subr.bf16.mxu0 %v195
    %222 = vmatpush1.bf16.msra.mxu0 %v194
    %223 = vmatprep.subr.bf16.mxu0 0
    %224 = vmatpush1.bf16.msra.mxu0 0
    %225 = vmatprep.subr.bf16.mxu0 0
    %226 = vmatpush1.bf16.msra.mxu0 0
    %227 = vmatprep.subr.bf16.mxu0 0
    %228 = vmatpush1.bf16.msra.mxu0 0
    %229 = vmatprep.subr.bf16.mxu0 0
    %230 = vmatpush1.bf16.msra.mxu0 0
    %231 = vmatprep.subr.bf16.mxu0 0
    %232 = vmatpush1.bf16.msra.mxu0 0
    %233 = vmatprep.subr.bf16.mxu0 0
    %234 = vmatpush1.bf16.msra.mxu0 0
    %235 = vmatprep.subr.bf16.mxu0 0
    %236 = vmatpush1.bf16.msra.mxu0 0
    %237 = vmatprep.subr.bf16.mxu0 0
    %238 = vmatpush1.bf16.msra.mxu0 0
    %239 = vmatprep.subr.bf16.mxu0 0
    %240 = vmatpush1.bf16.msra.mxu0 0
    %241 = vmatprep.subr.bf16.mxu0 0
    %242 = vmatpush1.bf16.msra.mxu0 0
    %243 = vmatprep.subr.bf16.mxu0 0
    %244 = vmatpush1.bf16.msra.mxu0 0
    %245 = vmatprep.subr.bf16.mxu0 0
    %246 = vmatpush1.bf16.msra.mxu0 0
    %247 = vmatprep.subr.bf16.mxu0 0
    %248 = vmatpush1.bf16.msra.mxu0 0
    %249 = vmatprep.subr.bf16.mxu0 0
    %250 = vmatpush1.bf16.msra.mxu0 0
    %251 = vmatprep.mubr.bf16.mxu0 0
    %252 = vmatmul.mubr.bf16.gmra.mrb[0].mxu0 %v208
    %v253 = vpop.f32.mrb[0].mxu0
    %v254 = vadd.f32 %v129, %v253
    %v255 = vpop.f32.mrb[0].mxu0
    %v256 = vadd.f32 %v133, %v255
    %v257 = vpop.f32.mrb[0].mxu0
    %v258 = vadd.f32 %v129, %v257
    %v259 = vpop.f32.mrb[0].mxu0
    %v260 = vadd.f32 %v133, %v259
    %261 = vmatprep.mubr.bf16.mxu0 0
    %262 = vmatmul.mubr.bf16.gmra.mrb[0].mxu0 %v211
    %v263 = vpop.f32.mrb[0].mxu0
    %v264 = vadd.f32 %v129, %v263
    %v265 = vpop.f32.mrb[0].mxu0
    %v266 = vadd.f32 %v133, %v265
    %v267 = vpop.f32.mrb[0].mxu0
    %v268 = vadd.f32 %v129, %v267
    %v269 = vpop.f32.mrb[0].mxu0
    %v270 = vadd.f32 %v133, %v269
    %271 = vmatprep.mubr.bf16.mxu0 0
    %272 = vmatmul.mubr.bf16.gmra.mrb[0].mxu0 %v214
    %v273 = vpop.f32.mrb[0].mxu0
    %v274 = vadd.f32 %v129, %v273
    %v275 = vpop.f32.mrb[0].mxu0
    %v276 = vadd.f32 %v133, %v275
    %v277 = vpop.f32.mrb[0].mxu0
    %v278 = vadd.f32 %v129, %v277
    %v279 = vpop.f32.mrb[0].mxu0
    %v280 = vadd.f32 %v133, %v279
    %281 = vmatprep.mubr.bf16.mxu0 0
    %282 = vmatmul.mubr.bf16.gmra.mrb[0].mxu0 %v217
    %v283 = vpop.f32.mrb[0].mxu0
    %v284 = vadd.f32 %v129, %v283
    %v285 = vpop.f32.mrb[0].mxu0
    %v286 = vadd.f32 %v133, %v285
    %v287 = vpop.f32.mrb[0].mxu0
    %v288 = vadd.f32 %v129, %v287
    %v289 = vpop.f32.mrb[0].mxu0
    %v290 = vadd.f32 %v133, %v289
    %291 = vdwg.mxu0
    %292 = vmatprep.subr.bf16.mxu0 %v193
    %293 = vmatpush1.bf16.msra.mxu0 %v192
    %294 = vmatprep.subr.bf16.mxu0 %v197
    %295 = vmatpush1.bf16.msra.mxu0 %v196
    %296 = vmatprep.subr.bf16.mxu0 0
    %297 = vmatpush1.bf16.msra.mxu0 0
    %298 = vmatprep.subr.bf16.mxu0 0
    %299 = vmatpush1.bf16.msra.mxu0 0
    %300 = vmatprep.subr.bf16.mxu0 0
    %301 = vmatpush1.bf16.msra.mxu0 0
    %302 = vmatprep.subr.bf16.mxu0 0
    %303 = vmatpush1.bf16.msra.mxu0 0
    %304 = vmatprep.subr.bf16.mxu0 0
    %305 = vmatpush1.bf16.msra.mxu0 0
    %306 = vmatprep.subr.bf16.mxu0 0
    %307 = vmatpush1.bf16.msra.mxu0 0
    %308 = vmatprep.subr.bf16.mxu0 0
    %309 = vmatpush1.bf16.msra.mxu0 0
    %310 = vmatprep.subr.bf16.mxu0 0
    %311 = vmatpush1.bf16.msra.mxu0 0
    %312 = vmatprep.subr.bf16.mxu0 0
    %313 = vmatpush1.bf16.msra.mxu0 0
    %314 = vmatprep.subr.bf16.mxu0 0
    %315 = vmatpush1.bf16.msra.mxu0 0
    %316 = vmatprep.subr.bf16.mxu0 0
    %317 = vmatpush1.bf16.msra.mxu0 0
    %318 = vmatprep.subr.bf16.mxu0 0
    %319 = vmatpush1.bf16.msra.mxu0 0
    %320 = vmatprep.subr.bf16.mxu0 0
    %321 = vmatpush1.bf16.msra.mxu0 0
    %322 = vmatprep.subr.bf16.mxu0 0
    %323 = vmatpush1.bf16.msra.mxu0 0
    %324 = vmatprep.mubr.bf16.mxu0 0
    %325 = vmatmul.mubr.bf16.gmra.mrb[0].mxu0 %v208
    %v326 = vpop.f32.mrb[0].mxu0
    %v327 = vadd.f32 %v137, %v326
    %v328 = vpop.f32.mrb[0].mxu0
    %v329 = vadd.f32 %v141, %v328
    %v330 = vpop.f32.mrb[0].mxu0
    %v331 = vadd.f32 %v137, %v330
    %v332 = vpop.f32.mrb[0].mxu0
    %v333 = vadd.f32 %v141, %v332
    %334 = vmatprep.mubr.bf16.mxu0 0
    %335 = vmatmul.mubr.bf16.gmra.mrb[0].mxu0 %v211
    %v336 = vpop.f32.mrb[0].mxu0
    %v337 = vadd.f32 %v137, %v336
    %v338 = vpop.f32.mrb[0].mxu0
    %v339 = vadd.f32 %v141, %v338
    %v340 = vpop.f32.mrb[0].mxu0
    %v341 = vadd.f32 %v137, %v340
    %v342 = vpop.f32.mrb[0].mxu0
    %v343 = vadd.f32 %v141, %v342
    %344 = vmatprep.mubr.bf16.mxu0 0
    %345 = vmatmul.mubr.bf16.gmra.mrb[0].mxu0 %v214
    %v346 = vpop.f32.mrb[0].mxu0
    %v347 = vadd.f32 %v137, %v346
    %v348 = vpop.f32.mrb[0].mxu0
    %v349 = vadd.f32 %v141, %v348
    %v350 = vpop.f32.mrb[0].mxu0
    %v351 = vadd.f32 %v137, %v350
    %v352 = vpop.f32.mrb[0].mxu0
    %v353 = vadd.f32 %v141, %v352
    %354 = vmatprep.mubr.bf16.mxu0 0
    %355 = vmatmul.mubr.bf16.gmra.mrb[0].mxu0 %v217
    %v356 = vpop.f32.mrb[0].mxu0
    %v357 = vadd.f32 %v137, %v356
    %v358 = vpop.f32.mrb[0].mxu0
    %v359 = vadd.f32 %v141, %v358
    %v360 = vpop.f32.mrb[0].mxu0
    %v361 = vadd.f32 %v137, %v360
    %v362 = vpop.f32.mrb[0].mxu0
    %v363 = vadd.f32 %v141, %v362
    %364 = vdwg.mxu0
    %365 = vst [vmem:[#allocation2] sm:$0xff] %v254
    %366 = vst [vmem:[#allocation2 + $0x8] sm:$0xff] %v256
    %367 = vst [vmem:[#allocation2 + $0x10] sm:$0xff] %v327
    %368 = vst [vmem:[#allocation2 + $0x18] sm:$0xff] %v329
    %369 = vst [vmem:[#allocation2 + $0x20] sm:$0xff] %v258
    %370 = vst [vmem:[#allocation2 + $0x28] sm:$0xff] %v260
    %371 = vst [vmem:[#allocation2 + $0x30] sm:$0xff] %v331
    %372 = vst [vmem:[#allocation2 + $0x38] sm:$0xff] %v333
    %373 = vst [vmem:[#allocation2 + $0x40] sm:$0xff] %v264
    %374 = vst [vmem:[#allocation2 + $0x48] sm:$0xff] %v266
    %375 = vst [vmem:[#allocation2 + $0x50] sm:$0xff] %v337
    %376 = vst [vmem:[#allocation2 + $0x58] sm:$0xff] %v339
    %377 = vst [vmem:[#allocation2 + $0x60] sm:$0xff] %v268
    %378 = vst [vmem:[#allocation2 + $0x68] sm:$0xff] %v270
    %379 = vst [vmem:[#allocation2 + $0x70] sm:$0xff] %v341
    %380 = vst [vmem:[#allocation2 + $0x78] sm:$0xff] %v343
    %381 = vst [vmem:[#allocation2 + $0x80] sm:$0xff] %v274
    %382 = vst [vmem:[#allocation2 + $0x88] sm:$0xff] %v276
    %383 = vst [vmem:[#allocation2 + $0x90] sm:$0xff] %v347
    %384 = vst [vmem:[#allocation2 + $0x98] sm:$0xff] %v349
    %385 = vst [vmem:[#allocation2 + $0xa0] sm:$0xff] %v278
    %386 = vst [vmem:[#allocation2 + $0xa8] sm:$0xff] %v280
    %387 = vst [vmem:[#allocation2 + $0xb0] sm:$0xff] %v351
    %388 = vst [vmem:[#allocation2 + $0xb8] sm:$0xff] %v353
    %389 = vst [vmem:[#allocation2 + $0xc0] sm:$0xff] %v284
    %390 = vst [vmem:[#allocation2 + $0xc8] sm:$0xff] %v286
    %391 = vst [vmem:[#allocation2 + $0xd0] sm:$0xff] %v357
    %392 = vst [vmem:[#allocation2 + $0xd8] sm:$0xff] %v359
    %393 = vst [vmem:[#allocation2 + $0xe0] sm:$0xff] %v288
    %394 = vst [vmem:[#allocation2 + $0xe8] sm:$0xff] %v290
    %395 = vst [vmem:[#allocation2 + $0xf0] sm:$0xff] %v361
    %396 = vst [vmem:[#allocation2 + $0xf8] sm:$0xff] %v363
    %s397 = scalar_lea.vmem [#allocation13], 64
    %v398 = vld [vmem:[%s397] sm:$0xff]
    %v399 = vld [vmem:[%s397 + $0x8] sm:$0xff]
    %v400 = vld [vmem:[%s397 + $0x10] sm:$0xff]
    %v401 = vld [vmem:[%s397 + $0x18] sm:$0xff]
    %v402 = vld [vmem:[%s397 + $0x20] sm:$0xff]
    %v403 = vld [vmem:[%s397 + $0x28] sm:$0xff]
    %v404 = vld [vmem:[%s397 + $0x30] sm:$0xff]
    %v405 = vld [vmem:[%s397 + $0x38] sm:$0xff]
    %s406 = scalar_lea.vmem %s4, 4
    %v407 = vld [vmem:[%s406] sm:$0xf]
    %v409 = vlaneseq
    %v410 = vshrl.u32 %v409, 7
    %v411 = vsub.s32 0, %v410
    %v412 = vrot.slane %v407, %v411
    %v413 = vlaneseq
    %v414 = vshrl.u32 %v413, 7
    %v415 = vsub.s32 1, %v414
    %v416 = vrot.slane %v407, %v415
    %v417 = vlaneseq
    %v418 = vshrl.u32 %v417, 7
    %v419 = vsub.s32 2, %v418
    %v420 = vrot.slane %v407, %v419
    %v421 = vlaneseq
    %v422 = vshrl.u32 %v421, 7
    %v423 = vsub.s32 3, %v422
    %v424 = vrot.slane %v407, %v423
    %v437 = vunpack.c.l.b16 %v108
    %v438 = vunpack.c.l.b16 %v109
    %v439 = vunpack.c.l.b16 %v110
    %v440 = vunpack.c.l.b16 %v111
    %v441 = vunpack.c.l.b16 %v112
    %v442 = vunpack.c.l.b16 %v113
    %v443 = vunpack.c.l.b16 %v114
    %v444 = vunpack.c.l.b16 %v115
    %v445 = vpack.c.b16 %v438, %v437
    %v446 = vpack.c.b16 %v440, %v439
    %v447 = vpack.c.b16 %v442, %v441
    %v448 = vpack.c.b16 %v444, %v443
    %v457 = vunpack.c.l.b16 %v398
    %v458 = vunpack.c.h.b16 %v398
    %v459 = vunpack.c.l.b16 %v399
    %v460 = vunpack.c.h.b16 %v399
    %v461 = vunpack.c.l.b16 %v400
    %v462 = vunpack.c.h.b16 %v400
    %v463 = vunpack.c.l.b16 %v401
    %v464 = vunpack.c.h.b16 %v401
    %v465 = vunpack.c.l.b16 %v402
    %v466 = vunpack.c.h.b16 %v402
    %v467 = vunpack.c.l.b16 %v403
    %v468 = vunpack.c.h.b16 %v403
    %v469 = vunpack.c.l.b16 %v404
    %v470 = vunpack.c.h.b16 %v404
    %v471 = vunpack.c.l.b16 %v405
    %v472 = vunpack.c.h.b16 %v405
    %v473 = vpack.c.b16 %v461, %v457
    %v474 = vpack.c.b16 %v462, %v458
    %v475 = vpack.c.b16 %v463, %v459
    %v476 = vpack.c.b16 %v464, %v460
    %v477 = vpack.c.b16 %v469, %v465
    %v478 = vpack.c.b16 %v470, %v466
    %v479 = vpack.c.b16 %v471, %v467
    %v480 = vpack.c.b16 %v472, %v468
    %v490 = vsel %vm206, %v445, 0
    %v493 = vsel %vm206, %v446, 0
    %v496 = vsel %vm206, %v447, 0
    %v499 = vsel %vm206, %v448, 0
    %501 = vmatprep.subr.bf16.mxu0 %v474
    %502 = vmatpush1.bf16.msra.mxu0 %v473
    %503 = vmatprep.subr.bf16.mxu0 %v478
    %504 = vmatpush1.bf16.msra.mxu0 %v477
    %505 = vmatprep.subr.bf16.mxu0 0
    %506 = vmatpush1.bf16.msra.mxu0 0
    %507 = vmatprep.subr.bf16.mxu0 0
    %508 = vmatpush1.bf16.msra.mxu0 0
    %509 = vmatprep.subr.bf16.mxu0 0
    %510 = vmatpush1.bf16.msra.mxu0 0
    %511 = vmatprep.subr.bf16.mxu0 0
    %512 = vmatpush1.bf16.msra.mxu0 0
    %513 = vmatprep.subr.bf16.mxu0 0
    %514 = vmatpush1.bf16.msra.mxu0 0
    %515 = vmatprep.subr.bf16.mxu0 0
    %516 = vmatpush1.bf16.msra.mxu0 0
    %517 = vmatprep.subr.bf16.mxu0 0
    %518 = vmatpush1.bf16.msra.mxu0 0
    %519 = vmatprep.subr.bf16.mxu0 0
    %520 = vmatpush1.bf16.msra.mxu0 0
    %521 = vmatprep.subr.bf16.mxu0 0
    %522 = vmatpush1.bf16.msra.mxu0 0
    %523 = vmatprep.subr.bf16.mxu0 0
    %524 = vmatpush1.bf16.msra.mxu0 0
    %525 = vmatprep.subr.bf16.mxu0 0
    %526 = vmatpush1.bf16.msra.mxu0 0
    %527 = vmatprep.subr.bf16.mxu0 0
    %528 = vmatpush1.bf16.msra.mxu0 0
    %529 = vmatprep.subr.bf16.mxu0 0
    %530 = vmatpush1.bf16.msra.mxu0 0
    %531 = vmatprep.subr.bf16.mxu0 0
    %532 = vmatpush1.bf16.msra.mxu0 0
    %533 = vmatprep.mubr.bf16.mxu0 0
    %534 = vmatmul.mubr.bf16.gmra.mrb[0].mxu0 %v490
    %v535 = vpop.f32.mrb[0].mxu0
    %v536 = vadd.f32 %v412, %v535
    %v537 = vpop.f32.mrb[0].mxu0
    %v538 = vadd.f32 %v416, %v537
    %v539 = vpop.f32.mrb[0].mxu0
    %v540 = vadd.f32 %v412, %v539
    %v541 = vpop.f32.mrb[0].mxu0
    %v542 = vadd.f32 %v416, %v541
    %543 = vmatprep.mubr.bf16.mxu0 0
    %544 = vmatmul.mubr.bf16.gmra.mrb[0].mxu0 %v493
    %v545 = vpop.f32.mrb[0].mxu0
    %v546 = vadd.f32 %v412, %v545
    %v547 = vpop.f32.mrb[0].mxu0
    %v548 = vadd.f32 %v416, %v547
    %v549 = vpop.f32.mrb[0].mxu0
    %v550 = vadd.f32 %v412, %v549
    %v551 = vpop.f32.mrb[0].mxu0
    %v552 = vadd.f32 %v416, %v551
    %553 = vmatprep.mubr.bf16.mxu0 0
    %554 = vmatmul.mubr.bf16.gmra.mrb[0].mxu0 %v496
    %v555 = vpop.f32.mrb[0].mxu0
    %v556 = vadd.f32 %v412, %v555
    %v557 = vpop.f32.mrb[0].mxu0
    %v558 = vadd.f32 %v416, %v557
    %v559 = vpop.f32.mrb[0].mxu0
    %v560 = vadd.f32 %v412, %v559
    %v561 = vpop.f32.mrb[0].mxu0
    %v562 = vadd.f32 %v416, %v561
    %563 = vmatprep.mubr.bf16.mxu0 0
    %564 = vmatmul.mubr.bf16.gmra.mrb[0].mxu0 %v499
    %v565 = vpop.f32.mrb[0].mxu0
    %v566 = vadd.f32 %v412, %v565
    %v567 = vpop.f32.mrb[0].mxu0
    %v568 = vadd.f32 %v416, %v567
    %v569 = vpop.f32.mrb[0].mxu0
    %v570 = vadd.f32 %v412, %v569
    %v571 = vpop.f32.mrb[0].mxu0
    %v572 = vadd.f32 %v416, %v571
    %573 = vdwg.mxu0
    %574 = vmatprep.subr.bf16.mxu0 %v476
    %575 = vmatpush1.bf16.msra.mxu0 %v475
    %576 = vmatprep.subr.bf16.mxu0 %v480
    %577 = vmatpush1.bf16.msra.mxu0 %v479
    %578 = vmatprep.subr.bf16.mxu0 0
    %579 = vmatpush1.bf16.msra.mxu0 0
    %580 = vmatprep.subr.bf16.mxu0 0
    %581 = vmatpush1.bf16.msra.mxu0 0
    %582 = vmatprep.subr.bf16.mxu0 0
    %583 = vmatpush1.bf16.msra.mxu0 0
    %584 = vmatprep.subr.bf16.mxu0 0
    %585 = vmatpush1.bf16.msra.mxu0 0
    %586 = vmatprep.subr.bf16.mxu0 0
    %587 = vmatpush1.bf16.msra.mxu0 0
    %588 = vmatprep.subr.bf16.mxu0 0
    %589 = vmatpush1.bf16.msra.mxu0 0
    %590 = vmatprep.subr.bf16.mxu0 0
    %591 = vmatpush1.bf16.msra.mxu0 0
    %592 = vmatprep.subr.bf16.mxu0 0
    %593 = vmatpush1.bf16.msra.mxu0 0
    %594 = vmatprep.subr.bf16.mxu0 0
    %595 = vmatpush1.bf16.msra.mxu0 0
    %596 = vmatprep.subr.bf16.mxu0 0
    %597 = vmatpush1.bf16.msra.mxu0 0
    %598 = vmatprep.subr.bf16.mxu0 0
    %599 = vmatpush1.bf16.msra.mxu0 0
    %600 = vmatprep.subr.bf16.mxu0 0
    %601 = vmatpush1.bf16.msra.mxu0 0
    %602 = vmatprep.subr.bf16.mxu0 0
    %603 = vmatpush1.bf16.msra.mxu0 0
    %604 = vmatprep.subr.bf16.mxu0 0
    %605 = vmatpush1.bf16.msra.mxu0 0
    %606 = vmatprep.mubr.bf16.mxu0 0
    %607 = vmatmul.mubr.bf16.gmra.mrb[0].mxu0 %v490
    %v608 = vpop.f32.mrb[0].mxu0
    %v609 = vadd.f32 %v420, %v608
    %v610 = vpop.f32.mrb[0].mxu0
    %v611 = vadd.f32 %v424, %v610
    %v612 = vpop.f32.mrb[0].mxu0
    %v613 = vadd.f32 %v420, %v612
    %v614 = vpop.f32.mrb[0].mxu0
    %v615 = vadd.f32 %v424, %v614
    %616 = vmatprep.mubr.bf16.mxu0 0
    %617 = vmatmul.mubr.bf16.gmra.mrb[0].mxu0 %v493
    %v618 = vpop.f32.mrb[0].mxu0
    %v619 = vadd.f32 %v420, %v618
    %v620 = vpop.f32.mrb[0].mxu0
    %v621 = vadd.f32 %v424, %v620
    %v622 = vpop.f32.mrb[0].mxu0
    %v623 = vadd.f32 %v420, %v622
    %v624 = vpop.f32.mrb[0].mxu0
    %v625 = vadd.f32 %v424, %v624
    %626 = vmatprep.mubr.bf16.mxu0 0
    %627 = vmatmul.mubr.bf16.gmra.mrb[0].mxu0 %v496
    %v628 = vpop.f32.mrb[0].mxu0
    %v629 = vadd.f32 %v420, %v628
    %v630 = vpop.f32.mrb[0].mxu0
    %v631 = vadd.f32 %v424, %v630
    %v632 = vpop.f32.mrb[0].mxu0
    %v633 = vadd.f32 %v420, %v632
    %v634 = vpop.f32.mrb[0].mxu0
    %v635 = vadd.f32 %v424, %v634
    %636 = vmatprep.mubr.bf16.mxu0 0
    %637 = vmatmul.mubr.bf16.gmra.mrb[0].mxu0 %v499
    %v638 = vpop.f32.mrb[0].mxu0
    %v639 = vadd.f32 %v420, %v638
    %v640 = vpop.f32.mrb[0].mxu0
    %v641 = vadd.f32 %v424, %v640
    %v642 = vpop.f32.mrb[0].mxu0
    %v643 = vadd.f32 %v420, %v642
    %v644 = vpop.f32.mrb[0].mxu0
    %v645 = vadd.f32 %v424, %v644
    %646 = vdwg.mxu0
    %647 = vst [vmem:[#allocation3] sm:$0xff] %v536
    %648 = vst [vmem:[#allocation3 + $0x8] sm:$0xff] %v538
    %649 = vst [vmem:[#allocation3 + $0x10] sm:$0xff] %v609
    %650 = vst [vmem:[#allocation3 + $0x18] sm:$0xff] %v611
    %651 = vst [vmem:[#allocation3 + $0x20] sm:$0xff] %v540
    %652 = vst [vmem:[#allocation3 + $0x28] sm:$0xff] %v542
    %653 = vst [vmem:[#allocation3 + $0x30] sm:$0xff] %v613
    %654 = vst [vmem:[#allocation3 + $0x38] sm:$0xff] %v615
    %655 = vst [vmem:[#allocation3 + $0x40] sm:$0xff] %v546
    %656 = vst [vmem:[#allocation3 + $0x48] sm:$0xff] %v548
    %657 = vst [vmem:[#allocation3 + $0x50] sm:$0xff] %v619
    %658 = vst [vmem:[#allocation3 + $0x58] sm:$0xff] %v621
    %659 = vst [vmem:[#allocation3 + $0x60] sm:$0xff] %v550
    %660 = vst [vmem:[#allocation3 + $0x68] sm:$0xff] %v552
    %661 = vst [vmem:[#allocation3 + $0x70] sm:$0xff] %v623
    %662 = vst [vmem:[#allocation3 + $0x78] sm:$0xff] %v625
    %663 = vst [vmem:[#allocation3 + $0x80] sm:$0xff] %v556
    %664 = vst [vmem:[#allocation3 + $0x88] sm:$0xff] %v558
    %665 = vst [vmem:[#allocation3 + $0x90] sm:$0xff] %v629
    %666 = vst [vmem:[#allocation3 + $0x98] sm:$0xff] %v631
    %667 = vst [vmem:[#allocation3 + $0xa0] sm:$0xff] %v560
    %668 = vst [vmem:[#allocation3 + $0xa8] sm:$0xff] %v562
    %669 = vst [vmem:[#allocation3 + $0xb0] sm:$0xff] %v633
    %670 = vst [vmem:[#allocation3 + $0xb8] sm:$0xff] %v635
    %671 = vst [vmem:[#allocation3 + $0xc0] sm:$0xff] %v566
    %672 = vst [vmem:[#allocation3 + $0xc8] sm:$0xff] %v568
    %673 = vst [vmem:[#allocation3 + $0xd0] sm:$0xff] %v639
    %674 = vst [vmem:[#allocation3 + $0xd8] sm:$0xff] %v641
    %675 = vst [vmem:[#allocation3 + $0xe0] sm:$0xff] %v570
    %676 = vst [vmem:[#allocation3 + $0xe8] sm:$0xff] %v572
    %677 = vst [vmem:[#allocation3 + $0xf0] sm:$0xff] %v643
    %678 = vst [vmem:[#allocation3 + $0xf8] sm:$0xff] %v645
    %v679 = vld [vmem:[#allocation14] sm:$0xff]
    %v680 = vld [vmem:[#allocation14 + $0x8] sm:$0xff]
    %v681 = vld [vmem:[#allocation14 + $0x10] sm:$0xff]
    %v682 = vld [vmem:[#allocation14 + $0x18] sm:$0xff]
    %v683 = vld [vmem:[#allocation14 + $0x20] sm:$0xff]
    %v684 = vld [vmem:[#allocation14 + $0x28] sm:$0xff]
    %v685 = vld [vmem:[#allocation14 + $0x30] sm:$0xff]
    %v686 = vld [vmem:[#allocation14 + $0x38] sm:$0xff]
    %v687 = vld [vmem:[#allocation14 + $0x40] sm:$0xff]
    %v688 = vld [vmem:[#allocation14 + $0x48] sm:$0xff]
    %v689 = vld [vmem:[#allocation14 + $0x50] sm:$0xff]
    %v690 = vld [vmem:[#allocation14 + $0x58] sm:$0xff]
    %v691 = vld [vmem:[#allocation14 + $0x60] sm:$0xff]
    %v692 = vld [vmem:[#allocation14 + $0x68] sm:$0xff]
    %v693 = vld [vmem:[#allocation14 + $0x70] sm:$0xff]
    %v694 = vld [vmem:[#allocation14 + $0x78] sm:$0xff]
    %v695 = vld [vmem:[#allocation14 + $0x80] sm:$0xff]
    %v696 = vld [vmem:[#allocation14 + $0x88] sm:$0xff]
    %v697 = vld [vmem:[#allocation14 + $0x90] sm:$0xff]
    %v698 = vld [vmem:[#allocation14 + $0x98] sm:$0xff]
    %v699 = vld [vmem:[#allocation14 + $0xa0] sm:$0xff]
    %v700 = vld [vmem:[#allocation14 + $0xa8] sm:$0xff]
    %v701 = vld [vmem:[#allocation14 + $0xb0] sm:$0xff]
    %v702 = vld [vmem:[#allocation14 + $0xb8] sm:$0xff]
    %v703 = vld [vmem:[#allocation14 + $0xc0] sm:$0xff]
    %v704 = vld [vmem:[#allocation14 + $0xc8] sm:$0xff]
    %v705 = vld [vmem:[#allocation14 + $0xd0] sm:$0xff]
    %v706 = vld [vmem:[#allocation14 + $0xd8] sm:$0xff]
    %v707 = vld [vmem:[#allocation14 + $0xe0] sm:$0xff]
    %v708 = vld [vmem:[#allocation14 + $0xe8] sm:$0xff]
    %v709 = vld [vmem:[#allocation14 + $0xf0] sm:$0xff]
    %v710 = vld [vmem:[#allocation14 + $0xf8] sm:$0xff]
    %s711 = scalar_lea.vmem [#allocation14], 256
    %v712 = vld [vmem:[%s711] sm:$0xff]
    %v713 = vld [vmem:[%s711 + $0x8] sm:$0xff]
    %v714 = vld [vmem:[%s711 + $0x10] sm:$0xff]
    %v715 = vld [vmem:[%s711 + $0x18] sm:$0xff]
    %v716 = vld [vmem:[%s711 + $0x20] sm:$0xff]
    %v717 = vld [vmem:[%s711 + $0x28] sm:$0xff]
    %v718 = vld [vmem:[%s711 + $0x30] sm:$0xff]
    %v719 = vld [vmem:[%s711 + $0x38] sm:$0xff]
    %v720 = vld [vmem:[%s711 + $0x40] sm:$0xff]
    %v721 = vld [vmem:[%s711 + $0x48] sm:$0xff]
    %v722 = vld [vmem:[%s711 + $0x50] sm:$0xff]
    %v723 = vld [vmem:[%s711 + $0x58] sm:$0xff]
    %v724 = vld [vmem:[%s711 + $0x60] sm:$0xff]
    %v725 = vld [vmem:[%s711 + $0x68] sm:$0xff]
    %v726 = vld [vmem:[%s711 + $0x70] sm:$0xff]
    %v727 = vld [vmem:[%s711 + $0x78] sm:$0xff]
    %v728 = vld [vmem:[%s711 + $0x80] sm:$0xff]
    %v729 = vld [vmem:[%s711 + $0x88] sm:$0xff]
    %v730 = vld [vmem:[%s711 + $0x90] sm:$0xff]
    %v731 = vld [vmem:[%s711 + $0x98] sm:$0xff]
    %v732 = vld [vmem:[%s711 + $0xa0] sm:$0xff]
    %v733 = vld [vmem:[%s711 + $0xa8] sm:$0xff]
    %v734 = vld [vmem:[%s711 + $0xb0] sm:$0xff]
    %v735 = vld [vmem:[%s711 + $0xb8] sm:$0xff]
    %v736 = vld [vmem:[%s711 + $0xc0] sm:$0xff]
    %v737 = vld [vmem:[%s711 + $0xc8] sm:$0xff]
    %v738 = vld [vmem:[%s711 + $0xd0] sm:$0xff]
    %v739 = vld [vmem:[%s711 + $0xd8] sm:$0xff]
    %v740 = vld [vmem:[%s711 + $0xe0] sm:$0xff]
    %v741 = vld [vmem:[%s711 + $0xe8] sm:$0xff]
    %v742 = vld [vmem:[%s711 + $0xf0] sm:$0xff]
    %v743 = vld [vmem:[%s711 + $0xf8] sm:$0xff]
    %s744 = smul.u32 0, 8
    %s745 = ssub.s32 7, %s744
    %v746 = vld [vmem:[#allocation2] sm:$0xff]
    %v747 = vld [vmem:[#allocation2 + $0x8] sm:$0xff]
    %v748 = vld [vmem:[#allocation2 + $0x10] sm:$0xff]
    %v749 = vld [vmem:[#allocation2 + $0x18] sm:$0xff]
    %v750 = vld [vmem:[#allocation4] sm:$0xff]
    %v751 = vld [vmem:[#allocation5] sm:$0xff]
    %v752 = vpack.c.bf16 %v750, %v750
    %v785 = vunpack.c.l.b16 %v679
    %v786 = vunpack.c.h.b16 %v679
    %v787 = vunpack.c.l.b16 %v680
    %v788 = vunpack.c.h.b16 %v680
    %v789 = vunpack.c.l.b16 %v681
    %v790 = vunpack.c.h.b16 %v681
    %v791 = vunpack.c.l.b16 %v682
    %v792 = vunpack.c.h.b16 %v682
    %v793 = vunpack.c.l.b16 %v683
    %v794 = vunpack.c.h.b16 %v683
    %v795 = vunpack.c.l.b16 %v684
    %v796 = vunpack.c.h.b16 %v684
    %v797 = vunpack.c.l.b16 %v685
    %v798 = vunpack.c.h.b16 %v685
    %v799 = vunpack.c.l.b16 %v686
    %v800 = vunpack.c.h.b16 %v686
    %v801 = vunpack.c.l.b16 %v687
    %v802 = vunpack.c.h.b16 %v687
    %v803 = vunpack.c.l.b16 %v688
    %v804 = vunpack.c.h.b16 %v688
    %v805 = vunpack.c.l.b16 %v689
    %v806 = vunpack.c.h.b16 %v689
    %v807 = vunpack.c.l.b16 %v690
    %v808 = vunpack.c.h.b16 %v690
    %v809 = vunpack.c.l.b16 %v691
    %v810 = vunpack.c.h.b16 %v691
    %v811 = vunpack.c.l.b16 %v692
    %v812 = vunpack.c.h.b16 %v692
    %v813 = vunpack.c.l.b16 %v693
    %v814 = vunpack.c.h.b16 %v693
    %v815 = vunpack.c.l.b16 %v694
    %v816 = vunpack.c.h.b16 %v694
    %v817 = vunpack.c.l.b16 %v695
    %v818 = vunpack.c.h.b16 %v695
    %v819 = vunpack.c.l.b16 %v696
    %v820 = vunpack.c.h.b16 %v696
    %v821 = vunpack.c.l.b16 %v697
    %v822 = vunpack.c.h.b16 %v697
    %v823 = vunpack.c.l.b16 %v698
    %v824 = vunpack.c.h.b16 %v698
    %v825 = vunpack.c.l.b16 %v699
    %v826 = vunpack.c.h.b16 %v699
    %v827 = vunpack.c.l.b16 %v700
    %v828 = vunpack.c.h.b16 %v700
    %v829 = vunpack.c.l.b16 %v701
    %v830 = vunpack.c.h.b16 %v701
    %v831 = vunpack.c.l.b16 %v702
    %v832 = vunpack.c.h.b16 %v702
    %v833 = vunpack.c.l.b16 %v703
    %v834 = vunpack.c.h.b16 %v703
    %v835 = vunpack.c.l.b16 %v704
    %v836 = vunpack.c.h.b16 %v704
    %v837 = vunpack.c.l.b16 %v705
    %v838 = vunpack.c.h.b16 %v705
    %v839 = vunpack.c.l.b16 %v706
    %v840 = vunpack.c.h.b16 %v706
    %v841 = vunpack.c.l.b16 %v707
    %v842 = vunpack.c.h.b16 %v707
    %v843 = vunpack.c.l.b16 %v708
    %v844 = vunpack.c.h.b16 %v708
    %v845 = vunpack.c.l.b16 %v709
    %v846 = vunpack.c.h.b16 %v709
    %v847 = vunpack.c.l.b16 %v710
    %v848 = vunpack.c.h.b16 %v710
    %v849 = vpack.c.b16 %v789, %v785
    %v850 = vpack.c.b16 %v790, %v786
    %v851 = vpack.c.b16 %v791, %v787
    %v852 = vpack.c.b16 %v792, %v788
    %v853 = vpack.c.b16 %v797, %v793
    %v854 = vpack.c.b16 %v798, %v794
    %v855 = vpack.c.b16 %v799, %v795
    %v856 = vpack.c.b16 %v800, %v796
    %v857 = vpack.c.b16 %v805, %v801
    %v858 = vpack.c.b16 %v806, %v802
    %v859 = vpack.c.b16 %v807, %v803
    %v860 = vpack.c.b16 %v808, %v804
    %v861 = vpack.c.b16 %v813, %v809
    %v862 = vpack.c.b16 %v814, %v810
    %v863 = vpack.c.b16 %v815, %v811
    %v864 = vpack.c.b16 %v816, %v812
    %v865 = vpack.c.b16 %v821, %v817
    %v866 = vpack.c.b16 %v822, %v818
    %v867 = vpack.c.b16 %v823, %v819
    %v868 = vpack.c.b16 %v824, %v820
    %v869 = vpack.c.b16 %v829, %v825
    %v870 = vpack.c.b16 %v830, %v826
    %v871 = vpack.c.b16 %v831, %v827
    %v872 = vpack.c.b16 %v832, %v828
    %v873 = vpack.c.b16 %v837, %v833
    %v874 = vpack.c.b16 %v838, %v834
    %v875 = vpack.c.b16 %v839, %v835
    %v876 = vpack.c.b16 %v840, %v836
    %v877 = vpack.c.b16 %v845, %v841
    %v878 = vpack.c.b16 %v846, %v842
    %v879 = vpack.c.b16 %v847, %v843
    %v880 = vpack.c.b16 %v848, %v844
    %913 = vmatprep.subr.bf16.mxu0 %v850
    %914 = vmatpush1.bf16.msra.mxu0 %v849
    %915 = vmatprep.subr.bf16.mxu0 %v854
    %916 = vmatpush1.bf16.msra.mxu0 %v853
    %917 = vmatprep.subr.bf16.mxu0 %v858
    %918 = vmatpush1.bf16.msra.mxu0 %v857
    %919 = vmatprep.subr.bf16.mxu0 %v862
    %920 = vmatpush1.bf16.msra.mxu0 %v861
    %921 = vmatprep.subr.bf16.mxu0 %v866
    %922 = vmatpush1.bf16.msra.mxu0 %v865
    %923 = vmatprep.subr.bf16.mxu0 %v870
    %924 = vmatpush1.bf16.msra.mxu0 %v869
    %925 = vmatprep.subr.bf16.mxu0 %v874
    %926 = vmatpush1.bf16.msra.mxu0 %v873
    %927 = vmatprep.subr.bf16.mxu0 %v878
    %928 = vmatpush1.bf16.msra.mxu0 %v877
    %929 = vmatprep.subr.bf16.mxu0 0
    %930 = vmatpush1.bf16.msra.mxu0 0
    %931 = vmatprep.subr.bf16.mxu0 0
    %932 = vmatpush1.bf16.msra.mxu0 0
    %933 = vmatprep.subr.bf16.mxu0 0
    %934 = vmatpush1.bf16.msra.mxu0 0
    %935 = vmatprep.subr.bf16.mxu0 0
    %936 = vmatpush1.bf16.msra.mxu0 0
    %937 = vmatprep.subr.bf16.mxu0 0
    %938 = vmatpush1.bf16.msra.mxu0 0
    %939 = vmatprep.subr.bf16.mxu0 0
    %940 = vmatpush1.bf16.msra.mxu0 0
    %941 = vmatprep.subr.bf16.mxu0 0
    %942 = vmatpush1.bf16.msra.mxu0 0
    %943 = vmatprep.subr.bf16.mxu0 0
    %944 = vmatpush1.bf16.msra.mxu0 0
    %945 = vmatprep.mubr.bf16.mxu0 0
    %946 = vmatmul.mubr.bf16.gmra.mrb[0].mxu0 %v752
    %v947 = vpop.f32.mrb[0].mxu0
    %v948 = vadd.f32 0.0, %v947
    %v949 = vpop.f32.mrb[0].mxu0
    %v950 = vadd.f32 0.0, %v949
    %v951 = vpop.f32.mrb[0].mxu0
    %v952 = vpop.f32.mrb[0].mxu0
    %953 = vdwg.mxu0
    %954 = vmatprep.subr.bf16.mxu0 %v852
    %955 = vmatpush1.bf16.msra.mxu0 %v851
    %956 = vmatprep.subr.bf16.mxu0 %v856
    %957 = vmatpush1.bf16.msra.mxu0 %v855
    %958 = vmatprep.subr.bf16.mxu0 %v860
    %959 = vmatpush1.bf16.msra.mxu0 %v859
    %960 = vmatprep.subr.bf16.mxu0 %v864
    %961 = vmatpush1.bf16.msra.mxu0 %v863
    %962 = vmatprep.subr.bf16.mxu0 %v868
    %963 = vmatpush1.bf16.msra.mxu0 %v867
    %964 = vmatprep.subr.bf16.mxu0 %v872
    %965 = vmatpush1.bf16.msra.mxu0 %v871
    %966 = vmatprep.subr.bf16.mxu0 %v876
    %967 = vmatpush1.bf16.msra.mxu0 %v875
    %968 = vmatprep.subr.bf16.mxu0 %v880
    %969 = vmatpush1.bf16.msra.mxu0 %v879
    %970 = vmatprep.subr.bf16.mxu0 0
    %971 = vmatpush1.bf16.msra.mxu0 0
    %972 = vmatprep.subr.bf16.mxu0 0
    %973 = vmatpush1.bf16.msra.mxu0 0
    %974 = vmatprep.subr.bf16.mxu0 0
    %975 = vmatpush1.bf16.msra.mxu0 0
    %976 = vmatprep.subr.bf16.mxu0 0
    %977 = vmatpush1.bf16.msra.mxu0 0
    %978 = vmatprep.subr.bf16.mxu0 0
    %979 = vmatpush1.bf16.msra.mxu0 0
    %980 = vmatprep.subr.bf16.mxu0 0
    %981 = vmatpush1.bf16.msra.mxu0 0
    %982 = vmatprep.subr.bf16.mxu0 0
    %983 = vmatpush1.bf16.msra.mxu0 0
    %984 = vmatprep.subr.bf16.mxu0 0
    %985 = vmatpush1.bf16.msra.mxu0 0
    %986 = vmatprep.mubr.bf16.mxu0 0
    %987 = vmatmul.mubr.bf16.gmra.mrb[0].mxu0 %v752
    %v988 = vpop.f32.mrb[0].mxu0
    %v989 = vadd.f32 0.0, %v988
    %v990 = vpop.f32.mrb[0].mxu0
    %v991 = vadd.f32 0.0, %v990
    %v992 = vpop.f32.mrb[0].mxu0
    %v993 = vpop.f32.mrb[0].mxu0
    %994 = vdwg.mxu0
    %v995 = vadd.f32 %v746, %v948
    %v996 = vadd.f32 %v747, %v950
    %v997 = vadd.f32 %v748, %v989
    %v998 = vadd.f32 %v749, %v991
    %v999 = vtanh.pop %v995
    %v1000 = vtanh.pop %v996
    %v1001 = vtanh.pop %v997
    %v1002 = vtanh.pop %v998
    %v1003 = vmul.f32 %v999, 0.5
    %v1004 = vadd.f32 %v1003, 0.5
    %v1005 = vmul.f32 %v1000, 0.5
    %v1006 = vadd.f32 %v1005, 0.5
    %v1007 = vmul.f32 %v1002, 0.5
    %v1008 = vadd.f32 %v1007, 0.5
    %v1009 = vmul.f32 %v1006, %v751
    %v1010 = vmul.f32 %v1004, %v1001
    %v1011 = vadd.f32 %v1009, %v1010
    %v1012 = vtanh.pop %v1011
    %v1013 = vmul.f32 %v1008, %v1012
    %s1014 = scalar_lea.vmem [#allocation3], 224
    %v1015 = vld [vmem:[%s1014] sm:$0xff]
    %v1016 = vld [vmem:[%s1014 + $0x8] sm:$0xff]
    %v1017 = vld [vmem:[%s1014 + $0x10] sm:$0xff]
    %v1018 = vld [vmem:[%s1014 + $0x18] sm:$0xff]
    %v1019 = vld [vmem:[#allocation6] sm:$0xff]
    %v1020 = vld [vmem:[#allocation7] sm:$0xff]
    %v1021 = vpack.c.bf16 %v1019, %v1019
    %v1054 = vunpack.c.l.b16 %v712
    %v1055 = vunpack.c.h.b16 %v712
    %v1056 = vunpack.c.l.b16 %v713
    %v1057 = vunpack.c.h.b16 %v713
    %v1058 = vunpack.c.l.b16 %v714
    %v1059 = vunpack.c.h.b16 %v714
    %v1060 = vunpack.c.l.b16 %v715
    %v1061 = vunpack.c.h.b16 %v715
    %v1062 = vunpack.c.l.b16 %v716
    %v1063 = vunpack.c.h.b16 %v716
    %v1064 = vunpack.c.l.b16 %v717
    %v1065 = vunpack.c.h.b16 %v717
    %v1066 = vunpack.c.l.b16 %v718
    %v1067 = vunpack.c.h.b16 %v718
    %v1068 = vunpack.c.l.b16 %v719
    %v1069 = vunpack.c.h.b16 %v719
    %v1070 = vunpack.c.l.b16 %v720
    %v1071 = vunpack.c.h.b16 %v720
    %v1072 = vunpack.c.l.b16 %v721
    %v1073 = vunpack.c.h.b16 %v721
    %v1074 = vunpack.c.l.b16 %v722
    %v1075 = vunpack.c.h.b16 %v722
    %v1076 = vunpack.c.l.b16 %v723
    %v1077 = vunpack.c.h.b16 %v723
    %v1078 = vunpack.c.l.b16 %v724
    %v1079 = vunpack.c.h.b16 %v724
    %v1080 = vunpack.c.l.b16 %v725
    %v1081 = vunpack.c.h.b16 %v725
    %v1082 = vunpack.c.l.b16 %v726
    %v1083 = vunpack.c.h.b16 %v726
    %v1084 = vunpack.c.l.b16 %v727
    %v1085 = vunpack.c.h.b16 %v727
    %v1086 = vunpack.c.l.b16 %v728
    %v1087 = vunpack.c.h.b16 %v728
    %v1088 = vunpack.c.l.b16 %v729
    %v1089 = vunpack.c.h.b16 %v729
    %v1090 = vunpack.c.l.b16 %v730
    %v1091 = vunpack.c.h.b16 %v730
    %v1092 = vunpack.c.l.b16 %v731
    %v1093 = vunpack.c.h.b16 %v731
    %v1094 = vunpack.c.l.b16 %v732
    %v1095 = vunpack.c.h.b16 %v732
    %v1096 = vunpack.c.l.b16 %v733
    %v1097 = vunpack.c.h.b16 %v733
    %v1098 = vunpack.c.l.b16 %v734
    %v1099 = vunpack.c.h.b16 %v734
    %v1100 = vunpack.c.l.b16 %v735
    %v1101 = vunpack.c.h.b16 %v735
    %v1102 = vunpack.c.l.b16 %v736
    %v1103 = vunpack.c.h.b16 %v736
    %v1104 = vunpack.c.l.b16 %v737
    %v1105 = vunpack.c.h.b16 %v737
    %v1106 = vunpack.c.l.b16 %v738
    %v1107 = vunpack.c.h.b16 %v738
    %v1108 = vunpack.c.l.b16 %v739
    %v1109 = vunpack.c.h.b16 %v739
    %v1110 = vunpack.c.l.b16 %v740
    %v1111 = vunpack.c.h.b16 %v740
    %v1112 = vunpack.c.l.b16 %v741
    %v1113 = vunpack.c.h.b16 %v741
    %v1114 = vunpack.c.l.b16 %v742
    %v1115 = vunpack.c.h.b16 %v742
    %v1116 = vunpack.c.l.b16 %v743
    %v1117 = vunpack.c.h.b16 %v743
    %v1118 = vpack.c.b16 %v1058, %v1054
    %v1119 = vpack.c.b16 %v1059, %v1055
    %v1120 = vpack.c.b16 %v1060, %v1056
    %v1121 = vpack.c.b16 %v1061, %v1057
    %v1122 = vpack.c.b16 %v1066, %v1062
    %v1123 = vpack.c.b16 %v1067, %v1063
    %v1124 = vpack.c.b16 %v1068, %v1064
    %v1125 = vpack.c.b16 %v1069, %v1065
    %v1126 = vpack.c.b16 %v1074, %v1070
    %v1127 = vpack.c.b16 %v1075, %v1071
    %v1128 = vpack.c.b16 %v1076, %v1072
    %v1129 = vpack.c.b16 %v1077, %v1073
    %v1130 = vpack.c.b16 %v1082, %v1078
    %v1131 = vpack.c.b16 %v1083, %v1079
    %v1132 = vpack.c.b16 %v1084, %v1080
    %v1133 = vpack.c.b16 %v1085, %v1081
    %v1134 = vpack.c.b16 %v1090, %v1086
    %v1135 = vpack.c.b16 %v1091, %v1087
    %v1136 = vpack.c.b16 %v1092, %v1088
    %v1137 = vpack.c.b16 %v1093, %v1089
    %v1138 = vpack.c.b16 %v1098, %v1094
    %v1139 = vpack.c.b16 %v1099, %v1095
    %v1140 = vpack.c.b16 %v1100, %v1096
    %v1141 = vpack.c.b16 %v1101, %v1097
    %v1142 = vpack.c.b16 %v1106, %v1102
    %v1143 = vpack.c.b16 %v1107, %v1103
    %v1144 = vpack.c.b16 %v1108, %v1104
    %v1145 = vpack.c.b16 %v1109, %v1105
    %v1146 = vpack.c.b16 %v1114, %v1110
    %v1147 = vpack.c.b16 %v1115, %v1111
    %v1148 = vpack.c.b16 %v1116, %v1112
    %v1149 = vpack.c.b16 %v1117, %v1113
    %1182 = vmatprep.subr.bf16.mxu0 %v1119
    %1183 = vmatpush1.bf16.msra.mxu0 %v1118
    %1184 = vmatprep.subr.bf16.mxu0 %v1123
    %1185 = vmatpush1.bf16.msra.mxu0 %v1122
    %1186 = vmatprep.subr.bf16.mxu0 %v1127
    %1187 = vmatpush1.bf16.msra.mxu0 %v1126
    %1188 = vmatprep.subr.bf16.mxu0 %v1131
    %1189 = vmatpush1.bf16.msra.mxu0 %v1130
    %1190 = vmatprep.subr.bf16.mxu0 %v1135
    %1191 = vmatpush1.bf16.msra.mxu0 %v1134
    %1192 = vmatprep.subr.bf16.mxu0 %v1139
    %1193 = vmatpush1.bf16.msra.mxu0 %v1138
    %1194 = vmatprep.subr.bf16.mxu0 %v1143
    %1195 = vmatpush1.bf16.msra.mxu0 %v1142
    %1196 = vmatprep.subr.bf16.mxu0 %v1147
    %1197 = vmatpush1.bf16.msra.mxu0 %v1146
    %1198 = vmatprep.subr.bf16.mxu0 0
    %1199 = vmatpush1.bf16.msra.mxu0 0
    %1200 = vmatprep.subr.bf16.mxu0 0
    %1201 = vmatpush1.bf16.msra.mxu0 0
    %1202 = vmatprep.subr.bf16.mxu0 0
    %1203 = vmatpush1.bf16.msra.mxu0 0
    %1204 = vmatprep.subr.bf16.mxu0 0
    %1205 = vmatpush1.bf16.msra.mxu0 0
    %1206 = vmatprep.subr.bf16.mxu0 0
    %1207 = vmatpush1.bf16.msra.mxu0 0
    %1208 = vmatprep.subr.bf16.mxu0 0
    %1209 = vmatpush1.bf16.msra.mxu0 0
    %1210 = vmatprep.subr.bf16.mxu0 0
    %1211 = vmatpush1.bf16.msra.mxu0 0
    %1212 = vmatprep.subr.bf16.mxu0 0
    %1213 = vmatpush1.bf16.msra.mxu0 0
    %1214 = vmatprep.mubr.bf16.mxu0 0
    %1215 = vmatmul.mubr.bf16.gmra.mrb[0].mxu0 %v1021
    %v1216 = vpop.f32.mrb[0].mxu0
    %v1217 = vadd.f32 0.0, %v1216
    %v1218 = vpop.f32.mrb[0].mxu0
    %v1219 = vadd.f32 0.0, %v1218
    %v1220 = vpop.f32.mrb[0].mxu0
    %v1221 = vpop.f32.mrb[0].mxu0
    %1222 = vdwg.mxu0
    %1223 = vmatprep.subr.bf16.mxu0 %v1121
    %1224 = vmatpush1.bf16.msra.mxu0 %v1120
    %1225 = vmatprep.subr.bf16.mxu0 %v1125
    %1226 = vmatpush1.bf16.msra.mxu0 %v1124
    %1227 = vmatprep.subr.bf16.mxu0 %v1129
    %1228 = vmatpush1.bf16.msra.mxu0 %v1128
    %1229 = vmatprep.subr.bf16.mxu0 %v1133
    %1230 = vmatpush1.bf16.msra.mxu0 %v1132
    %1231 = vmatprep.subr.bf16.mxu0 %v1137
    %1232 = vmatpush1.bf16.msra.mxu0 %v1136
    %1233 = vmatprep.subr.bf16.mxu0 %v1141
    %1234 = vmatpush1.bf16.msra.mxu0 %v1140
    %1235 = vmatprep.subr.bf16.mxu0 %v1145
    %1236 = vmatpush1.bf16.msra.mxu0 %v1144
    %1237 = vmatprep.subr.bf16.mxu0 %v1149
    %1238 = vmatpush1.bf16.msra.mxu0 %v1148
    %1239 = vmatprep.subr.bf16.mxu0 0
    %1240 = vmatpush1.bf16.msra.mxu0 0
    %1241 = vmatprep.subr.bf16.mxu0 0
    %1242 = vmatpush1.bf16.msra.mxu0 0
    %1243 = vmatprep.subr.bf16.mxu0 0
    %1244 = vmatpush1.bf16.msra.mxu0 0
    %1245 = vmatprep.subr.bf16.mxu0 0
    %1246 = vmatpush1.bf16.msra.mxu0 0
    %1247 = vmatprep.subr.bf16.mxu0 0
    %1248 = vmatpush1.bf16.msra.mxu0 0
    %1249 = vmatprep.subr.bf16.mxu0 0
    %1250 = vmatpush1.bf16.msra.mxu0 0
    %1251 = vmatprep.subr.bf16.mxu0 0
    %1252 = vmatpush1.bf16.msra.mxu0 0
    %1253 = vmatprep.subr.bf16.mxu0 0
    %1254 = vmatpush1.bf16.msra.mxu0 0
    %1255 = vmatprep.mubr.bf16.mxu0 0
    %1256 = vmatmul.mubr.bf16.gmra.mrb[0].mxu0 %v1021
    %v1257 = vpop.f32.mrb[0].mxu0
    %v1258 = vadd.f32 0.0, %v1257
    %v1259 = vpop.f32.mrb[0].mxu0
    %v1260 = vadd.f32 0.0, %v1259
    %v1261 = vpop.f32.mrb[0].mxu0
    %v1262 = vpop.f32.mrb[0].mxu0
    %1263 = vdwg.mxu0
    %v1264 = vadd.f32 %v1015, %v1217
    %v1265 = vadd.f32 %v1016, %v1219
    %v1266 = vadd.f32 %v1017, %v1258
    %v1267 = vadd.f32 %v1018, %v1260
    %v1268 = vtanh.pop %v1264
    %v1269 = vtanh.pop %v1265
    %v1270 = vtanh.pop %v1266
    %v1271 = vtanh.pop %v1267
    %v1272 = vmul.f32 %v1268, 0.5
    %v1273 = vadd.f32 %v1272, 0.5
    %v1274 = vmul.f32 %v1269, 0.5
    %v1275 = vadd.f32 %v1274, 0.5
    %v1276 = vmul.f32 %v1271, 0.5
    %v1277 = vadd.f32 %v1276, 0.5
    %v1278 = vmul.f32 %v1275, %v1020
    %v1279 = vmul.f32 %v1273, %v1270
    %v1280 = vadd.f32 %v1278, %v1279
    %v1281 = vtanh.pop %v1280
    %v1282 = vmul.f32 %v1277, %v1281
    %v1283 = vstv %s744
    %vm1284 = vcmp.lt.s32.totalorder %v1283, %v99
    %v1285 = vsel %vm1284, 1, 0
    %1286 = vset.pattern.permute.xlu0 0
    %1287 = vperm.xlu0 %1286, %v1285
    %v1288 = vpop.permute.xlu0 %1287
    %vm1289 = vcmp.eq.s32.totalorder %v1288, 1
    %v1290 = vstv %s745
    %vm1291 = vcmp.lt.s32.totalorder %v1290, %v99
    %v1292 = vsel %vm1291, 1, 0
    %1293 = vset.pattern.permute.xlu0 0
    %1294 = vperm.xlu0 %1293, %v1292
    %v1295 = vpop.permute.xlu0 %1294
    %vm1296 = vcmp.eq.s32.totalorder %v1295, 1
    %v1297 = vsel %vm1289, %v1013, %v750
    %1298 = vst [vmem:[#allocation4] sm:$0xff] %v1297
    %v1299 = vld [vmem:[#allocation5] sm:$0xff]
    %v1300 = vsel %vm1289, %v1011, %v1299
    %1301 = vst [vmem:[#allocation5] sm:$0xff] %v1300
    %v1302 = vld [vmem:[#allocation6] sm:$0xff]
    %v1303 = vsel %vm1296, %v1282, %v1302
    %1304 = vst [vmem:[#allocation6] sm:$0xff] %v1303
    %v1305 = vld [vmem:[#allocation7] sm:$0xff]
    %v1306 = vsel %vm1296, %v1280, %v1305
    %1307 = vst [vmem:[#allocation7] sm:$0xff] %v1306
    %v1308 = vsel %vm1289, %v1013, 0.0
    %v1309 = vpack.c.bf16 %v1308, %v1308
    %1310 = vst [vmem:[#allocation16] sm:$0xf] %v1309
    %v1311 = vsel %vm1296, %v1282, 0.0
    %v1312 = vpack.c.bf16 %v1311, %v1311
    %s1313 = scalar_lea.vmem [#allocation17], 28
    %1314 = vst [vmem:[%s1313] sm:$0xf] %v1312
    %s1315 = sadd.s32 %s744, 1
    %s1316 = ssub.s32 6, %s744
    %s1317 = scalar_lea.vmem [#allocation2], 32
    %v1318 = vld [vmem:[%s1317] sm:$0xff]
    %v1319 = vld [vmem:[%s1317 + $0x8] sm:$0xff]
    %v1320 = vld [vmem:[%s1317 + $0x10] sm:$0xff]
    %v1321 = vld [vmem:[%s1317 + $0x18] sm:$0xff]
    %v1322 = vld [vmem:[#allocation4] sm:$0xff]
    %v1323 = vld [vmem:[#allocation5] sm:$0xff]
    %v1324 = vpack.c.bf16 %v1322, %v1322
    %1325 = vmatprep.subr.bf16.mxu0 %v850
    %1326 = vmatpush1.bf16.msra.mxu0 %v849
    %1327 = vmatprep.subr.bf16.mxu0 %v854
    %1328 = vmatpush1.bf16.msra.mxu0 %v853
    %1329 = vmatprep.subr.bf16.mxu0 %v858
    %1330 = vmatpush1.bf16.msra.mxu0 %v857
    %1331 = vmatprep.subr.bf16.mxu0 %v862
    %1332 = vmatpush1.bf16.msra.mxu0 %v861
    %1333 = vmatprep.subr.bf16.mxu0 %v866
    %1334 = vmatpush1.bf16.msra.mxu0 %v865
    %1335 = vmatprep.subr.bf16.mxu0 %v870
    %1336 = vmatpush1.bf16.msra.mxu0 %v869
    %1337 = vmatprep.subr.bf16.mxu0 %v874
    %1338 = vmatpush1.bf16.msra.mxu0 %v873
    %1339 = vmatprep.subr.bf16.mxu0 %v878
    %1340 = vmatpush1.bf16.msra.mxu0 %v877
    %1341 = vmatprep.subr.bf16.mxu0 0
    %1342 = vmatpush1.bf16.msra.mxu0 0
    %1343 = vmatprep.subr.bf16.mxu0 0
    %1344 = vmatpush1.bf16.msra.mxu0 0
    %1345 = vmatprep.subr.bf16.mxu0 0
    %1346 = vmatpush1.bf16.msra.mxu0 0
    %1347 = vmatprep.subr.bf16.mxu0 0
    %1348 = vmatpush1.bf16.msra.mxu0 0
    %1349 = vmatprep.subr.bf16.mxu0 0
    %1350 = vmatpush1.bf16.msra.mxu0 0
    %1351 = vmatprep.subr.bf16.mxu0 0
    %1352 = vmatpush1.bf16.msra.mxu0 0
    %1353 = vmatprep.subr.bf16.mxu0 0
    %1354 = vmatpush1.bf16.msra.mxu0 0
    %1355 = vmatprep.subr.bf16.mxu0 0
    %1356 = vmatpush1.bf16.msra.mxu0 0
    %1357 = vmatprep.mubr.bf16.mxu0 0
    %1358 = vmatmul.mubr.bf16.gmra.mrb[0].mxu0 %v1324
    %v1359 = vpop.f32.mrb[0].mxu0
    %v1360 = vadd.f32 0.0, %v1359
    %v1361 = vpop.f32.mrb[0].mxu0
    %v1362 = vadd.f32 0.0, %v1361
    %v1363 = vpop.f32.mrb[0].mxu0
    %v1364 = vpop.f32.mrb[0].mxu0
    %1365 = vdwg.mxu0
    %1366 = vmatprep.subr.bf16.mxu0 %v852
    %1367 = vmatpush1.bf16.msra.mxu0 %v851
    %1368 = vmatprep.subr.bf16.mxu0 %v856
    %1369 = vmatpush1.bf16.msra.mxu0 %v855
    %1370 = vmatprep.subr.bf16.mxu0 %v860
    %1371 = vmatpush1.bf16.msra.mxu0 %v859
    %1372 = vmatprep.subr.bf16.mxu0 %v864
    %1373 = vmatpush1.bf16.msra.mxu0 %v863
    %1374 = vmatprep.subr.bf16.mxu0 %v868
    %1375 = vmatpush1.bf16.msra.mxu0 %v867
    %1376 = vmatprep.subr.bf16.mxu0 %v872
    %1377 = vmatpush1.bf16.msra.mxu0 %v871
    %1378 = vmatprep.subr.bf16.mxu0 %v876
    %1379 = vmatpush1.bf16.msra.mxu0 %v875
    %1380 = vmatprep.subr.bf16.mxu0 %v880
    %1381 = vmatpush1.bf16.msra.mxu0 %v879
    %1382 = vmatprep.subr.bf16.mxu0 0
    %1383 = vmatpush1.bf16.msra.mxu0 0
    %1384 = vmatprep.subr.bf16.mxu0 0
    %1385 = vmatpush1.bf16.msra.mxu0 0
    %1386 = vmatprep.subr.bf16.mxu0 0
    %1387 = vmatpush1.bf16.msra.mxu0 0
    %1388 = vmatprep.subr.bf16.mxu0 0
    %1389 = vmatpush1.bf16.msra.mxu0 0
    %1390 = vmatprep.subr.bf16.mxu0 0
    %1391 = vmatpush1.bf16.msra.mxu0 0
    %1392 = vmatprep.subr.bf16.mxu0 0
    %1393 = vmatpush1.bf16.msra.mxu0 0
    %1394 = vmatprep.subr.bf16.mxu0 0
    %1395 = vmatpush1.bf16.msra.mxu0 0
    %1396 = vmatprep.subr.bf16.mxu0 0
    %1397 = vmatpush1.bf16.msra.mxu0 0
    %1398 = vmatprep.mubr.bf16.mxu0 0
    %1399 = vmatmul.mubr.bf16.gmra.mrb[0].mxu0 %v1324
    %v1400 = vpop.f32.mrb[0].mxu0
    %v1401 = vadd.f32 0.0, %v1400
    %v1402 = vpop.f32.mrb[0].mxu0
    %v1403 = vadd.f32 0.0, %v1402
    %v1404 = vpop.f32.mrb[0].mxu0
    %v1405 = vpop.f32.mrb[0].mxu0
    %1406 = vdwg.mxu0
    %v1407 = vadd.f32 %v1318, %v1360
    %v1408 = vadd.f32 %v1319, %v1362
    %v1409 = vadd.f32 %v1320, %v1401
    %v1410 = vadd.f32 %v1321, %v1403
    %v1411 = vtanh.pop %v1407
    %v1412 = vtanh.pop %v1408
    %v1413 = vtanh.pop %v1409
    %v1414 = vtanh.pop %v1410
    %v1415 = vmul.f32 %v1411, 0.5
    %v1416 = vadd.f32 %v1415, 0.5
    %v1417 = vmul.f32 %v1412, 0.5
    %v1418 = vadd.f32 %v1417, 0.5
    %v1419 = vmul.f32 %v1414, 0.5
    %v1420 = vadd.f32 %v1419, 0.5
    %v1421 = vmul.f32 %v1418, %v1323
    %v1422 = vmul.f32 %v1416, %v1413
    %v1423 = vadd.f32 %v1421, %v1422
    %v1424 = vtanh.pop %v1423
    %v1425 = vmul.f32 %v1420, %v1424
    %s1426 = scalar_lea.vmem [#allocation3], 192
    %v1427 = vld [vmem:[%s1426] sm:$0xff]
    %v1428 = vld [vmem:[%s1426 + $0x8] sm:$0xff]
    %v1429 = vld [vmem:[%s1426 + $0x10] sm:$0xff]
    %v1430 = vld [vmem:[%s1426 + $0x18] sm:$0xff]
    %v1431 = vld [vmem:[#allocation6] sm:$0xff]
    %v1432 = vld [vmem:[#allocation7] sm:$0xff]
    %v1433 = vpack.c.bf16 %v1431, %v1431
    %1434 = vmatprep.subr.bf16.mxu0 %v1119
    %1435 = vmatpush1.bf16.msra.mxu0 %v1118
    %1436 = vmatprep.subr.bf16.mxu0 %v1123
    %1437 = vmatpush1.bf16.msra.mxu0 %v1122
    %1438 = vmatprep.subr.bf16.mxu0 %v1127
    %1439 = vmatpush1.bf16.msra.mxu0 %v1126
    %1440 = vmatprep.subr.bf16.mxu0 %v1131
    %1441 = vmatpush1.bf16.msra.mxu0 %v1130
    %1442 = vmatprep.subr.bf16.mxu0 %v1135
    %1443 = vmatpush1.bf16.msra.mxu0 %v1134
    %1444 = vmatprep.subr.bf16.mxu0 %v1139
    %1445 = vmatpush1.bf16.msra.mxu0 %v1138
    %1446 = vmatprep.subr.bf16.mxu0 %v1143
    %1447 = vmatpush1.bf16.msra.mxu0 %v1142
    %1448 = vmatprep.subr.bf16.mxu0 %v1147
    %1449 = vmatpush1.bf16.msra.mxu0 %v1146
    %1450 = vmatprep.subr.bf16.mxu0 0
    %1451 = vmatpush1.bf16.msra.mxu0 0
    %1452 = vmatprep.subr.bf16.mxu0 0
    %1453 = vmatpush1.bf16.msra.mxu0 0
    %1454 = vmatprep.subr.bf16.mxu0 0
    %1455 = vmatpush1.bf16.msra.mxu0 0
    %1456 = vmatprep.subr.bf16.mxu0 0
    %1457 = vmatpush1.bf16.msra.mxu0 0
    %1458 = vmatprep.subr.bf16.mxu0 0
    %1459 = vmatpush1.bf16.msra.mxu0 0
    %1460 = vmatprep.subr.bf16.mxu0 0
    %1461 = vmatpush1.bf16.msra.mxu0 0
    %1462 = vmatprep.subr.bf16.mxu0 0
    %1463 = vmatpush1.bf16.msra.mxu0 0
    %1464 = vmatprep.subr.bf16.mxu0 0
    %1465 = vmatpush1.bf16.msra.mxu0 0
    %1466 = vmatprep.mubr.bf16.mxu0 0
    %1467 = vmatmul.mubr.bf16.gmra.mrb[0].mxu0 %v1433
    %v1468 = vpop.f32.mrb[0].mxu0
    %v1469 = vadd.f32 0.0, %v1468
    %v1470 = vpop.f32.mrb[0].mxu0
    %v1471 = vadd.f32 0.0, %v1470
    %v1472 = vpop.f32.mrb[0].mxu0
    %v1473 = vpop.f32.mrb[0].mxu0
    %1474 = vdwg.mxu0
    %1475 = vmatprep.subr.bf16.mxu0 %v1121
    %1476 = vmatpush1.bf16.msra.mxu0 %v1120
    %1477 = vmatprep.subr.bf16.mxu0 %v1125
    %1478 = vmatpush1.bf16.msra.mxu0 %v1124
    %1479 = vmatprep.subr.bf16.mxu0 %v1129
    %1480 = vmatpush1.bf16.msra.mxu0 %v1128
    %1481 = vmatprep.subr.bf16.mxu0 %v1133
    %1482 = vmatpush1.bf16.msra.mxu0 %v1132
    %1483 = vmatprep.subr.bf16.mxu0 %v1137
    %1484 = vmatpush1.bf16.msra.mxu0 %v1136
    %1485 = vmatprep.subr.bf16.mxu0 %v1141
    %1486 = vmatpush1.bf16.msra.mxu0 %v1140
    %1487 = vmatprep.subr.bf16.mxu0 %v1145
    %1488 = vmatpush1.bf16.msra.mxu0 %v1144
    %1489 = vmatprep.subr.bf16.mxu0 %v1149
    %1490 = vmatpush1.bf16.msra.mxu0 %v1148
    %1491 = vmatprep.subr.bf16.mxu0 0
    %1492 = vmatpush1.bf16.msra.mxu0 0
    %1493 = vmatprep.subr.bf16.mxu0 0
    %1494 = vmatpush1.bf16.msra.mxu0 0
    %1495 = vmatprep.subr.bf16.mxu0 0
    %1496 = vmatpush1.bf16.msra.mxu0 0
    %1497 = vmatprep.subr.bf16.mxu0 0
    %1498 = vmatpush1.bf16.msra.mxu0 0
    %1499 = vmatprep.subr.bf16.mxu0 0
    %1500 = vmatpush1.bf16.msra.mxu0 0
    %1501 = vmatprep.subr.bf16.mxu0 0
    %1502 = vmatpush1.bf16.msra.mxu0 0
    %1503 = vmatprep.subr.bf16.mxu0 0
    %1504 = vmatpush1.bf16.msra.mxu0 0
    %1505 = vmatprep.subr.bf16.mxu0 0
    %1506 = vmatpush1.bf16.msra.mxu0 0
    %1507 = vmatprep.mubr.bf16.mxu0 0
    %1508 = vmatmul.mubr.bf16.gmra.mrb[0].mxu0 %v1433
    %v1509 = vpop.f32.mrb[0].mxu0
    %v1510 = vadd.f32 0.0, %v1509
    %v1511 = vpop.f32.mrb[0].mxu0
    %v1512 = vadd.f32 0.0, %v1511
    %v1513 = vpop.f32.mrb[0].mxu0
    %v1514 = vpop.f32.mrb[0].mxu0
    %1515 = vdwg.mxu0
    %v1516 = vadd.f32 %v1427, %v1469
    %v1517 = vadd.f32 %v1428, %v1471
    %v1518 = vadd.f32 %v1429, %v1510
    %v1519 = vadd.f32 %v1430, %v1512
    %v1520 = vtanh.pop %v1516
    %v1521 = vtanh.pop %v1517
    %v1522 = vtanh.pop %v1518
    %v1523 = vtanh.pop %v1519
    %v1524 = vmul.f32 %v1520, 0.5
    %v1525 = vadd.f32 %v1524, 0.5
    %v1526 = vmul.f32 %v1521, 0.5
    %v1527 = vadd.f32 %v1526, 0.5
    %v1528 = vmul.f32 %v1523, 0.5
    %v1529 = vadd.f32 %v1528, 0.5
    %v1530 = vmul.f32 %v1527, %v1432
    %v1531 = vmul.f32 %v1525, %v1522
    %v1532 = vadd.f32 %v1530, %v1531
    %v1533 = vtanh.pop %v1532
    %v1534 = vmul.f32 %v1529, %v1533
    %v1535 = vstv %s1315
    %vm1536 = vcmp.lt.s32.totalorder %v1535, %v99
    %v1537 = vsel %vm1536, 1, 0
    %1538 = vset.pattern.permute.xlu0 0
    %1539 = vperm.xlu0 %1538, %v1537
    %v1540 = vpop.permute.xlu0 %1539
    %vm1541 = vcmp.eq.s32.totalorder %v1540, 1
    %v1542 = vstv %s1316
    %vm1543 = vcmp.lt.s32.totalorder %v1542, %v99
    %v1544 = vsel %vm1543, 1, 0
    %1545 = vset.pattern.permute.xlu0 0
    %1546 = vperm.xlu0 %1545, %v1544
    %v1547 = vpop.permute.xlu0 %1546
    %vm1548 = vcmp.eq.s32.totalorder %v1547, 1
    %v1549 = vsel %vm1541, %v1425, %v1322
    %1550 = vst [vmem:[#allocation4] sm:$0xff] %v1549
    %v1551 = vld [vmem:[#allocation5] sm:$0xff]
    %v1552 = vsel %vm1541, %v1423, %v1551
    %1553 = vst [vmem:[#allocation5] sm:$0xff] %v1552
    %v1554 = vld [vmem:[#allocation6] sm:$0xff]
    %v1555 = vsel %vm1548, %v1534, %v1554
    %1556 = vst [vmem:[#allocation6] sm:$0xff] %v1555
    %v1557 = vld [vmem:[#allocation7] sm:$0xff]
    %v1558 = vsel %vm1548, %v1532, %v1557
    %1559 = vst [vmem:[#allocation7] sm:$0xff] %v1558
    %v1560 = vsel %vm1541, %v1425, 0.0
    %v1561 = vpack.c.bf16 %v1560, %v1560
    %s1562 = scalar_lea.vmem [#allocation16], 4
    %1563 = vst [vmem:[%s1562] sm:$0xf] %v1561
    %v1564 = vsel %vm1548, %v1534, 0.0
    %v1565 = vpack.c.bf16 %v1564, %v1564
    %s1566 = scalar_lea.vmem [#allocation17], 24
    %1567 = vst [vmem:[%s1566] sm:$0xf] %v1565
    %s1568 = sadd.s32 %s744, 2
    %s1569 = ssub.s32 5, %s744
    %s1570 = scalar_lea.vmem [#allocation2], 64
    %v1571 = vld [vmem:[%s1570] sm:$0xff]
    %v1572 = vld [vmem:[%s1570 + $0x8] sm:$0xff]
    %v1573 = vld [vmem:[%s1570 + $0x10] sm:$0xff]
    %v1574 = vld [vmem:[%s1570 + $0x18] sm:$0xff]
    %v1575 = vld [vmem:[#allocation4] sm:$0xff]
    %v1576 = vld [vmem:[#allocation5] sm:$0xff]
    %v1577 = vpack.c.bf16 %v1575, %v1575
    %1578 = vmatprep.subr.bf16.mxu0 %v850
    %1579 = vmatpush1.bf16.msra.mxu0 %v849
    %1580 = vmatprep.subr.bf16.mxu0 %v854
    %1581 = vmatpush1.bf16.msra.mxu0 %v853
    %1582 = vmatprep.subr.bf16.mxu0 %v858
    %1583 = vmatpush1.bf16.msra.mxu0 %v857
    %1584 = vmatprep.subr.bf16.mxu0 %v862
    %1585 = vmatpush1.bf16.msra.mxu0 %v861
    %1586 = vmatprep.subr.bf16.mxu0 %v866
    %1587 = vmatpush1.bf16.msra.mxu0 %v865
    %1588 = vmatprep.subr.bf16.mxu0 %v870
    %1589 = vmatpush1.bf16.msra.mxu0 %v869
    %1590 = vmatprep.subr.bf16.mxu0 %v874
    %1591 = vmatpush1.bf16.msra.mxu0 %v873
    %1592 = vmatprep.subr.bf16.mxu0 %v878
    %1593 = vmatpush1.bf16.msra.mxu0 %v877
    %1594 = vmatprep.subr.bf16.mxu0 0
    %1595 = vmatpush1.bf16.msra.mxu0 0
    %1596 = vmatprep.subr.bf16.mxu0 0
    %1597 = vmatpush1.bf16.msra.mxu0 0
    %1598 = vmatprep.subr.bf16.mxu0 0
    %1599 = vmatpush1.bf16.msra.mxu0 0
    %1600 = vmatprep.subr.bf16.mxu0 0
    %1601 = vmatpush1.bf16.msra.mxu0 0
    %1602 = vmatprep.subr.bf16.mxu0 0
    %1603 = vmatpush1.bf16.msra.mxu0 0
    %1604 = vmatprep.subr.bf16.mxu0 0
    %1605 = vmatpush1.bf16.msra.mxu0 0
    %1606 = vmatprep.subr.bf16.mxu0 0
    %1607 = vmatpush1.bf16.msra.mxu0 0
    %1608 = vmatprep.subr.bf16.mxu0 0
    %1609 = vmatpush1.bf16.msra.mxu0 0
    %1610 = vmatprep.mubr.bf16.mxu0 0
    %1611 = vmatmul.mubr.bf16.gmra.mrb[0].mxu0 %v1577
    %v1612 = vpop.f32.mrb[0].mxu0
    %v1613 = vadd.f32 0.0, %v1612
    %v1614 = vpop.f32.mrb[0].mxu0
    %v1615 = vadd.f32 0.0, %v1614
    %v1616 = vpop.f32.mrb[0].mxu0
    %v1617 = vpop.f32.mrb[0].mxu0
    %1618 = vdwg.mxu0
    %1619 = vmatprep.subr.bf16.mxu0 %v852
    %1620 = vmatpush1.bf16.msra.mxu0 %v851
    %1621 = vmatprep.subr.bf16.mxu0 %v856
    %1622 = vmatpush1.bf16.msra.mxu0 %v855
    %1623 = vmatprep.subr.bf16.mxu0 %v860
    %1624 = vmatpush1.bf16.msra.mxu0 %v859
    %1625 = vmatprep.subr.bf16.mxu0 %v864
    %1626 = vmatpush1.bf16.msra.mxu0 %v863
    %1627 = vmatprep.subr.bf16.mxu0 %v868
    %1628 = vmatpush1.bf16.msra.mxu0 %v867
    %1629 = vmatprep.subr.bf16.mxu0 %v872
    %1630 = vmatpush1.bf16.msra.mxu0 %v871
    %1631 = vmatprep.subr.bf16.mxu0 %v876
    %1632 = vmatpush1.bf16.msra.mxu0 %v875
    %1633 = vmatprep.subr.bf16.mxu0 %v880
    %1634 = vmatpush1.bf16.msra.mxu0 %v879
    %1635 = vmatprep.subr.bf16.mxu0 0
    %1636 = vmatpush1.bf16.msra.mxu0 0
    %1637 = vmatprep.subr.bf16.mxu0 0
    %1638 = vmatpush1.bf16.msra.mxu0 0
    %1639 = vmatprep.subr.bf16.mxu0 0
    %1640 = vmatpush1.bf16.msra.mxu0 0
    %1641 = vmatprep.subr.bf16.mxu0 0
    %1642 = vmatpush1.bf16.msra.mxu0 0
    %1643 = vmatprep.subr.bf16.mxu0 0
    %1644 = vmatpush1.bf16.msra.mxu0 0
    %1645 = vmatprep.subr.bf16.mxu0 0
    %1646 = vmatpush1.bf16.msra.mxu0 0
    %1647 = vmatprep.subr.bf16.mxu0 0
    %1648 = vmatpush1.bf16.msra.mxu0 0
    %1649 = vmatprep.subr.bf16.mxu0 0
    %1650 = vmatpush1.bf16.msra.mxu0 0
    %1651 = vmatprep.mubr.bf16.mxu0 0
    %1652 = vmatmul.mubr.bf16.gmra.mrb[0].mxu0 %v1577
    %v1653 = vpop.f32.mrb[0].mxu0
    %v1654 = vadd.f32 0.0, %v1653
    %v1655 = vpop.f32.mrb[0].mxu0
    %v1656 = vadd.f32 0.0, %v1655
    %v1657 = vpop.f32.mrb[0].mxu0
    %v1658 = vpop.f32.mrb[0].mxu0
    %1659 = vdwg.mxu0
    %v1660 = vadd.f32 %v1571, %v1613
    %v1661 = vadd.f32 %v1572, %v1615
    %v1662 = vadd.f32 %v1573, %v1654
    %v1663 = vadd.f32 %v1574, %v1656
    %v1664 = vtanh.pop %v1660
    %v1665 = vtanh.pop %v1661
    %v1666 = vtanh.pop %v1662
    %v1667 = vtanh.pop %v1663
    %v1668 = vmul.f32 %v1664, 0.5
    %v1669 = vadd.f32 %v1668, 0.5
    %v1670 = vmul.f32 %v1665, 0.5
    %v1671 = vadd.f32 %v1670, 0.5
    %v1672 = vmul.f32 %v1667, 0.5
    %v1673 = vadd.f32 %v1672, 0.5
    %v1674 = vmul.f32 %v1671, %v1576
    %v1675 = vmul.f32 %v1669, %v1666
    %v1676 = vadd.f32 %v1674, %v1675
    %v1677 = vtanh.pop %v1676
    %v1678 = vmul.f32 %v1673, %v1677
    %s1679 = scalar_lea.vmem [#allocation3], 160
    %v1680 = vld [vmem:[%s1679] sm:$0xff]
    %v1681 = vld [vmem:[%s1679 + $0x8] sm:$0xff]
    %v1682 = vld [vmem:[%s1679 + $0x10] sm:$0xff]
    %v1683 = vld [vmem:[%s1679 + $0x18] sm:$0xff]
    %v1684 = vld [vmem:[#allocation6] sm:$0xff]
    %v1685 = vld [vmem:[#allocation7] sm:$0xff]
    %v1686 = vpack.c.bf16 %v1684, %v1684
    %1687 = vmatprep.subr.bf16.mxu0 %v1119
    %1688 = vmatpush1.bf16.msra.mxu0 %v1118
    %1689 = vmatprep.subr.bf16.mxu0 %v1123
    %1690 = vmatpush1.bf16.msra.mxu0 %v1122
    %1691 = vmatprep.subr.bf16.mxu0 %v1127
    %1692 = vmatpush1.bf16.msra.mxu0 %v1126
    %1693 = vmatprep.subr.bf16.mxu0 %v1131
    %1694 = vmatpush1.bf16.msra.mxu0 %v1130
    %1695 = vmatprep.subr.bf16.mxu0 %v1135
    %1696 = vmatpush1.bf16.msra.mxu0 %v1134
    %1697 = vmatprep.subr.bf16.mxu0 %v1139
    %1698 = vmatpush1.bf16.msra.mxu0 %v1138
    %1699 = vmatprep.subr.bf16.mxu0 %v1143
    %1700 = vmatpush1.bf16.msra.mxu0 %v1142
    %1701 = vmatprep.subr.bf16.mxu0 %v1147
    %1702 = vmatpush1.bf16.msra.mxu0 %v1146
    %1703 = vmatprep.subr.bf16.mxu0 0
    %1704 = vmatpush1.bf16.msra.mxu0 0
    %1705 = vmatprep.subr.bf16.mxu0 0
    %1706 = vmatpush1.bf16.msra.mxu0 0
    %1707 = vmatprep.subr.bf16.mxu0 0
    %1708 = vmatpush1.bf16.msra.mxu0 0
    %1709 = vmatprep.subr.bf16.mxu0 0
    %1710 = vmatpush1.bf16.msra.mxu0 0
    %1711 = vmatprep.subr.bf16.mxu0 0
    %1712 = vmatpush1.bf16.msra.mxu0 0
    %1713 = vmatprep.subr.bf16.mxu0 0
    %1714 = vmatpush1.bf16.msra.mxu0 0
    %1715 = vmatprep.subr.bf16.mxu0 0
    %1716 = vmatpush1.bf16.msra.mxu0 0
    %1717 = vmatprep.subr.bf16.mxu0 0
    %1718 = vmatpush1.bf16.msra.mxu0 0
    %1719 = vmatprep.mubr.bf16.mxu0 0
    %1720 = vmatmul.mubr.bf16.gmra.mrb[0].mxu0 %v1686
    %v1721 = vpop.f32.mrb[0].mxu0
    %v1722 = vadd.f32 0.0, %v1721
    %v1723 = vpop.f32.mrb[0].mxu0
    %v1724 = vadd.f32 0.0, %v1723
    %v1725 = vpop.f32.mrb[0].mxu0
    %v1726 = vpop.f32.mrb[0].mxu0
    %1727 = vdwg.mxu0
    %1728 = vmatprep.subr.bf16.mxu0 %v1121
    %1729 = vmatpush1.bf16.msra.mxu0 %v1120
    %1730 = vmatprep.subr.bf16.mxu0 %v1125
    %1731 = vmatpush1.bf16.msra.mxu0 %v1124
    %1732 = vmatprep.subr.bf16.mxu0 %v1129
    %1733 = vmatpush1.bf16.msra.mxu0 %v1128
    %1734 = vmatprep.subr.bf16.mxu0 %v1133
    %1735 = vmatpush1.bf16.msra.mxu0 %v1132
    %1736 = vmatprep.subr.bf16.mxu0 %v1137
    %1737 = vmatpush1.bf16.msra.mxu0 %v1136
    %1738 = vmatprep.subr.bf16.mxu0 %v1141
    %1739 = vmatpush1.bf16.msra.mxu0 %v1140
    %1740 = vmatprep.subr.bf16.mxu0 %v1145
    %1741 = vmatpush1.bf16.msra.mxu0 %v1144
    %1742 = vmatprep.subr.bf16.mxu0 %v1149
    %1743 = vmatpush1.bf16.msra.mxu0 %v1148
    %1744 = vmatprep.subr.bf16.mxu0 0
    %1745 = vmatpush1.bf16.msra.mxu0 0
    %1746 = vmatprep.subr.bf16.mxu0 0
    %1747 = vmatpush1.bf16.msra.mxu0 0
    %1748 = vmatprep.subr.bf16.mxu0 0
    %1749 = vmatpush1.bf16.msra.mxu0 0
    %1750 = vmatprep.subr.bf16.mxu0 0
    %1751 = vmatpush1.bf16.msra.mxu0 0
    %1752 = vmatprep.subr.bf16.mxu0 0
    %1753 = vmatpush1.bf16.msra.mxu0 0
    %1754 = vmatprep.subr.bf16.mxu0 0
    %1755 = vmatpush1.bf16.msra.mxu0 0
    %1756 = vmatprep.subr.bf16.mxu0 0
    %1757 = vmatpush1.bf16.msra.mxu0 0
    %1758 = vmatprep.subr.bf16.mxu0 0
    %1759 = vmatpush1.bf16.msra.mxu0 0
    %1760 = vmatprep.mubr.bf16.mxu0 0
    %1761 = vmatmul.mubr.bf16.gmra.mrb[0].mxu0 %v1686
    %v1762 = vpop.f32.mrb[0].mxu0
    %v1763 = vadd.f32 0.0, %v1762
    %v1764 = vpop.f32.mrb[0].mxu0
    %v1765 = vadd.f32 0.0, %v1764
    %v1766 = vpop.f32.mrb[0].mxu0
    %v1767 = vpop.f32.mrb[0].mxu0
    %1768 = vdwg.mxu0
    %v1769 = vadd.f32 %v1680, %v1722
    %v1770 = vadd.f32 %v1681, %v1724
    %v1771 = vadd.f32 %v1682, %v1763
    %v1772 = vadd.f32 %v1683, %v1765
    %v1773 = vtanh.pop %v1769
    %v1774 = vtanh.pop %v1770
    %v1775 = vtanh.pop %v1771
    %v1776 = vtanh.pop %v1772
    %v1777 = vmul.f32 %v1773, 0.5
    %v1778 = vadd.f32 %v1777, 0.5
    %v1779 = vmul.f32 %v1774, 0.5
    %v1780 = vadd.f32 %v1779, 0.5
    %v1781 = vmul.f32 %v1776, 0.5
    %v1782 = vadd.f32 %v1781, 0.5
    %v1783 = vmul.f32 %v1780, %v1685
    %v1784 = vmul.f32 %v1778, %v1775
    %v1785 = vadd.f32 %v1783, %v1784
    %v1786 = vtanh.pop %v1785
    %v1787 = vmul.f32 %v1782, %v1786
    %v1788 = vstv %s1568
    %vm1789 = vcmp.lt.s32.totalorder %v1788, %v99
    %v1790 = vsel %vm1789, 1, 0
    %1791 = vset.pattern.permute.xlu0 0
    %1792 = vperm.xlu0 %1791, %v1790
    %v1793 = vpop.permute.xlu0 %1792
    %vm1794 = vcmp.eq.s32.totalorder %v1793, 1
    %v1795 = vstv %s1569
    %vm1796 = vcmp.lt.s32.totalorder %v1795, %v99
    %v1797 = vsel %vm1796, 1, 0
    %1798 = vset.pattern.permute.xlu0 0
    %1799 = vperm.xlu0 %1798, %v1797
    %v1800 = vpop.permute.xlu0 %1799
    %vm1801 = vcmp.eq.s32.totalorder %v1800, 1
    %v1802 = vsel %vm1794, %v1678, %v1575
    %1803 = vst [vmem:[#allocation4] sm:$0xff] %v1802
    %v1804 = vld [vmem:[#allocation5] sm:$0xff]
    %v1805 = vsel %vm1794, %v1676, %v1804
    %1806 = vst [vmem:[#allocation5] sm:$0xff] %v1805
    %v1807 = vld [vmem:[#allocation6] sm:$0xff]
    %v1808 = vsel %vm1801, %v1787, %v1807
    %1809 = vst [vmem:[#allocation6] sm:$0xff] %v1808
    %v1810 = vld [vmem:[#allocation7] sm:$0xff]
    %v1811 = vsel %vm1801, %v1785, %v1810
    %1812 = vst [vmem:[#allocation7] sm:$0xff] %v1811
    %v1813 = vsel %vm1794, %v1678, 0.0
    %v1814 = vpack.c.bf16 %v1813, %v1813
    %s1815 = scalar_lea.vmem [#allocation16], 8
    %1816 = vst [vmem:[%s1815] sm:$0xf] %v1814
    %v1817 = vsel %vm1801, %v1787, 0.0
    %v1818 = vpack.c.bf16 %v1817, %v1817
    %s1819 = scalar_lea.vmem [#allocation17], 20
    %1820 = vst [vmem:[%s1819] sm:$0xf] %v1818
    %s1821 = sadd.s32 %s744, 3
    %s1822 = ssub.s32 4, %s744
    %s1823 = scalar_lea.vmem [#allocation2], 96
    %v1824 = vld [vmem:[%s1823] sm:$0xff]
    %v1825 = vld [vmem:[%s1823 + $0x8] sm:$0xff]
    %v1826 = vld [vmem:[%s1823 + $0x10] sm:$0xff]
    %v1827 = vld [vmem:[%s1823 + $0x18] sm:$0xff]
    %v1828 = vld [vmem:[#allocation4] sm:$0xff]
    %v1829 = vld [vmem:[#allocation5] sm:$0xff]
    %v1830 = vpack.c.bf16 %v1828, %v1828
    %1831 = vmatprep.subr.bf16.mxu0 %v850
    %1832 = vmatpush1.bf16.msra.mxu0 %v849
    %1833 = vmatprep.subr.bf16.mxu0 %v854
    %1834 = vmatpush1.bf16.msra.mxu0 %v853
    %1835 = vmatprep.subr.bf16.mxu0 %v858
    %1836 = vmatpush1.bf16.msra.mxu0 %v857
    %1837 = vmatprep.subr.bf16.mxu0 %v862
    %1838 = vmatpush1.bf16.msra.mxu0 %v861
    %1839 = vmatprep.subr.bf16.mxu0 %v866
    %1840 = vmatpush1.bf16.msra.mxu0 %v865
    %1841 = vmatprep.subr.bf16.mxu0 %v870
    %1842 = vmatpush1.bf16.msra.mxu0 %v869
    %1843 = vmatprep.subr.bf16.mxu0 %v874
    %1844 = vmatpush1.bf16.msra.mxu0 %v873
    %1845 = vmatprep.subr.bf16.mxu0 %v878
    %1846 = vmatpush1.bf16.msra.mxu0 %v877
    %1847 = vmatprep.subr.bf16.mxu0 0
    %1848 = vmatpush1.bf16.msra.mxu0 0
    %1849 = vmatprep.subr.bf16.mxu0 0
    %1850 = vmatpush1.bf16.msra.mxu0 0
    %1851 = vmatprep.subr.bf16.mxu0 0
    %1852 = vmatpush1.bf16.msra.mxu0 0
    %1853 = vmatprep.subr.bf16.mxu0 0
    %1854 = vmatpush1.bf16.msra.mxu0 0
    %1855 = vmatprep.subr.bf16.mxu0 0
    %1856 = vmatpush1.bf16.msra.mxu0 0
    %1857 = vmatprep.subr.bf16.mxu0 0
    %1858 = vmatpush1.bf16.msra.mxu0 0
    %1859 = vmatprep.subr.bf16.mxu0 0
    %1860 = vmatpush1.bf16.msra.mxu0 0
    %1861 = vmatprep.subr.bf16.mxu0 0
    %1862 = vmatpush1.bf16.msra.mxu0 0
    %1863 = vmatprep.mubr.bf16.mxu0 0
    %1864 = vmatmul.mubr.bf16.gmra.mrb[0].mxu0 %v1830
    %v1865 = vpop.f32.mrb[0].mxu0
    %v1866 = vadd.f32 0.0, %v1865
    %v1867 = vpop.f32.mrb[0].mxu0
    %v1868 = vadd.f32 0.0, %v1867
    %v1869 = vpop.f32.mrb[0].mxu0
    %v1870 = vpop.f32.mrb[0].mxu0
    %1871 = vdwg.mxu0
    %1872 = vmatprep.subr.bf16.mxu0 %v852
    %1873 = vmatpush1.bf16.msra.mxu0 %v851
    %1874 = vmatprep.subr.bf16.mxu0 %v856
    %1875 = vmatpush1.bf16.msra.mxu0 %v855
    %1876 = vmatprep.subr.bf16.mxu0 %v860
    %1877 = vmatpush1.bf16.msra.mxu0 %v859
    %1878 = vmatprep.subr.bf16.mxu0 %v864
    %1879 = vmatpush1.bf16.msra.mxu0 %v863
    %1880 = vmatprep.subr.bf16.mxu0 %v868
    %1881 = vmatpush1.bf16.msra.mxu0 %v867
    %1882 = vmatprep.subr.bf16.mxu0 %v872
    %1883 = vmatpush1.bf16.msra.mxu0 %v871
    %1884 = vmatprep.subr.bf16.mxu0 %v876
    %1885 = vmatpush1.bf16.msra.mxu0 %v875
    %1886 = vmatprep.subr.bf16.mxu0 %v880
    %1887 = vmatpush1.bf16.msra.mxu0 %v879
    %1888 = vmatprep.subr.bf16.mxu0 0
    %1889 = vmatpush1.bf16.msra.mxu0 0
    %1890 = vmatprep.subr.bf16.mxu0 0
    %1891 = vmatpush1.bf16.msra.mxu0 0
    %1892 = vmatprep.subr.bf16.mxu0 0
    %1893 = vmatpush1.bf16.msra.mxu0 0
    %1894 = vmatprep.subr.bf16.mxu0 0
    %1895 = vmatpush1.bf16.msra.mxu0 0
    %1896 = vmatprep.subr.bf16.mxu0 0
    %1897 = vmatpush1.bf16.msra.mxu0 0
    %1898 = vmatprep.subr.bf16.mxu0 0
    %1899 = vmatpush1.bf16.msra.mxu0 0
    %1900 = vmatprep.subr.bf16.mxu0 0
    %1901 = vmatpush1.bf16.msra.mxu0 0
    %1902 = vmatprep.subr.bf16.mxu0 0
    %1903 = vmatpush1.bf16.msra.mxu0 0
    %1904 = vmatprep.mubr.bf16.mxu0 0
    %1905 = vmatmul.mubr.bf16.gmra.mrb[0].mxu0 %v1830
    %v1906 = vpop.f32.mrb[0].mxu0
    %v1907 = vadd.f32 0.0, %v1906
    %v1908 = vpop.f32.mrb[0].mxu0
    %v1909 = vadd.f32 0.0, %v1908
    %v1910 = vpop.f32.mrb[0].mxu0
    %v1911 = vpop.f32.mrb[0].mxu0
    %1912 = vdwg.mxu0
    %v1913 = vadd.f32 %v1824, %v1866
    %v1914 = vadd.f32 %v1825, %v1868
    %v1915 = vadd.f32 %v1826, %v1907
    %v1916 = vadd.f32 %v1827, %v1909
    %v1917 = vtanh.pop %v1913
    %v1918 = vtanh.pop %v1914
    %v1919 = vtanh.pop %v1915
    %v1920 = vtanh.pop %v1916
    %v1921 = vmul.f32 %v1917, 0.5
    %v1922 = vadd.f32 %v1921, 0.5
    %v1923 = vmul.f32 %v1918, 0.5
    %v1924 = vadd.f32 %v1923, 0.5
    %v1925 = vmul.f32 %v1920, 0.5
    %v1926 = vadd.f32 %v1925, 0.5
    %v1927 = vmul.f32 %v1924, %v1829
    %v1928 = vmul.f32 %v1922, %v1919
    %v1929 = vadd.f32 %v1927, %v1928
    %v1930 = vtanh.pop %v1929
    %v1931 = vmul.f32 %v1926, %v1930
    %s1932 = scalar_lea.vmem [#allocation3], 128
    %v1933 = vld [vmem:[%s1932] sm:$0xff]
    %v1934 = vld [vmem:[%s1932 + $0x8] sm:$0xff]
    %v1935 = vld [vmem:[%s1932 + $0x10] sm:$0xff]
    %v1936 = vld [vmem:[%s1932 + $0x18] sm:$0xff]
    %v1937 = vld [vmem:[#allocation6] sm:$0xff]
    %v1938 = vld [vmem:[#allocation7] sm:$0xff]
    %v1939 = vpack.c.bf16 %v1937, %v1937
    %1940 = vmatprep.subr.bf16.mxu0 %v1119
    %1941 = vmatpush1.bf16.msra.mxu0 %v1118
    %1942 = vmatprep.subr.bf16.mxu0 %v1123
    %1943 = vmatpush1.bf16.msra.mxu0 %v1122
    %1944 = vmatprep.subr.bf16.mxu0 %v1127
    %1945 = vmatpush1.bf16.msra.mxu0 %v1126
    %1946 = vmatprep.subr.bf16.mxu0 %v1131
    %1947 = vmatpush1.bf16.msra.mxu0 %v1130
    %1948 = vmatprep.subr.bf16.mxu0 %v1135
    %1949 = vmatpush1.bf16.msra.mxu0 %v1134
    %1950 = vmatprep.subr.bf16.mxu0 %v1139
    %1951 = vmatpush1.bf16.msra.mxu0 %v1138
    %1952 = vmatprep.subr.bf16.mxu0 %v1143
    %1953 = vmatpush1.bf16.msra.mxu0 %v1142
    %1954 = vmatprep.subr.bf16.mxu0 %v1147
    %1955 = vmatpush1.bf16.msra.mxu0 %v1146
    %1956 = vmatprep.subr.bf16.mxu0 0
    %1957 = vmatpush1.bf16.msra.mxu0 0
    %1958 = vmatprep.subr.bf16.mxu0 0
    %1959 = vmatpush1.bf16.msra.mxu0 0
    %1960 = vmatprep.subr.bf16.mxu0 0
    %1961 = vmatpush1.bf16.msra.mxu0 0
    %1962 = vmatprep.subr.bf16.mxu0 0
    %1963 = vmatpush1.bf16.msra.mxu0 0
    %1964 = vmatprep.subr.bf16.mxu0 0
    %1965 = vmatpush1.bf16.msra.mxu0 0
    %1966 = vmatprep.subr.bf16.mxu0 0
    %1967 = vmatpush1.bf16.msra.mxu0 0
    %1968 = vmatprep.subr.bf16.mxu0 0
    %1969 = vmatpush1.bf16.msra.mxu0 0
    %1970 = vmatprep.subr.bf16.mxu0 0
    %1971 = vmatpush1.bf16.msra.mxu0 0
    %1972 = vmatprep.mubr.bf16.mxu0 0
    %1973 = vmatmul.mubr.bf16.gmra.mrb[0].mxu0 %v1939
    %v1974 = vpop.f32.mrb[0].mxu0
    %v1975 = vadd.f32 0.0, %v1974
    %v1976 = vpop.f32.mrb[0].mxu0
    %v1977 = vadd.f32 0.0, %v1976
    %v1978 = vpop.f32.mrb[0].mxu0
    %v1979 = vpop.f32.mrb[0].mxu0
    %1980 = vdwg.mxu0
    %1981 = vmatprep.subr.bf16.mxu0 %v1121
    %1982 = vmatpush1.bf16.msra.mxu0 %v1120
    %1983 = vmatprep.subr.bf16.mxu0 %v1125
    %1984 = vmatpush1.bf16.msra.mxu0 %v1124
    %1985 = vmatprep.subr.bf16.mxu0 %v1129
    %1986 = vmatpush1.bf16.msra.mxu0 %v1128
    %1987 = vmatprep.subr.bf16.mxu0 %v1133
    %1988 = vmatpush1.bf16.msra.mxu0 %v1132
    %1989 = vmatprep.subr.bf16.mxu0 %v1137
    %1990 = vmatpush1.bf16.msra.mxu0 %v1136
    %1991 = vmatprep.subr.bf16.mxu0 %v1141
    %1992 = vmatpush1.bf16.msra.mxu0 %v1140
    %1993 = vmatprep.subr.bf16.mxu0 %v1145
    %1994 = vmatpush1.bf16.msra.mxu0 %v1144
    %1995 = vmatprep.subr.bf16.mxu0 %v1149
    %1996 = vmatpush1.bf16.msra.mxu0 %v1148
    %1997 = vmatprep.subr.bf16.mxu0 0
    %1998 = vmatpush1.bf16.msra.mxu0 0
    %1999 = vmatprep.subr.bf16.mxu0 0
    %2000 = vmatpush1.bf16.msra.mxu0 0
    %2001 = vmatprep.subr.bf16.mxu0 0
    %2002 = vmatpush1.bf16.msra.mxu0 0
    %2003 = vmatprep.subr.bf16.mxu0 0
    %2004 = vmatpush1.bf16.msra.mxu0 0
    %2005 = vmatprep.subr.bf16.mxu0 0
    %2006 = vmatpush1.bf16.msra.mxu0 0
    %2007 = vmatprep.subr.bf16.mxu0 0
    %2008 = vmatpush1.bf16.msra.mxu0 0
    %2009 = vmatprep.subr.bf16.mxu0 0
    %2010 = vmatpush1.bf16.msra.mxu0 0
    %2011 = vmatprep.subr.bf16.mxu0 0
    %2012 = vmatpush1.bf16.msra.mxu0 0
    %2013 = vmatprep.mubr.bf16.mxu0 0
    %2014 = vmatmul.mubr.bf16.gmra.mrb[0].mxu0 %v1939
    %v2015 = vpop.f32.mrb[0].mxu0
    %v2016 = vadd.f32 0.0, %v2015
    %v2017 = vpop.f32.mrb[0].mxu0
    %v2018 = vadd.f32 0.0, %v2017
    %v2019 = vpop.f32.mrb[0].mxu0
    %v2020 = vpop.f32.mrb[0].mxu0
    %2021 = vdwg.mxu0
    %v2022 = vadd.f32 %v1933, %v1975
    %v2023 = vadd.f32 %v1934, %v1977
    %v2024 = vadd.f32 %v1935, %v2016
    %v2025 = vadd.f32 %v1936, %v2018
    %v2026 = vtanh.pop %v2022
    %v2027 = vtanh.pop %v2023
    %v2028 = vtanh.pop %v2024
    %v2029 = vtanh.pop %v2025
    %v2030 = vmul.f32 %v2026, 0.5
    %v2031 = vadd.f32 %v2030, 0.5
    %v2032 = vmul.f32 %v2027, 0.5
    %v2033 = vadd.f32 %v2032, 0.5
    %v2034 = vmul.f32 %v2029, 0.5
    %v2035 = vadd.f32 %v2034, 0.5
    %v2036 = vmul.f32 %v2033, %v1938
    %v2037 = vmul.f32 %v2031, %v2028
    %v2038 = vadd.f32 %v2036, %v2037
    %v2039 = vtanh.pop %v2038
    %v2040 = vmul.f32 %v2035, %v2039
    %v2041 = vstv %s1821
    %vm2042 = vcmp.lt.s32.totalorder %v2041, %v99
    %v2043 = vsel %vm2042, 1, 0
    %2044 = vset.pattern.permute.xlu0 0
    %2045 = vperm.xlu0 %2044, %v2043
    %v2046 = vpop.permute.xlu0 %2045
    %vm2047 = vcmp.eq.s32.totalorder %v2046, 1
    %v2048 = vstv %s1822
    %vm2049 = vcmp.lt.s32.totalorder %v2048, %v99
    %v2050 = vsel %vm2049, 1, 0
    %2051 = vset.pattern.permute.xlu0 0
    %2052 = vperm.xlu0 %2051, %v2050
    %v2053 = vpop.permute.xlu0 %2052
    %vm2054 = vcmp.eq.s32.totalorder %v2053, 1
    %v2055 = vsel %vm2047, %v1931, %v1828
    %2056 = vst [vmem:[#allocation4] sm:$0xff] %v2055
    %v2057 = vld [vmem:[#allocation5] sm:$0xff]
    %v2058 = vsel %vm2047, %v1929, %v2057
    %2059 = vst [vmem:[#allocation5] sm:$0xff] %v2058
    %v2060 = vld [vmem:[#allocation6] sm:$0xff]
    %v2061 = vsel %vm2054, %v2040, %v2060
    %2062 = vst [vmem:[#allocation6] sm:$0xff] %v2061
    %v2063 = vld [vmem:[#allocation7] sm:$0xff]
    %v2064 = vsel %vm2054, %v2038, %v2063
    %2065 = vst [vmem:[#allocation7] sm:$0xff] %v2064
    %v2066 = vsel %vm2047, %v1931, 0.0
    %v2067 = vpack.c.bf16 %v2066, %v2066
    %s2068 = scalar_lea.vmem [#allocation16], 12
    %2069 = vst [vmem:[%s2068] sm:$0xf] %v2067
    %v2070 = vsel %vm2054, %v2040, 0.0
    %v2071 = vpack.c.bf16 %v2070, %v2070
    %s2072 = scalar_lea.vmem [#allocation17], 16
    %2073 = vst [vmem:[%s2072] sm:$0xf] %v2071
    %s2074 = sadd.s32 %s744, 4
    %s2075 = ssub.s32 3, %s744
    %s2076 = scalar_lea.vmem [#allocation2], 128
    %v2077 = vld [vmem:[%s2076] sm:$0xff]
    %v2078 = vld [vmem:[%s2076 + $0x8] sm:$0xff]
    %v2079 = vld [vmem:[%s2076 + $0x10] sm:$0xff]
    %v2080 = vld [vmem:[%s2076 + $0x18] sm:$0xff]
    %v2081 = vld [vmem:[#allocation4] sm:$0xff]
    %v2082 = vld [vmem:[#allocation5] sm:$0xff]
    %v2083 = vpack.c.bf16 %v2081, %v2081
    %2084 = vmatprep.subr.bf16.mxu0 %v850
    %2085 = vmatpush1.bf16.msra.mxu0 %v849
    %2086 = vmatprep.subr.bf16.mxu0 %v854
    %2087 = vmatpush1.bf16.msra.mxu0 %v853
    %2088 = vmatprep.subr.bf16.mxu0 %v858
    %2089 = vmatpush1.bf16.msra.mxu0 %v857
    %2090 = vmatprep.subr.bf16.mxu0 %v862
    %2091 = vmatpush1.bf16.msra.mxu0 %v861
    %2092 = vmatprep.subr.bf16.mxu0 %v866
    %2093 = vmatpush1.bf16.msra.mxu0 %v865
    %2094 = vmatprep.subr.bf16.mxu0 %v870
    %2095 = vmatpush1.bf16.msra.mxu0 %v869
    %2096 = vmatprep.subr.bf16.mxu0 %v874
    %2097 = vmatpush1.bf16.msra.mxu0 %v873
    %2098 = vmatprep.subr.bf16.mxu0 %v878
    %2099 = vmatpush1.bf16.msra.mxu0 %v877
    %2100 = vmatprep.subr.bf16.mxu0 0
    %2101 = vmatpush1.bf16.msra.mxu0 0
    %2102 = vmatprep.subr.bf16.mxu0 0
    %2103 = vmatpush1.bf16.msra.mxu0 0
    %2104 = vmatprep.subr.bf16.mxu0 0
    %2105 = vmatpush1.bf16.msra.mxu0 0
    %2106 = vmatprep.subr.bf16.mxu0 0
    %2107 = vmatpush1.bf16.msra.mxu0 0
    %2108 = vmatprep.subr.bf16.mxu0 0
    %2109 = vmatpush1.bf16.msra.mxu0 0
    %2110 = vmatprep.subr.bf16.mxu0 0
    %2111 = vmatpush1.bf16.msra.mxu0 0
    %2112 = vmatprep.subr.bf16.mxu0 0
    %2113 = vmatpush1.bf16.msra.mxu0 0
    %2114 = vmatprep.subr.bf16.mxu0 0
    %2115 = vmatpush1.bf16.msra.mxu0 0
    %2116 = vmatprep.mubr.bf16.mxu0 0
    %2117 = vmatmul.mubr.bf16.gmra.mrb[0].mxu0 %v2083
    %v2118 = vpop.f32.mrb[0].mxu0
    %v2119 = vadd.f32 0.0, %v2118
    %v2120 = vpop.f32.mrb[0].mxu0
    %v2121 = vadd.f32 0.0, %v2120
    %v2122 = vpop.f32.mrb[0].mxu0
    %v2123 = vpop.f32.mrb[0].mxu0
    %2124 = vdwg.mxu0
    %2125 = vmatprep.subr.bf16.mxu0 %v852
    %2126 = vmatpush1.bf16.msra.mxu0 %v851
    %2127 = vmatprep.subr.bf16.mxu0 %v856
    %2128 = vmatpush1.bf16.msra.mxu0 %v855
    %2129 = vmatprep.subr.bf16.mxu0 %v860
    %2130 = vmatpush1.bf16.msra.mxu0 %v859
    %2131 = vmatprep.subr.bf16.mxu0 %v864
    %2132 = vmatpush1.bf16.msra.mxu0 %v863
    %2133 = vmatprep.subr.bf16.mxu0 %v868
    %2134 = vmatpush1.bf16.msra.mxu0 %v867
    %2135 = vmatprep.subr.bf16.mxu0 %v872
    %2136 = vmatpush1.bf16.msra.mxu0 %v871
    %2137 = vmatprep.subr.bf16.mxu0 %v876
    %2138 = vmatpush1.bf16.msra.mxu0 %v875
    %2139 = vmatprep.subr.bf16.mxu0 %v880
    %2140 = vmatpush1.bf16.msra.mxu0 %v879
    %2141 = vmatprep.subr.bf16.mxu0 0
    %2142 = vmatpush1.bf16.msra.mxu0 0
    %2143 = vmatprep.subr.bf16.mxu0 0
    %2144 = vmatpush1.bf16.msra.mxu0 0
    %2145 = vmatprep.subr.bf16.mxu0 0
    %2146 = vmatpush1.bf16.msra.mxu0 0
    %2147 = vmatprep.subr.bf16.mxu0 0
    %2148 = vmatpush1.bf16.msra.mxu0 0
    %2149 = vmatprep.subr.bf16.mxu0 0
    %2150 = vmatpush1.bf16.msra.mxu0 0
    %2151 = vmatprep.subr.bf16.mxu0 0
    %2152 = vmatpush1.bf16.msra.mxu0 0
    %2153 = vmatprep.subr.bf16.mxu0 0
    %2154 = vmatpush1.bf16.msra.mxu0 0
    %2155 = vmatprep.subr.bf16.mxu0 0
    %2156 = vmatpush1.bf16.msra.mxu0 0
    %2157 = vmatprep.mubr.bf16.mxu0 0
    %2158 = vmatmul.mubr.bf16.gmra.mrb[0].mxu0 %v2083
    %v2159 = vpop.f32.mrb[0].mxu0
    %v2160 = vadd.f32 0.0, %v2159
    %v2161 = vpop.f32.mrb[0].mxu0
    %v2162 = vadd.f32 0.0, %v2161
    %v2163 = vpop.f32.mrb[0].mxu0
    %v2164 = vpop.f32.mrb[0].mxu0
    %2165 = vdwg.mxu0
    %v2166 = vadd.f32 %v2077, %v2119
    %v2167 = vadd.f32 %v2078, %v2121
    %v2168 = vadd.f32 %v2079, %v2160
    %v2169 = vadd.f32 %v2080, %v2162
    %v2170 = vtanh.pop %v2166
    %v2171 = vtanh.pop %v2167
    %v2172 = vtanh.pop %v2168
    %v2173 = vtanh.pop %v2169
    %v2174 = vmul.f32 %v2170, 0.5
    %v2175 = vadd.f32 %v2174, 0.5
    %v2176 = vmul.f32 %v2171, 0.5
    %v2177 = vadd.f32 %v2176, 0.5
    %v2178 = vmul.f32 %v2173, 0.5
    %v2179 = vadd.f32 %v2178, 0.5
    %v2180 = vmul.f32 %v2177, %v2082
    %v2181 = vmul.f32 %v2175, %v2172
    %v2182 = vadd.f32 %v2180, %v2181
    %v2183 = vtanh.pop %v2182
    %v2184 = vmul.f32 %v2179, %v2183
    %s2185 = scalar_lea.vmem [#allocation3], 96
    %v2186 = vld [vmem:[%s2185] sm:$0xff]
    %v2187 = vld [vmem:[%s2185 + $0x8] sm:$0xff]
    %v2188 = vld [vmem:[%s2185 + $0x10] sm:$0xff]
    %v2189 = vld [vmem:[%s2185 + $0x18] sm:$0xff]
    %v2190 = vld [vmem:[#allocation6] sm:$0xff]
    %v2191 = vld [vmem:[#allocation7] sm:$0xff]
    %v2192 = vpack.c.bf16 %v2190, %v2190
    %2193 = vmatprep.subr.bf16.mxu0 %v1119
    %2194 = vmatpush1.bf16.msra.mxu0 %v1118
    %2195 = vmatprep.subr.bf16.mxu0 %v1123
    %2196 = vmatpush1.bf16.msra.mxu0 %v1122
    %2197 = vmatprep.subr.bf16.mxu0 %v1127
    %2198 = vmatpush1.bf16.msra.mxu0 %v1126
    %2199 = vmatprep.subr.bf16.mxu0 %v1131
    %2200 = vmatpush1.bf16.msra.mxu0 %v1130
    %2201 = vmatprep.subr.bf16.mxu0 %v1135
    %2202 = vmatpush1.bf16.msra.mxu0 %v1134
    %2203 = vmatprep.subr.bf16.mxu0 %v1139
    %2204 = vmatpush1.bf16.msra.mxu0 %v1138
    %2205 = vmatprep.subr.bf16.mxu0 %v1143
    %2206 = vmatpush1.bf16.msra.mxu0 %v1142
    %2207 = vmatprep.subr.bf16.mxu0 %v1147
    %2208 = vmatpush1.bf16.msra.mxu0 %v1146
    %2209 = vmatprep.subr.bf16.mxu0 0
    %2210 = vmatpush1.bf16.msra.mxu0 0
    %2211 = vmatprep.subr.bf16.mxu0 0
    %2212 = vmatpush1.bf16.msra.mxu0 0
    %2213 = vmatprep.subr.bf16.mxu0 0
    %2214 = vmatpush1.bf16.msra.mxu0 0
    %2215 = vmatprep.subr.bf16.mxu0 0
    %2216 = vmatpush1.bf16.msra.mxu0 0
    %2217 = vmatprep.subr.bf16.mxu0 0
    %2218 = vmatpush1.bf16.msra.mxu0 0
    %2219 = vmatprep.subr.bf16.mxu0 0
    %2220 = vmatpush1.bf16.msra.mxu0 0
    %2221 = vmatprep.subr.bf16.mxu0 0
    %2222 = vmatpush1.bf16.msra.mxu0 0
    %2223 = vmatprep.subr.bf16.mxu0 0
    %2224 = vmatpush1.bf16.msra.mxu0 0
    %2225 = vmatprep.mubr.bf16.mxu0 0
    %2226 = vmatmul.mubr.bf16.gmra.mrb[0].mxu0 %v2192
    %v2227 = vpop.f32.mrb[0].mxu0
    %v2228 = vadd.f32 0.0, %v2227
    %v2229 = vpop.f32.mrb[0].mxu0
    %v2230 = vadd.f32 0.0, %v2229
    %v2231 = vpop.f32.mrb[0].mxu0
    %v2232 = vpop.f32.mrb[0].mxu0
    %2233 = vdwg.mxu0
    %2234 = vmatprep.subr.bf16.mxu0 %v1121
    %2235 = vmatpush1.bf16.msra.mxu0 %v1120
    %2236 = vmatprep.subr.bf16.mxu0 %v1125
    %2237 = vmatpush1.bf16.msra.mxu0 %v1124
    %2238 = vmatprep.subr.bf16.mxu0 %v1129
    %2239 = vmatpush1.bf16.msra.mxu0 %v1128
    %2240 = vmatprep.subr.bf16.mxu0 %v1133
    %2241 = vmatpush1.bf16.msra.mxu0 %v1132
    %2242 = vmatprep.subr.bf16.mxu0 %v1137
    %2243 = vmatpush1.bf16.msra.mxu0 %v1136
    %2244 = vmatprep.subr.bf16.mxu0 %v1141
    %2245 = vmatpush1.bf16.msra.mxu0 %v1140
    %2246 = vmatprep.subr.bf16.mxu0 %v1145
    %2247 = vmatpush1.bf16.msra.mxu0 %v1144
    %2248 = vmatprep.subr.bf16.mxu0 %v1149
    %2249 = vmatpush1.bf16.msra.mxu0 %v1148
    %2250 = vmatprep.subr.bf16.mxu0 0
    %2251 = vmatpush1.bf16.msra.mxu0 0
    %2252 = vmatprep.subr.bf16.mxu0 0
    %2253 = vmatpush1.bf16.msra.mxu0 0
    %2254 = vmatprep.subr.bf16.mxu0 0
    %2255 = vmatpush1.bf16.msra.mxu0 0
    %2256 = vmatprep.subr.bf16.mxu0 0
    %2257 = vmatpush1.bf16.msra.mxu0 0
    %2258 = vmatprep.subr.bf16.mxu0 0
    %2259 = vmatpush1.bf16.msra.mxu0 0
    %2260 = vmatprep.subr.bf16.mxu0 0
    %2261 = vmatpush1.bf16.msra.mxu0 0
    %2262 = vmatprep.subr.bf16.mxu0 0
    %2263 = vmatpush1.bf16.msra.mxu0 0
    %2264 = vmatprep.subr.bf16.mxu0 0
    %2265 = vmatpush1.bf16.msra.mxu0 0
    %2266 = vmatprep.mubr.bf16.mxu0 0
    %2267 = vmatmul.mubr.bf16.gmra.mrb[0].mxu0 %v2192
    %v2268 = vpop.f32.mrb[0].mxu0
    %v2269 = vadd.f32 0.0, %v2268
    %v2270 = vpop.f32.mrb[0].mxu0
    %v2271 = vadd.f32 0.0, %v2270
    %v2272 = vpop.f32.mrb[0].mxu0
    %v2273 = vpop.f32.mrb[0].mxu0
    %2274 = vdwg.mxu0
    %v2275 = vadd.f32 %v2186, %v2228
    %v2276 = vadd.f32 %v2187, %v2230
    %v2277 = vadd.f32 %v2188, %v2269
    %v2278 = vadd.f32 %v2189, %v2271
    %v2279 = vtanh.pop %v2275
    %v2280 = vtanh.pop %v2276
    %v2281 = vtanh.pop %v2277
    %v2282 = vtanh.pop %v2278
    %v2283 = vmul.f32 %v2279, 0.5
    %v2284 = vadd.f32 %v2283, 0.5
    %v2285 = vmul.f32 %v2280, 0.5
    %v2286 = vadd.f32 %v2285, 0.5
    %v2287 = vmul.f32 %v2282, 0.5
    %v2288 = vadd.f32 %v2287, 0.5
    %v2289 = vmul.f32 %v2286, %v2191
    %v2290 = vmul.f32 %v2284, %v2281
    %v2291 = vadd.f32 %v2289, %v2290
    %v2292 = vtanh.pop %v2291
    %v2293 = vmul.f32 %v2288, %v2292
    %v2294 = vstv %s2074
    %vm2295 = vcmp.lt.s32.totalorder %v2294, %v99
    %v2296 = vsel %vm2295, 1, 0
    %2297 = vset.pattern.permute.xlu0 0
    %2298 = vperm.xlu0 %2297, %v2296
    %v2299 = vpop.permute.xlu0 %2298
    %vm2300 = vcmp.eq.s32.totalorder %v2299, 1
    %v2301 = vstv %s2075
    %vm2302 = vcmp.lt.s32.totalorder %v2301, %v99
    %v2303 = vsel %vm2302, 1, 0
    %2304 = vset.pattern.permute.xlu0 0
    %2305 = vperm.xlu0 %2304, %v2303
    %v2306 = vpop.permute.xlu0 %2305
    %vm2307 = vcmp.eq.s32.totalorder %v2306, 1
    %v2308 = vsel %vm2300, %v2184, %v2081
    %2309 = vst [vmem:[#allocation4] sm:$0xff] %v2308
    %v2310 = vld [vmem:[#allocation5] sm:$0xff]
    %v2311 = vsel %vm2300, %v2182, %v2310
    %2312 = vst [vmem:[#allocation5] sm:$0xff] %v2311
    %v2313 = vld [vmem:[#allocation6] sm:$0xff]
    %v2314 = vsel %vm2307, %v2293, %v2313
    %2315 = vst [vmem:[#allocation6] sm:$0xff] %v2314
    %v2316 = vld [vmem:[#allocation7] sm:$0xff]
    %v2317 = vsel %vm2307, %v2291, %v2316
    %2318 = vst [vmem:[#allocation7] sm:$0xff] %v2317
    %v2319 = vsel %vm2300, %v2184, 0.0
    %v2320 = vpack.c.bf16 %v2319, %v2319
    %s2321 = scalar_lea.vmem [#allocation16], 16
    %2322 = vst [vmem:[%s2321] sm:$0xf] %v2320
    %v2323 = vsel %vm2307, %v2293, 0.0
    %v2324 = vpack.c.bf16 %v2323, %v2323
    %s2325 = scalar_lea.vmem [#allocation17], 12
    %2326 = vst [vmem:[%s2325] sm:$0xf] %v2324
    %s2327 = sadd.s32 %s744, 5
    %s2328 = ssub.s32 2, %s744
    %s2329 = scalar_lea.vmem [#allocation2], 160
    %v2330 = vld [vmem:[%s2329] sm:$0xff]
    %v2331 = vld [vmem:[%s2329 + $0x8] sm:$0xff]
    %v2332 = vld [vmem:[%s2329 + $0x10] sm:$0xff]
    %v2333 = vld [vmem:[%s2329 + $0x18] sm:$0xff]
    %v2334 = vld [vmem:[#allocation4] sm:$0xff]
    %v2335 = vld [vmem:[#allocation5] sm:$0xff]
    %v2336 = vpack.c.bf16 %v2334, %v2334
    %2337 = vmatprep.subr.bf16.mxu0 %v850
    %2338 = vmatpush1.bf16.msra.mxu0 %v849
    %2339 = vmatprep.subr.bf16.mxu0 %v854
    %2340 = vmatpush1.bf16.msra.mxu0 %v853
    %2341 = vmatprep.subr.bf16.mxu0 %v858
    %2342 = vmatpush1.bf16.msra.mxu0 %v857
    %2343 = vmatprep.subr.bf16.mxu0 %v862
    %2344 = vmatpush1.bf16.msra.mxu0 %v861
    %2345 = vmatprep.subr.bf16.mxu0 %v866
    %2346 = vmatpush1.bf16.msra.mxu0 %v865
    %2347 = vmatprep.subr.bf16.mxu0 %v870
    %2348 = vmatpush1.bf16.msra.mxu0 %v869
    %2349 = vmatprep.subr.bf16.mxu0 %v874
    %2350 = vmatpush1.bf16.msra.mxu0 %v873
    %2351 = vmatprep.subr.bf16.mxu0 %v878
    %2352 = vmatpush1.bf16.msra.mxu0 %v877
    %2353 = vmatprep.subr.bf16.mxu0 0
    %2354 = vmatpush1.bf16.msra.mxu0 0
    %2355 = vmatprep.subr.bf16.mxu0 0
    %2356 = vmatpush1.bf16.msra.mxu0 0
    %2357 = vmatprep.subr.bf16.mxu0 0
    %2358 = vmatpush1.bf16.msra.mxu0 0
    %2359 = vmatprep.subr.bf16.mxu0 0
    %2360 = vmatpush1.bf16.msra.mxu0 0
    %2361 = vmatprep.subr.bf16.mxu0 0
    %2362 = vmatpush1.bf16.msra.mxu0 0
    %2363 = vmatprep.subr.bf16.mxu0 0
    %2364 = vmatpush1.bf16.msra.mxu0 0
    %2365 = vmatprep.subr.bf16.mxu0 0
    %2366 = vmatpush1.bf16.msra.mxu0 0
    %2367 = vmatprep.subr.bf16.mxu0 0
    %2368 = vmatpush1.bf16.msra.mxu0 0
    %2369 = vmatprep.mubr.bf16.mxu0 0
    %2370 = vmatmul.mubr.bf16.gmra.mrb[0].mxu0 %v2336
    %v2371 = vpop.f32.mrb[0].mxu0
    %v2372 = vadd.f32 0.0, %v2371
    %v2373 = vpop.f32.mrb[0].mxu0
    %v2374 = vadd.f32 0.0, %v2373
    %v2375 = vpop.f32.mrb[0].mxu0
    %v2376 = vpop.f32.mrb[0].mxu0
    %2377 = vdwg.mxu0
    %2378 = vmatprep.subr.bf16.mxu0 %v852
    %2379 = vmatpush1.bf16.msra.mxu0 %v851
    %2380 = vmatprep.subr.bf16.mxu0 %v856
    %2381 = vmatpush1.bf16.msra.mxu0 %v855
    %2382 = vmatprep.subr.bf16.mxu0 %v860
    %2383 = vmatpush1.bf16.msra.mxu0 %v859
    %2384 = vmatprep.subr.bf16.mxu0 %v864
    %2385 = vmatpush1.bf16.msra.mxu0 %v863
    %2386 = vmatprep.subr.bf16.mxu0 %v868
    %2387 = vmatpush1.bf16.msra.mxu0 %v867
    %2388 = vmatprep.subr.bf16.mxu0 %v872
    %2389 = vmatpush1.bf16.msra.mxu0 %v871
    %2390 = vmatprep.subr.bf16.mxu0 %v876
    %2391 = vmatpush1.bf16.msra.mxu0 %v875
    %2392 = vmatprep.subr.bf16.mxu0 %v880
    %2393 = vmatpush1.bf16.msra.mxu0 %v879
    %2394 = vmatprep.subr.bf16.mxu0 0
    %2395 = vmatpush1.bf16.msra.mxu0 0
    %2396 = vmatprep.subr.bf16.mxu0 0
    %2397 = vmatpush1.bf16.msra.mxu0 0
    %2398 = vmatprep.subr.bf16.mxu0 0
    %2399 = vmatpush1.bf16.msra.mxu0 0
    %2400 = vmatprep.subr.bf16.mxu0 0
    %2401 = vmatpush1.bf16.msra.mxu0 0
    %2402 = vmatprep.subr.bf16.mxu0 0
    %2403 = vmatpush1.bf16.msra.mxu0 0
    %2404 = vmatprep.subr.bf16.mxu0 0
    %2405 = vmatpush1.bf16.msra.mxu0 0
    %2406 = vmatprep.subr.bf16.mxu0 0
    %2407 = vmatpush1.bf16.msra.mxu0 0
    %2408 = vmatprep.subr.bf16.mxu0 0
    %2409 = vmatpush1.bf16.msra.mxu0 0
    %2410 = vmatprep.mubr.bf16.mxu0 0
    %2411 = vmatmul.mubr.bf16.gmra.mrb[0].mxu0 %v2336
    %v2412 = vpop.f32.mrb[0].mxu0
    %v2413 = vadd.f32 0.0, %v2412
    %v2414 = vpop.f32.mrb[0].mxu0
    %v2415 = vadd.f32 0.0, %v2414
    %v2416 = vpop.f32.mrb[0].mxu0
    %v2417 = vpop.f32.mrb[0].mxu0
    %2418 = vdwg.mxu0
    %v2419 = vadd.f32 %v2330, %v2372
    %v2420 = vadd.f32 %v2331, %v2374
    %v2421 = vadd.f32 %v2332, %v2413
    %v2422 = vadd.f32 %v2333, %v2415
    %v2423 = vtanh.pop %v2419
    %v2424 = vtanh.pop %v2420
    %v2425 = vtanh.pop %v2421
    %v2426 = vtanh.pop %v2422
    %v2427 = vmul.f32 %v2423, 0.5
    %v2428 = vadd.f32 %v2427, 0.5
    %v2429 = vmul.f32 %v2424, 0.5
    %v2430 = vadd.f32 %v2429, 0.5
    %v2431 = vmul.f32 %v2426, 0.5
    %v2432 = vadd.f32 %v2431, 0.5
    %v2433 = vmul.f32 %v2430, %v2335
    %v2434 = vmul.f32 %v2428, %v2425
    %v2435 = vadd.f32 %v2433, %v2434
    %v2436 = vtanh.pop %v2435
    %v2437 = vmul.f32 %v2432, %v2436
    %s2438 = scalar_lea.vmem [#allocation3], 64
    %v2439 = vld [vmem:[%s2438] sm:$0xff]
    %v2440 = vld [vmem:[%s2438 + $0x8] sm:$0xff]
    %v2441 = vld [vmem:[%s2438 + $0x10] sm:$0xff]
    %v2442 = vld [vmem:[%s2438 + $0x18] sm:$0xff]
    %v2443 = vld [vmem:[#allocation6] sm:$0xff]
    %v2444 = vld [vmem:[#allocation7] sm:$0xff]
    %v2445 = vpack.c.bf16 %v2443, %v2443
    %2446 = vmatprep.subr.bf16.mxu0 %v1119
    %2447 = vmatpush1.bf16.msra.mxu0 %v1118
    %2448 = vmatprep.subr.bf16.mxu0 %v1123
    %2449 = vmatpush1.bf16.msra.mxu0 %v1122
    %2450 = vmatprep.subr.bf16.mxu0 %v1127
    %2451 = vmatpush1.bf16.msra.mxu0 %v1126
    %2452 = vmatprep.subr.bf16.mxu0 %v1131
    %2453 = vmatpush1.bf16.msra.mxu0 %v1130
    %2454 = vmatprep.subr.bf16.mxu0 %v1135
    %2455 = vmatpush1.bf16.msra.mxu0 %v1134
    %2456 = vmatprep.subr.bf16.mxu0 %v1139
    %2457 = vmatpush1.bf16.msra.mxu0 %v1138
    %2458 = vmatprep.subr.bf16.mxu0 %v1143
    %2459 = vmatpush1.bf16.msra.mxu0 %v1142
    %2460 = vmatprep.subr.bf16.mxu0 %v1147
    %2461 = vmatpush1.bf16.msra.mxu0 %v1146
    %2462 = vmatprep.subr.bf16.mxu0 0
    %2463 = vmatpush1.bf16.msra.mxu0 0
    %2464 = vmatprep.subr.bf16.mxu0 0
    %2465 = vmatpush1.bf16.msra.mxu0 0
    %2466 = vmatprep.subr.bf16.mxu0 0
    %2467 = vmatpush1.bf16.msra.mxu0 0
    %2468 = vmatprep.subr.bf16.mxu0 0
    %2469 = vmatpush1.bf16.msra.mxu0 0
    %2470 = vmatprep.subr.bf16.mxu0 0
    %2471 = vmatpush1.bf16.msra.mxu0 0
    %2472 = vmatprep.subr.bf16.mxu0 0
    %2473 = vmatpush1.bf16.msra.mxu0 0
    %2474 = vmatprep.subr.bf16.mxu0 0
    %2475 = vmatpush1.bf16.msra.mxu0 0
    %2476 = vmatprep.subr.bf16.mxu0 0
    %2477 = vmatpush1.bf16.msra.mxu0 0
    %2478 = vmatprep.mubr.bf16.mxu0 0
    %2479 = vmatmul.mubr.bf16.gmra.mrb[0].mxu0 %v2445
    %v2480 = vpop.f32.mrb[0].mxu0
    %v2481 = vadd.f32 0.0, %v2480
    %v2482 = vpop.f32.mrb[0].mxu0
    %v2483 = vadd.f32 0.0, %v2482
    %v2484 = vpop.f32.mrb[0].mxu0
    %v2485 = vpop.f32.mrb[0].mxu0
    %2486 = vdwg.mxu0
    %2487 = vmatprep.subr.bf16.mxu0 %v1121
    %2488 = vmatpush1.bf16.msra.mxu0 %v1120
    %2489 = vmatprep.subr.bf16.mxu0 %v1125
    %2490 = vmatpush1.bf16.msra.mxu0 %v1124
    %2491 = vmatprep.subr.bf16.mxu0 %v1129
    %2492 = vmatpush1.bf16.msra.mxu0 %v1128
    %2493 = vmatprep.subr.bf16.mxu0 %v1133
    %2494 = vmatpush1.bf16.msra.mxu0 %v1132
    %2495 = vmatprep.subr.bf16.mxu0 %v1137
    %2496 = vmatpush1.bf16.msra.mxu0 %v1136
    %2497 = vmatprep.subr.bf16.mxu0 %v1141
    %2498 = vmatpush1.bf16.msra.mxu0 %v1140
    %2499 = vmatprep.subr.bf16.mxu0 %v1145
    %2500 = vmatpush1.bf16.msra.mxu0 %v1144
    %2501 = vmatprep.subr.bf16.mxu0 %v1149
    %2502 = vmatpush1.bf16.msra.mxu0 %v1148
    %2503 = vmatprep.subr.bf16.mxu0 0
    %2504 = vmatpush1.bf16.msra.mxu0 0
    %2505 = vmatprep.subr.bf16.mxu0 0
    %2506 = vmatpush1.bf16.msra.mxu0 0
    %2507 = vmatprep.subr.bf16.mxu0 0
    %2508 = vmatpush1.bf16.msra.mxu0 0
    %2509 = vmatprep.subr.bf16.mxu0 0
    %2510 = vmatpush1.bf16.msra.mxu0 0
    %2511 = vmatprep.subr.bf16.mxu0 0
    %2512 = vmatpush1.bf16.msra.mxu0 0
    %2513 = vmatprep.subr.bf16.mxu0 0
    %2514 = vmatpush1.bf16.msra.mxu0 0
    %2515 = vmatprep.subr.bf16.mxu0 0
    %2516 = vmatpush1.bf16.msra.mxu0 0
    %2517 = vmatprep.subr.bf16.mxu0 0
    %2518 = vmatpush1.bf16.msra.mxu0 0
    %2519 = vmatprep.mubr.bf16.mxu0 0
    %2520 = vmatmul.mubr.bf16.gmra.mrb[0].mxu0 %v2445
    %v2521 = vpop.f32.mrb[0].mxu0
    %v2522 = vadd.f32 0.0, %v2521
    %v2523 = vpop.f32.mrb[0].mxu0
    %v2524 = vadd.f32 0.0, %v2523
    %v2525 = vpop.f32.mrb[0].mxu0
    %v2526 = vpop.f32.mrb[0].mxu0
    %2527 = vdwg.mxu0
    %v2528 = vadd.f32 %v2439, %v2481
    %v2529 = vadd.f32 %v2440, %v2483
    %v2530 = vadd.f32 %v2441, %v2522
    %v2531 = vadd.f32 %v2442, %v2524
    %v2532 = vtanh.pop %v2528
    %v2533 = vtanh.pop %v2529
    %v2534 = vtanh.pop %v2530
    %v2535 = vtanh.pop %v2531
    %v2536 = vmul.f32 %v2532, 0.5
    %v2537 = vadd.f32 %v2536, 0.5
    %v2538 = vmul.f32 %v2533, 0.5
    %v2539 = vadd.f32 %v2538, 0.5
    %v2540 = vmul.f32 %v2535, 0.5
    %v2541 = vadd.f32 %v2540, 0.5
    %v2542 = vmul.f32 %v2539, %v2444
    %v2543 = vmul.f32 %v2537, %v2534
    %v2544 = vadd.f32 %v2542, %v2543
    %v2545 = vtanh.pop %v2544
    %v2546 = vmul.f32 %v2541, %v2545
    %v2547 = vstv %s2327
    %vm2548 = vcmp.lt.s32.totalorder %v2547, %v99
    %v2549 = vsel %vm2548, 1, 0
    %2550 = vset.pattern.permute.xlu0 0
    %2551 = vperm.xlu0 %2550, %v2549
    %v2552 = vpop.permute.xlu0 %2551
    %vm2553 = vcmp.eq.s32.totalorder %v2552, 1
    %v2554 = vstv %s2328
    %vm2555 = vcmp.lt.s32.totalorder %v2554, %v99
    %v2556 = vsel %vm2555, 1, 0
    %2557 = vset.pattern.permute.xlu0 0
    %2558 = vperm.xlu0 %2557, %v2556
    %v2559 = vpop.permute.xlu0 %2558
    %vm2560 = vcmp.eq.s32.totalorder %v2559, 1
    %v2561 = vsel %vm2553, %v2437, %v2334
    %2562 = vst [vmem:[#allocation4] sm:$0xff] %v2561
    %v2563 = vld [vmem:[#allocation5] sm:$0xff]
    %v2564 = vsel %vm2553, %v2435, %v2563
    %2565 = vst [vmem:[#allocation5] sm:$0xff] %v2564
    %v2566 = vld [vmem:[#allocation6] sm:$0xff]
    %v2567 = vsel %vm2560, %v2546, %v2566
    %2568 = vst [vmem:[#allocation6] sm:$0xff] %v2567
    %v2569 = vld [vmem:[#allocation7] sm:$0xff]
    %v2570 = vsel %vm2560, %v2544, %v2569
    %2571 = vst [vmem:[#allocation7] sm:$0xff] %v2570
    %v2572 = vsel %vm2553, %v2437, 0.0
    %v2573 = vpack.c.bf16 %v2572, %v2572
    %s2574 = scalar_lea.vmem [#allocation16], 20
    %2575 = vst [vmem:[%s2574] sm:$0xf] %v2573
    %v2576 = vsel %vm2560, %v2546, 0.0
    %v2577 = vpack.c.bf16 %v2576, %v2576
    %s2578 = scalar_lea.vmem [#allocation17], 8
    %2579 = vst [vmem:[%s2578] sm:$0xf] %v2577
    %s2580 = sadd.s32 %s744, 6
    %s2581 = ssub.s32 1, %s744
    %s2582 = scalar_lea.vmem [#allocation2], 192
    %v2583 = vld [vmem:[%s2582] sm:$0xff]
    %v2584 = vld [vmem:[%s2582 + $0x8] sm:$0xff]
    %v2585 = vld [vmem:[%s2582 + $0x10] sm:$0xff]
    %v2586 = vld [vmem:[%s2582 + $0x18] sm:$0xff]
    %v2587 = vld [vmem:[#allocation4] sm:$0xff]
    %v2588 = vld [vmem:[#allocation5] sm:$0xff]
    %v2589 = vpack.c.bf16 %v2587, %v2587
    %2590 = vmatprep.subr.bf16.mxu0 %v850
    %2591 = vmatpush1.bf16.msra.mxu0 %v849
    %2592 = vmatprep.subr.bf16.mxu0 %v854
    %2593 = vmatpush1.bf16.msra.mxu0 %v853
    %2594 = vmatprep.subr.bf16.mxu0 %v858
    %2595 = vmatpush1.bf16.msra.mxu0 %v857
    %2596 = vmatprep.subr.bf16.mxu0 %v862
    %2597 = vmatpush1.bf16.msra.mxu0 %v861
    %2598 = vmatprep.subr.bf16.mxu0 %v866
    %2599 = vmatpush1.bf16.msra.mxu0 %v865
    %2600 = vmatprep.subr.bf16.mxu0 %v870
    %2601 = vmatpush1.bf16.msra.mxu0 %v869
    %2602 = vmatprep.subr.bf16.mxu0 %v874
    %2603 = vmatpush1.bf16.msra.mxu0 %v873
    %2604 = vmatprep.subr.bf16.mxu0 %v878
    %2605 = vmatpush1.bf16.msra.mxu0 %v877
    %2606 = vmatprep.subr.bf16.mxu0 0
    %2607 = vmatpush1.bf16.msra.mxu0 0
    %2608 = vmatprep.subr.bf16.mxu0 0
    %2609 = vmatpush1.bf16.msra.mxu0 0
    %2610 = vmatprep.subr.bf16.mxu0 0
    %2611 = vmatpush1.bf16.msra.mxu0 0
    %2612 = vmatprep.subr.bf16.mxu0 0
    %2613 = vmatpush1.bf16.msra.mxu0 0
    %2614 = vmatprep.subr.bf16.mxu0 0
    %2615 = vmatpush1.bf16.msra.mxu0 0
    %2616 = vmatprep.subr.bf16.mxu0 0
    %2617 = vmatpush1.bf16.msra.mxu0 0
    %2618 = vmatprep.subr.bf16.mxu0 0
    %2619 = vmatpush1.bf16.msra.mxu0 0
    %2620 = vmatprep.subr.bf16.mxu0 0
    %2621 = vmatpush1.bf16.msra.mxu0 0
    %2622 = vmatprep.mubr.bf16.mxu0 0
    %2623 = vmatmul.mubr.bf16.gmra.mrb[0].mxu0 %v2589
    %v2624 = vpop.f32.mrb[0].mxu0
    %v2625 = vadd.f32 0.0, %v2624
    %v2626 = vpop.f32.mrb[0].mxu0
    %v2627 = vadd.f32 0.0, %v2626
    %v2628 = vpop.f32.mrb[0].mxu0
    %v2629 = vpop.f32.mrb[0].mxu0
    %2630 = vdwg.mxu0
    %2631 = vmatprep.subr.bf16.mxu0 %v852
    %2632 = vmatpush1.bf16.msra.mxu0 %v851
    %2633 = vmatprep.subr.bf16.mxu0 %v856
    %2634 = vmatpush1.bf16.msra.mxu0 %v855
    %2635 = vmatprep.subr.bf16.mxu0 %v860
    %2636 = vmatpush1.bf16.msra.mxu0 %v859
    %2637 = vmatprep.subr.bf16.mxu0 %v864
    %2638 = vmatpush1.bf16.msra.mxu0 %v863
    %2639 = vmatprep.subr.bf16.mxu0 %v868
    %2640 = vmatpush1.bf16.msra.mxu0 %v867
    %2641 = vmatprep.subr.bf16.mxu0 %v872
    %2642 = vmatpush1.bf16.msra.mxu0 %v871
    %2643 = vmatprep.subr.bf16.mxu0 %v876
    %2644 = vmatpush1.bf16.msra.mxu0 %v875
    %2645 = vmatprep.subr.bf16.mxu0 %v880
    %2646 = vmatpush1.bf16.msra.mxu0 %v879
    %2647 = vmatprep.subr.bf16.mxu0 0
    %2648 = vmatpush1.bf16.msra.mxu0 0
    %2649 = vmatprep.subr.bf16.mxu0 0
    %2650 = vmatpush1.bf16.msra.mxu0 0
    %2651 = vmatprep.subr.bf16.mxu0 0
    %2652 = vmatpush1.bf16.msra.mxu0 0
    %2653 = vmatprep.subr.bf16.mxu0 0
    %2654 = vmatpush1.bf16.msra.mxu0 0
    %2655 = vmatprep.subr.bf16.mxu0 0
    %2656 = vmatpush1.bf16.msra.mxu0 0
    %2657 = vmatprep.subr.bf16.mxu0 0
    %2658 = vmatpush1.bf16.msra.mxu0 0
    %2659 = vmatprep.subr.bf16.mxu0 0
    %2660 = vmatpush1.bf16.msra.mxu0 0
    %2661 = vmatprep.subr.bf16.mxu0 0
    %2662 = vmatpush1.bf16.msra.mxu0 0
    %2663 = vmatprep.mubr.bf16.mxu0 0
    %2664 = vmatmul.mubr.bf16.gmra.mrb[0].mxu0 %v2589
    %v2665 = vpop.f32.mrb[0].mxu0
    %v2666 = vadd.f32 0.0, %v2665
    %v2667 = vpop.f32.mrb[0].mxu0
    %v2668 = vadd.f32 0.0, %v2667
    %v2669 = vpop.f32.mrb[0].mxu0
    %v2670 = vpop.f32.mrb[0].mxu0
    %2671 = vdwg.mxu0
    %v2672 = vadd.f32 %v2583, %v2625
    %v2673 = vadd.f32 %v2584, %v2627
    %v2674 = vadd.f32 %v2585, %v2666
    %v2675 = vadd.f32 %v2586, %v2668
    %v2676 = vtanh.pop %v2672
    %v2677 = vtanh.pop %v2673
    %v2678 = vtanh.pop %v2674
    %v2679 = vtanh.pop %v2675
    %v2680 = vmul.f32 %v2676, 0.5
    %v2681 = vadd.f32 %v2680, 0.5
    %v2682 = vmul.f32 %v2677, 0.5
    %v2683 = vadd.f32 %v2682, 0.5
    %v2684 = vmul.f32 %v2679, 0.5
    %v2685 = vadd.f32 %v2684, 0.5
    %v2686 = vmul.f32 %v2683, %v2588
    %v2687 = vmul.f32 %v2681, %v2678
    %v2688 = vadd.f32 %v2686, %v2687
    %v2689 = vtanh.pop %v2688
    %v2690 = vmul.f32 %v2685, %v2689
    %s2691 = scalar_lea.vmem [#allocation3], 32
    %v2692 = vld [vmem:[%s2691] sm:$0xff]
    %v2693 = vld [vmem:[%s2691 + $0x8] sm:$0xff]
    %v2694 = vld [vmem:[%s2691 + $0x10] sm:$0xff]
    %v2695 = vld [vmem:[%s2691 + $0x18] sm:$0xff]
    %v2696 = vld [vmem:[#allocation6] sm:$0xff]
    %v2697 = vld [vmem:[#allocation7] sm:$0xff]
    %v2698 = vpack.c.bf16 %v2696, %v2696
    %2699 = vmatprep.subr.bf16.mxu0 %v1119
    %2700 = vmatpush1.bf16.msra.mxu0 %v1118
    %2701 = vmatprep.subr.bf16.mxu0 %v1123
    %2702 = vmatpush1.bf16.msra.mxu0 %v1122
    %2703 = vmatprep.subr.bf16.mxu0 %v1127
    %2704 = vmatpush1.bf16.msra.mxu0 %v1126
    %2705 = vmatprep.subr.bf16.mxu0 %v1131
    %2706 = vmatpush1.bf16.msra.mxu0 %v1130
    %2707 = vmatprep.subr.bf16.mxu0 %v1135
    %2708 = vmatpush1.bf16.msra.mxu0 %v1134
    %2709 = vmatprep.subr.bf16.mxu0 %v1139
    %2710 = vmatpush1.bf16.msra.mxu0 %v1138
    %2711 = vmatprep.subr.bf16.mxu0 %v1143
    %2712 = vmatpush1.bf16.msra.mxu0 %v1142
    %2713 = vmatprep.subr.bf16.mxu0 %v1147
    %2714 = vmatpush1.bf16.msra.mxu0 %v1146
    %2715 = vmatprep.subr.bf16.mxu0 0
    %2716 = vmatpush1.bf16.msra.mxu0 0
    %2717 = vmatprep.subr.bf16.mxu0 0
    %2718 = vmatpush1.bf16.msra.mxu0 0
    %2719 = vmatprep.subr.bf16.mxu0 0
    %2720 = vmatpush1.bf16.msra.mxu0 0
    %2721 = vmatprep.subr.bf16.mxu0 0
    %2722 = vmatpush1.bf16.msra.mxu0 0
    %2723 = vmatprep.subr.bf16.mxu0 0
    %2724 = vmatpush1.bf16.msra.mxu0 0
    %2725 = vmatprep.subr.bf16.mxu0 0
    %2726 = vmatpush1.bf16.msra.mxu0 0
    %2727 = vmatprep.subr.bf16.mxu0 0
    %2728 = vmatpush1.bf16.msra.mxu0 0
    %2729 = vmatprep.subr.bf16.mxu0 0
    %2730 = vmatpush1.bf16.msra.mxu0 0
    %2731 = vmatprep.mubr.bf16.mxu0 0
    %2732 = vmatmul.mubr.bf16.gmra.mrb[0].mxu0 %v2698
    %v2733 = vpop.f32.mrb[0].mxu0
    %v2734 = vadd.f32 0.0, %v2733
    %v2735 = vpop.f32.mrb[0].mxu0
    %v2736 = vadd.f32 0.0, %v2735
    %v2737 = vpop.f32.mrb[0].mxu0
    %v2738 = vpop.f32.mrb[0].mxu0
    %2739 = vdwg.mxu0
    %2740 = vmatprep.subr.bf16.mxu0 %v1121
    %2741 = vmatpush1.bf16.msra.mxu0 %v1120
    %2742 = vmatprep.subr.bf16.mxu0 %v1125
    %2743 = vmatpush1.bf16.msra.mxu0 %v1124
    %2744 = vmatprep.subr.bf16.mxu0 %v1129
    %2745 = vmatpush1.bf16.msra.mxu0 %v1128
    %2746 = vmatprep.subr.bf16.mxu0 %v1133
    %2747 = vmatpush1.bf16.msra.mxu0 %v1132
    %2748 = vmatprep.subr.bf16.mxu0 %v1137
    %2749 = vmatpush1.bf16.msra.mxu0 %v1136
    %2750 = vmatprep.subr.bf16.mxu0 %v1141
    %2751 = vmatpush1.bf16.msra.mxu0 %v1140
    %2752 = vmatprep.subr.bf16.mxu0 %v1145
    %2753 = vmatpush1.bf16.msra.mxu0 %v1144
    %2754 = vmatprep.subr.bf16.mxu0 %v1149
    %2755 = vmatpush1.bf16.msra.mxu0 %v1148
    %2756 = vmatprep.subr.bf16.mxu0 0
    %2757 = vmatpush1.bf16.msra.mxu0 0
    %2758 = vmatprep.subr.bf16.mxu0 0
    %2759 = vmatpush1.bf16.msra.mxu0 0
    %2760 = vmatprep.subr.bf16.mxu0 0
    %2761 = vmatpush1.bf16.msra.mxu0 0
    %2762 = vmatprep.subr.bf16.mxu0 0
    %2763 = vmatpush1.bf16.msra.mxu0 0
    %2764 = vmatprep.subr.bf16.mxu0 0
    %2765 = vmatpush1.bf16.msra.mxu0 0
    %2766 = vmatprep.subr.bf16.mxu0 0
    %2767 = vmatpush1.bf16.msra.mxu0 0
    %2768 = vmatprep.subr.bf16.mxu0 0
    %2769 = vmatpush1.bf16.msra.mxu0 0
    %2770 = vmatprep.subr.bf16.mxu0 0
    %2771 = vmatpush1.bf16.msra.mxu0 0
    %2772 = vmatprep.mubr.bf16.mxu0 0
    %2773 = vmatmul.mubr.bf16.gmra.mrb[0].mxu0 %v2698
    %v2774 = vpop.f32.mrb[0].mxu0
    %v2775 = vadd.f32 0.0, %v2774
    %v2776 = vpop.f32.mrb[0].mxu0
    %v2777 = vadd.f32 0.0, %v2776
    %v2778 = vpop.f32.mrb[0].mxu0
    %v2779 = vpop.f32.mrb[0].mxu0
    %2780 = vdwg.mxu0
    %v2781 = vadd.f32 %v2692, %v2734
    %v2782 = vadd.f32 %v2693, %v2736
    %v2783 = vadd.f32 %v2694, %v2775
    %v2784 = vadd.f32 %v2695, %v2777
    %v2785 = vtanh.pop %v2781
    %v2786 = vtanh.pop %v2782
    %v2787 = vtanh.pop %v2783
    %v2788 = vtanh.pop %v2784
    %v2789 = vmul.f32 %v2785, 0.5
    %v2790 = vadd.f32 %v2789, 0.5
    %v2791 = vmul.f32 %v2786, 0.5
    %v2792 = vadd.f32 %v2791, 0.5
    %v2793 = vmul.f32 %v2788, 0.5
    %v2794 = vadd.f32 %v2793, 0.5
    %v2795 = vmul.f32 %v2792, %v2697
    %v2796 = vmul.f32 %v2790, %v2787
    %v2797 = vadd.f32 %v2795, %v2796
    %v2798 = vtanh.pop %v2797
    %v2799 = vmul.f32 %v2794, %v2798
    %v2800 = vstv %s2580
    %vm2801 = vcmp.lt.s32.totalorder %v2800, %v99
    %v2802 = vsel %vm2801, 1, 0
    %2803 = vset.pattern.permute.xlu0 0
    %2804 = vperm.xlu0 %2803, %v2802
    %v2805 = vpop.permute.xlu0 %2804
    %vm2806 = vcmp.eq.s32.totalorder %v2805, 1
    %v2807 = vstv %s2581
    %vm2808 = vcmp.lt.s32.totalorder %v2807, %v99
    %v2809 = vsel %vm2808, 1, 0
    %2810 = vset.pattern.permute.xlu0 0
    %2811 = vperm.xlu0 %2810, %v2809
    %v2812 = vpop.permute.xlu0 %2811
    %vm2813 = vcmp.eq.s32.totalorder %v2812, 1
    %v2814 = vsel %vm2806, %v2690, %v2587
    %2815 = vst [vmem:[#allocation4] sm:$0xff] %v2814
    %v2816 = vld [vmem:[#allocation5] sm:$0xff]
    %v2817 = vsel %vm2806, %v2688, %v2816
    %2818 = vst [vmem:[#allocation5] sm:$0xff] %v2817
    %v2819 = vld [vmem:[#allocation6] sm:$0xff]
    %v2820 = vsel %vm2813, %v2799, %v2819
    %2821 = vst [vmem:[#allocation6] sm:$0xff] %v2820
    %v2822 = vld [vmem:[#allocation7] sm:$0xff]
    %v2823 = vsel %vm2813, %v2797, %v2822
    %2824 = vst [vmem:[#allocation7] sm:$0xff] %v2823
    %v2825 = vsel %vm2806, %v2690, 0.0
    %v2826 = vpack.c.bf16 %v2825, %v2825
    %s2827 = scalar_lea.vmem [#allocation16], 24
    %2828 = vst [vmem:[%s2827] sm:$0xf] %v2826
    %v2829 = vsel %vm2813, %v2799, 0.0
    %v2830 = vpack.c.bf16 %v2829, %v2829
    %s2831 = scalar_lea.vmem [#allocation17], 4
    %2832 = vst [vmem:[%s2831] sm:$0xf] %v2830
    %s2833 = sadd.s32 %s744, 7
    %s2834 = ssub.s32 0, %s744
    %s2835 = scalar_lea.vmem [#allocation2], 224
    %v2836 = vld [vmem:[%s2835] sm:$0xff]
    %v2837 = vld [vmem:[%s2835 + $0x8] sm:$0xff]
    %v2838 = vld [vmem:[%s2835 + $0x10] sm:$0xff]
    %v2839 = vld [vmem:[%s2835 + $0x18] sm:$0xff]
    %v2840 = vld [vmem:[#allocation4] sm:$0xff]
    %v2841 = vld [vmem:[#allocation5] sm:$0xff]
    %v2842 = vpack.c.bf16 %v2840, %v2840
    %2843 = vmatprep.subr.bf16.mxu0 %v850
    %2844 = vmatpush1.bf16.msra.mxu0 %v849
    %2845 = vmatprep.subr.bf16.mxu0 %v854
    %2846 = vmatpush1.bf16.msra.mxu0 %v853
    %2847 = vmatprep.subr.bf16.mxu0 %v858
    %2848 = vmatpush1.bf16.msra.mxu0 %v857
    %2849 = vmatprep.subr.bf16.mxu0 %v862
    %2850 = vmatpush1.bf16.msra.mxu0 %v861
    %2851 = vmatprep.subr.bf16.mxu0 %v866
    %2852 = vmatpush1.bf16.msra.mxu0 %v865
    %2853 = vmatprep.subr.bf16.mxu0 %v870
    %2854 = vmatpush1.bf16.msra.mxu0 %v869
    %2855 = vmatprep.subr.bf16.mxu0 %v874
    %2856 = vmatpush1.bf16.msra.mxu0 %v873
    %2857 = vmatprep.subr.bf16.mxu0 %v878
    %2858 = vmatpush1.bf16.msra.mxu0 %v877
    %2859 = vmatprep.subr.bf16.mxu0 0
    %2860 = vmatpush1.bf16.msra.mxu0 0
    %2861 = vmatprep.subr.bf16.mxu0 0
    %2862 = vmatpush1.bf16.msra.mxu0 0
    %2863 = vmatprep.subr.bf16.mxu0 0
    %2864 = vmatpush1.bf16.msra.mxu0 0
    %2865 = vmatprep.subr.bf16.mxu0 0
    %2866 = vmatpush1.bf16.msra.mxu0 0
    %2867 = vmatprep.subr.bf16.mxu0 0
    %2868 = vmatpush1.bf16.msra.mxu0 0
    %2869 = vmatprep.subr.bf16.mxu0 0
    %2870 = vmatpush1.bf16.msra.mxu0 0
    %2871 = vmatprep.subr.bf16.mxu0 0
    %2872 = vmatpush1.bf16.msra.mxu0 0
    %2873 = vmatprep.subr.bf16.mxu0 0
    %2874 = vmatpush1.bf16.msra.mxu0 0
    %2875 = vmatprep.mubr.bf16.mxu0 0
    %2876 = vmatmul.mubr.bf16.gmra.mrb[0].mxu0 %v2842
    %v2877 = vpop.f32.mrb[0].mxu0
    %v2878 = vadd.f32 0.0, %v2877
    %v2879 = vpop.f32.mrb[0].mxu0
    %v2880 = vadd.f32 0.0, %v2879
    %v2881 = vpop.f32.mrb[0].mxu0
    %v2882 = vpop.f32.mrb[0].mxu0
    %2883 = vdwg.mxu0
    %2884 = vmatprep.subr.bf16.mxu0 %v852
    %2885 = vmatpush1.bf16.msra.mxu0 %v851
    %2886 = vmatprep.subr.bf16.mxu0 %v856
    %2887 = vmatpush1.bf16.msra.mxu0 %v855
    %2888 = vmatprep.subr.bf16.mxu0 %v860
    %2889 = vmatpush1.bf16.msra.mxu0 %v859
    %2890 = vmatprep.subr.bf16.mxu0 %v864
    %2891 = vmatpush1.bf16.msra.mxu0 %v863
    %2892 = vmatprep.subr.bf16.mxu0 %v868
    %2893 = vmatpush1.bf16.msra.mxu0 %v867
    %2894 = vmatprep.subr.bf16.mxu0 %v872
    %2895 = vmatpush1.bf16.msra.mxu0 %v871
    %2896 = vmatprep.subr.bf16.mxu0 %v876
    %2897 = vmatpush1.bf16.msra.mxu0 %v875
    %2898 = vmatprep.subr.bf16.mxu0 %v880
    %2899 = vmatpush1.bf16.msra.mxu0 %v879
    %2900 = vmatprep.subr.bf16.mxu0 0
    %2901 = vmatpush1.bf16.msra.mxu0 0
    %2902 = vmatprep.subr.bf16.mxu0 0
    %2903 = vmatpush1.bf16.msra.mxu0 0
    %2904 = vmatprep.subr.bf16.mxu0 0
    %2905 = vmatpush1.bf16.msra.mxu0 0
    %2906 = vmatprep.subr.bf16.mxu0 0
    %2907 = vmatpush1.bf16.msra.mxu0 0
    %2908 = vmatprep.subr.bf16.mxu0 0
    %2909 = vmatpush1.bf16.msra.mxu0 0
    %2910 = vmatprep.subr.bf16.mxu0 0
    %2911 = vmatpush1.bf16.msra.mxu0 0
    %2912 = vmatprep.subr.bf16.mxu0 0
    %2913 = vmatpush1.bf16.msra.mxu0 0
    %2914 = vmatprep.subr.bf16.mxu0 0
    %2915 = vmatpush1.bf16.msra.mxu0 0
    %2916 = vmatprep.mubr.bf16.mxu0 0
    %2917 = vmatmul.mubr.bf16.gmra.mrb[0].mxu0 %v2842
    %v2918 = vpop.f32.mrb[0].mxu0
    %v2919 = vadd.f32 0.0, %v2918
    %v2920 = vpop.f32.mrb[0].mxu0
    %v2921 = vadd.f32 0.0, %v2920
    %v2922 = vpop.f32.mrb[0].mxu0
    %v2923 = vpop.f32.mrb[0].mxu0
    %2924 = vdwg.mxu0
    %v2925 = vadd.f32 %v2836, %v2878
    %v2926 = vadd.f32 %v2837, %v2880
    %v2927 = vadd.f32 %v2838, %v2919
    %v2928 = vadd.f32 %v2839, %v2921
    %v2929 = vtanh.pop %v2925
    %v2930 = vtanh.pop %v2926
    %v2931 = vtanh.pop %v2927
    %v2932 = vtanh.pop %v2928
    %v2933 = vmul.f32 %v2929, 0.5
    %v2934 = vadd.f32 %v2933, 0.5
    %v2935 = vmul.f32 %v2930, 0.5
    %v2936 = vadd.f32 %v2935, 0.5
    %v2937 = vmul.f32 %v2932, 0.5
    %v2938 = vadd.f32 %v2937, 0.5
    %v2939 = vmul.f32 %v2936, %v2841
    %v2940 = vmul.f32 %v2934, %v2931
    %v2941 = vadd.f32 %v2939, %v2940
    %v2942 = vtanh.pop %v2941
    %v2943 = vmul.f32 %v2938, %v2942
    %v2944 = vld [vmem:[#allocation3] sm:$0xff]
    %v2945 = vld [vmem:[#allocation3 + $0x8] sm:$0xff]
    %v2946 = vld [vmem:[#allocation3 + $0x10] sm:$0xff]
    %v2947 = vld [vmem:[#allocation3 + $0x18] sm:$0xff]
    %v2948 = vld [vmem:[#allocation6] sm:$0xff]
    %v2949 = vld [vmem:[#allocation7] sm:$0xff]
    %v2950 = vpack.c.bf16 %v2948, %v2948
    %2951 = vmatprep.subr.bf16.mxu0 %v1119
    %2952 = vmatpush1.bf16.msra.mxu0 %v1118
    %2953 = vmatprep.subr.bf16.mxu0 %v1123
    %2954 = vmatpush1.bf16.msra.mxu0 %v1122
    %2955 = vmatprep.subr.bf16.mxu0 %v1127
    %2956 = vmatpush1.bf16.msra.mxu0 %v1126
    %2957 = vmatprep.subr.bf16.mxu0 %v1131
    %2958 = vmatpush1.bf16.msra.mxu0 %v1130
    %2959 = vmatprep.subr.bf16.mxu0 %v1135
    %2960 = vmatpush1.bf16.msra.mxu0 %v1134
    %2961 = vmatprep.subr.bf16.mxu0 %v1139
    %2962 = vmatpush1.bf16.msra.mxu0 %v1138
    %2963 = vmatprep.subr.bf16.mxu0 %v1143
    %2964 = vmatpush1.bf16.msra.mxu0 %v1142
    %2965 = vmatprep.subr.bf16.mxu0 %v1147
    %2966 = vmatpush1.bf16.msra.mxu0 %v1146
    %2967 = vmatprep.subr.bf16.mxu0 0
    %2968 = vmatpush1.bf16.msra.mxu0 0
    %2969 = vmatprep.subr.bf16.mxu0 0
    %2970 = vmatpush1.bf16.msra.mxu0 0
    %2971 = vmatprep.subr.bf16.mxu0 0
    %2972 = vmatpush1.bf16.msra.mxu0 0
    %2973 = vmatprep.subr.bf16.mxu0 0
    %2974 = vmatpush1.bf16.msra.mxu0 0
    %2975 = vmatprep.subr.bf16.mxu0 0
    %2976 = vmatpush1.bf16.msra.mxu0 0
    %2977 = vmatprep.subr.bf16.mxu0 0
    %2978 = vmatpush1.bf16.msra.mxu0 0
    %2979 = vmatprep.subr.bf16.mxu0 0
    %2980 = vmatpush1.bf16.msra.mxu0 0
    %2981 = vmatprep.subr.bf16.mxu0 0
    %2982 = vmatpush1.bf16.msra.mxu0 0
    %2983 = vmatprep.mubr.bf16.mxu0 0
    %2984 = vmatmul.mubr.bf16.gmra.mrb[0].mxu0 %v2950
    %v2985 = vpop.f32.mrb[0].mxu0
    %v2986 = vadd.f32 0.0, %v2985
    %v2987 = vpop.f32.mrb[0].mxu0
    %v2988 = vadd.f32 0.0, %v2987
    %v2989 = vpop.f32.mrb[0].mxu0
    %v2990 = vpop.f32.mrb[0].mxu0
    %2991 = vdwg.mxu0
    %2992 = vmatprep.subr.bf16.mxu0 %v1121
    %2993 = vmatpush1.bf16.msra.mxu0 %v1120
    %2994 = vmatprep.subr.bf16.mxu0 %v1125
    %2995 = vmatpush1.bf16.msra.mxu0 %v1124
    %2996 = vmatprep.subr.bf16.mxu0 %v1129
    %2997 = vmatpush1.bf16.msra.mxu0 %v1128
    %2998 = vmatprep.subr.bf16.mxu0 %v1133
    %2999 = vmatpush1.bf16.msra.mxu0 %v1132
    %3000 = vmatprep.subr.bf16.mxu0 %v1137
    %3001 = vmatpush1.bf16.msra.mxu0 %v1136
    %3002 = vmatprep.subr.bf16.mxu0 %v1141
    %3003 = vmatpush1.bf16.msra.mxu0 %v1140
    %3004 = vmatprep.subr.bf16.mxu0 %v1145
    %3005 = vmatpush1.bf16.msra.mxu0 %v1144
    %3006 = vmatprep.subr.bf16.mxu0 %v1149
    %3007 = vmatpush1.bf16.msra.mxu0 %v1148
    %3008 = vmatprep.subr.bf16.mxu0 0
    %3009 = vmatpush1.bf16.msra.mxu0 0
    %3010 = vmatprep.subr.bf16.mxu0 0
    %3011 = vmatpush1.bf16.msra.mxu0 0
    %3012 = vmatprep.subr.bf16.mxu0 0
    %3013 = vmatpush1.bf16.msra.mxu0 0
    %3014 = vmatprep.subr.bf16.mxu0 0
    %3015 = vmatpush1.bf16.msra.mxu0 0
    %3016 = vmatprep.subr.bf16.mxu0 0
    %3017 = vmatpush1.bf16.msra.mxu0 0
    %3018 = vmatprep.subr.bf16.mxu0 0
    %3019 = vmatpush1.bf16.msra.mxu0 0
    %3020 = vmatprep.subr.bf16.mxu0 0
    %3021 = vmatpush1.bf16.msra.mxu0 0
    %3022 = vmatprep.subr.bf16.mxu0 0
    %3023 = vmatpush1.bf16.msra.mxu0 0
    %3024 = vmatprep.mubr.bf16.mxu0 0
    %3025 = vmatmul.mubr.bf16.gmra.mrb[0].mxu0 %v2950
    %v3026 = vpop.f32.mrb[0].mxu0
    %v3027 = vadd.f32 0.0, %v3026
    %v3028 = vpop.f32.mrb[0].mxu0
    %v3029 = vadd.f32 0.0, %v3028
    %v3030 = vpop.f32.mrb[0].mxu0
    %v3031 = vpop.f32.mrb[0].mxu0
    %3032 = vdwg.mxu0
    %v3033 = vadd.f32 %v2944, %v2986
    %v3034 = vadd.f32 %v2945, %v2988
    %v3035 = vadd.f32 %v2946, %v3027
    %v3036 = vadd.f32 %v2947, %v3029
    %v3037 = vtanh.pop %v3033
    %v3038 = vtanh.pop %v3034
    %v3039 = vtanh.pop %v3035
    %v3040 = vtanh.pop %v3036
    %v3041 = vmul.f32 %v3037, 0.5
    %v3042 = vadd.f32 %v3041, 0.5
    %v3043 = vmul.f32 %v3038, 0.5
    %v3044 = vadd.f32 %v3043, 0.5
    %v3045 = vmul.f32 %v3040, 0.5
    %v3046 = vadd.f32 %v3045, 0.5
    %v3047 = vmul.f32 %v3044, %v2949
    %v3048 = vmul.f32 %v3042, %v3039
    %v3049 = vadd.f32 %v3047, %v3048
    %v3050 = vtanh.pop %v3049
    %v3051 = vmul.f32 %v3046, %v3050
    %v3052 = vstv %s2833
    %vm3053 = vcmp.lt.s32.totalorder %v3052, %v99
    %v3054 = vsel %vm3053, 1, 0
    %3055 = vset.pattern.permute.xlu0 0
    %3056 = vperm.xlu0 %3055, %v3054
    %v3057 = vpop.permute.xlu0 %3056
    %vm3058 = vcmp.eq.s32.totalorder %v3057, 1
    %v3059 = vstv %s2834
    %vm3060 = vcmp.lt.s32.totalorder %v3059, %v99
    %v3061 = vsel %vm3060, 1, 0
    %3062 = vset.pattern.permute.xlu0 0
    %3063 = vperm.xlu0 %3062, %v3061
    %v3064 = vpop.permute.xlu0 %3063
    %vm3065 = vcmp.eq.s32.totalorder %v3064, 1
    %v3066 = vsel %vm3058, %v2943, %v2840
    %3067 = vst [vmem:[#allocation4] sm:$0xff] %v3066
    %v3068 = vld [vmem:[#allocation5] sm:$0xff]
    %v3069 = vsel %vm3058, %v2941, %v3068
    %3070 = vst [vmem:[#allocation5] sm:$0xff] %v3069
    %v3071 = vld [vmem:[#allocation6] sm:$0xff]
    %v3072 = vsel %vm3065, %v3051, %v3071
    %3073 = vst [vmem:[#allocation6] sm:$0xff] %v3072
    %v3074 = vld [vmem:[#allocation7] sm:$0xff]
    %v3075 = vsel %vm3065, %v3049, %v3074
    %3076 = vst [vmem:[#allocation7] sm:$0xff] %v3075
    %v3077 = vsel %vm3058, %v2943, 0.0
    %v3078 = vpack.c.bf16 %v3077, %v3077
    %s3079 = scalar_lea.vmem [#allocation16], 28
    %3080 = vst [vmem:[%s3079] sm:$0xf] %v3078
    %v3081 = vsel %vm3065, %v3051, 0.0
    %v3082 = vpack.c.bf16 %v3081, %v3081
    %3083 = vst [vmem:[#allocation17] sm:$0xf] %v3082
    // Predicated region
    $region46: #{tpu_custom_call.1} parent=1 // pred_check
      _
    $region47: #{tpu_custom_call.1} parent=1 // pred_check_branch
      %3085 = sbr.rel (0) target = $region49
    $region48: #{tpu_custom_call.1} parent=1 // pred_region
      %s3087 = ssub.s32 512, 512
      %3088 = vsyncadd [#allocation10], %s3087
      %s3089 = sshll.u32 [#allocation16], 4
      %s3090 = int_to_ptr.vmem [resolvable:$true] %s3089
      %3095 = dma.vmem_to_hbm [thread:$0]  %s3090, 512, %s6, [#allocation10], 64, 64, 4
    $region49: #{tpu_custom_call.1} parent=1 // pred_fallthru
      _
    // Predicated region
    $region50: #{tpu_custom_call.1} parent=1 // pred_check
      _
    $region51: #{tpu_custom_call.1} parent=1 // pred_check_branch
      %3097 = sbr.rel (0) target = $region53
    $region52: #{tpu_custom_call.1} parent=1 // pred_region
      %s3098 = ssub.s32 0, 0
      %s3099 = smul.u32 8, %s3098
      %s3101 = ssub.s32 512, 512
      %3102 = vsyncadd [#allocation18], %s3101
      %s3103 = smul.addr %s3099, 64
      %s3104 = scalar_lea.hbm %s7, %s3103
      %s3105 = sshll.u32 [#allocation17], 4
      %s3106 = int_to_ptr.vmem [resolvable:$true] %s3105
      %3111 = dma.vmem_to_hbm [thread:$0]  %s3106, 512, %s3104, [#allocation18], 64, 64, 4
    $region53: #{tpu_custom_call.1} parent=1 // pred_fallthru
      _
    // Predicated region
    $region54: #{tpu_custom_call.1} parent=1 // pred_check
      _
    $region55: #{tpu_custom_call.1} parent=1 // pred_check_branch
      %3113 = sbr.rel (0) target = $region57
    $region56: #{tpu_custom_call.1} parent=1 // pred_region
      %3114 = dma.done [#allocation10], 512
    $region57: #{tpu_custom_call.1} parent=1 // pred_fallthru
      _
    // Predicated region
    $region58: #{tpu_custom_call.1} parent=1 // pred_check
      _
    $region59: #{tpu_custom_call.1} parent=1 // pred_check_branch
      %3116 = sbr.rel (0) target = $region61
    $region60: #{tpu_custom_call.1} parent=1 // pred_region
      %3117 = dma.done [#allocation18], 512
    $region61: #{tpu_custom_call.1} parent=1 // pred_fallthru
      _
    %3118 = vsyncpa [#allocation9], 1
    %3119 = vsyncpa [#allocation12], 1
    %3120 = vsyncpa [#allocation15], 1
    %3121 = vsyncpa [#allocation10], 1
    %3122 = vsyncpa [#allocation18], 1

</llo_original>
